<compile_context>
chip_gen: v5e
topology: v5e:2x2
jax: 0.10.0
libtpu: 0.0.40
codegen_flags: <defaults>
</compile_context>

<pallas_src>
import functools

import jax
import jax.numpy as jnp
from jax import lax
from jax.experimental import pallas as pl
from jax.experimental.pallas import tpu as pltpu


# ----------------------------------------------------------------------------
# Fused kernel: one image per grid step, NHWC in VMEM, all BN pre-folded.
# ----------------------------------------------------------------------------
def _conv_block_kernel(x_ref, dw1_ref, pw1_ref, c1_ref, dw2_ref, pw2_ref,
                       c2_ref, y_ref, pad1_ref, pad2_ref):
    # x_ref:    (1, H, W, Cin)  input image (NHWC)
    # dw1_ref:  (9, 1, Cin)     depthwise 3x3 #1 weights, tap-major, *BN1 scale folded*
    # pw1_ref:  (Cin, Cout)     1x1 conv #1 weight (in x out), *BN2 scale folded*
    # c1_ref:   (1, Cout)       folded bias (BN1 bias pushed through pw1 + BN2 bias)
    # dw2_ref:  (9, 1, Cout)    depthwise 3x3 #2 weights, *BN3 scale folded*
    # pw2_ref:  (Cout, Cout)    1x1 conv #2 weight (out x in), *BN4 scale folded*
    # c2_ref:   (Cout, 1)       folded bias (BN3 bias pushed through pw2 + BN4 bias)
    # y_ref:    (1, Cout, H*W)  lane-dense output (== flattened NCHW)
    # pad1/pad2: VMEM scratch holding the zero-padded depthwise inputs
    _, H, W, Cin = x_ref.shape
    Cout = y_ref.shape[1]
    f32 = jnp.float32

    # ---- depthwise 3x3 #1 ("same" padding via VMEM scratch) -----------------
    # Only the 1-wide border frame needs zeroing; the interior is overwritten.
    pad1_ref[0:1, :, :] = jnp.zeros((1, W + 2, Cin), f32)
    pad1_ref[H + 1:H + 2, :, :] = jnp.zeros((1, W + 2, Cin), f32)
    pad1_ref[:, 0:1, :] = jnp.zeros((H + 2, 1, Cin), f32)
    pad1_ref[:, W + 1:W + 2, :] = jnp.zeros((H + 2, 1, Cin), f32)
    pad1_ref[1:H + 1, 1:W + 1, :] = x_ref[0].astype(f32)

    acc = jnp.zeros((H, W, Cin), f32)
    for k in range(9):                       # 9 per-channel VPU FMAs (unrolled)
        ki, kj = k // 3, k % 3
        acc = acc + pad1_ref[ki:ki + H, kj:kj + W, :] * dw1_ref[k]

    # ---- 1x1 conv #1 (MXU) + folded bias + ReLU ------------------------------
    h = jnp.dot(acc.reshape(H * W, Cin), pw1_ref[...],
                preferred_element_type=f32)                      # (H*W, Cout)
    h = jnp.maximum(h + c1_ref[...], 0.0)

    # ---- depthwise 3x3 #2 ----------------------------------------------------
    pad2_ref[0:1, :, :] = jnp.zeros((1, W + 2, Cout), f32)
    pad2_ref[H + 1:H + 2, :, :] = jnp.zeros((1, W + 2, Cout), f32)
    pad2_ref[:, 0:1, :] = jnp.zeros((H + 2, 1, Cout), f32)
    pad2_ref[:, W + 1:W + 2, :] = jnp.zeros((H + 2, 1, Cout), f32)
    pad2_ref[1:H + 1, 1:W + 1, :] = h.reshape(H, W, Cout)

    acc2 = jnp.zeros((H, W, Cout), f32)
    for k in range(9):
        ki, kj = k // 3, k % 3
        acc2 = acc2 + pad2_ref[ki:ki + H, kj:kj + W, :] * dw2_ref[k]

    # ---- 1x1 conv #2 transposed (H*W on lanes) + folded bias + ReLU ---------
    h2 = acc2.reshape(H * W, Cout)
    # z[o, p] = sum_c pw2[o, c] * h2[p, c]   -> lane-dense (Cout, H*W) output
    z = lax.dot_general(pw2_ref[...], h2,
                        dimension_numbers=(((1,), (1,)), ((), ())),
                        preferred_element_type=f32)              # (Cout, H*W)
    y_ref[0] = jnp.maximum(z + c2_ref[...], 0.0).astype(y_ref.dtype)


# ----------------------------------------------------------------------------
# Wrapper: NCHW boundary, BN folding into weights/biases (one-off glue).
# ----------------------------------------------------------------------------
def _fold_bn(gamma, beta, mean, var, eps):
    scale = gamma / jnp.sqrt(var + eps)
    return scale, beta - mean * scale


@functools.partial(jax.jit, static_argnames=("eps",))
def conv_block_forward(x_nchw, params, *, eps=1e-5):
    N, Cin, H, W = x_nchw.shape
    Cout = params["pw1"].shape[0]

    x = jnp.transpose(x_nchw, (0, 2, 3, 1)).astype(jnp.float32)   # -> NHWC

    s1, b1 = _fold_bn(params["g1"], params["bb1"], params["m1"], params["v1"], eps)
    s2, b2 = _fold_bn(params["g2"], params["bb2"], params["m2"], params["v2"], eps)
    s3, b3 = _fold_bn(params["g3"], params["bb3"], params["m3"], params["v3"], eps)
    s4, b4 = _fold_bn(params["g4"], params["bb4"], params["m4"], params["v4"], eps)

    # Depthwise weights: (C, 1, 3, 3) -> tap-major (9, 1, C), BN scale folded in.
    dw1 = jnp.transpose(params["dw1"].reshape(Cin, 3, 3) * s1[:, None, None],
                        (1, 2, 0)).reshape(9, 1, Cin)
    dw2 = jnp.transpose(params["dw2"].reshape(Cout, 3, 3) * s3[:, None, None],
                        (1, 2, 0)).reshape(9, 1, Cout)

    # Pointwise weights with BN output scales folded; BN input biases pushed
    # through the 1x1 conv into a single per-output-channel bias.
    pw1_t = params["pw1"].reshape(Cout, Cin).T                   # (Cin, Cout)
    pw1 = pw1_t * s2[None, :]                                    # (Cin, Cout)
    c1 = (b1 @ pw1_t) * s2 + b2                                  # (Cout,)

    pw2_oi = params["pw2"].reshape(Cout, Cout)                   # (out, in)
    pw2 = pw2_oi * s4[:, None]                                   # (out, in)
    c2 = s4 * (pw2_oi @ b3) + b4                                 # (Cout,)

    def wspec2(shp):
        return pl.BlockSpec(shp, lambda n: (0, 0))

    def wspec3(shp):
        return pl.BlockSpec(shp, lambda n: (0, 0, 0))

    y = pl.pallas_call(
        _conv_block_kernel,
        out_shape=jax.ShapeDtypeStruct((N, Cout, H * W), jnp.float32),
        grid=(N,),
        in_specs=[
            pl.BlockSpec((1, H, W, Cin), lambda n: (n, 0, 0, 0)),
            wspec3((9, 1, Cin)),
            wspec2((Cin, Cout)),
            wspec2((1, Cout)),
            wspec3((9, 1, Cout)),
            wspec2((Cout, Cout)),
            wspec2((Cout, 1)),
        ],
        out_specs=pl.BlockSpec((1, Cout, H * W), lambda n: (n, 0, 0)),
        scratch_shapes=[
            pltpu.VMEM((H + 2, W + 2, Cin), jnp.float32),
            pltpu.VMEM((H + 2, W + 2, Cout), jnp.float32),
        ],
        compiler_params=pltpu.CompilerParams(
            dimension_semantics=("parallel",)),
    )(x, dw1, pw1, c1.reshape(1, Cout),
      dw2, pw2, c2.reshape(Cout, 1))

    # Output already channel-major and lane-dense: NCHW is a free reshape.
    return y.reshape(N, Cout, H, W)


# ----------------------------------------------------------------------------
# Deterministic parameter init (shapes follow the PyTorch module, eval-mode BN)
# ----------------------------------------------------------------------------
def init_params(key, cin, cout):
    keys = jax.random.split(key, 8)
    p = {
        "dw1": 0.3 * jax.random.normal(keys[0], (cin, 1, 3, 3), jnp.float32),
        "pw1": 0.3 * jax.random.normal(keys[1], (cout, cin, 1, 1), jnp.float32),
        "dw2": 0.3 * jax.random.normal(keys[2], (cout, 1, 3, 3), jnp.float32),
        "pw2": 0.3 * jax.random.normal(keys[3], (cout, cout, 1, 1), jnp.float32),
    }
    for i, c in zip((1, 2, 3, 4), (cin, cout, cout, cout)):
        kg, kb, km, kv = jax.random.split(keys[3 + i], 4)
        p[f"g{i}"] = 1.0 + 0.1 * jax.random.normal(kg, (c,), jnp.float32)
        p[f"bb{i}"] = 0.1 * jax.random.normal(kb, (c,), jnp.float32)
        p[f"m{i}"] = 0.1 * jax.random.normal(km, (c,), jnp.float32)
        p[f"v{i}"] = 1.0 + 0.2 * jax.random.uniform(kv, (c,), jnp.float32)
    return p


# ----------------------------------------------------------------------------
# Pure-JAX reference (NCHW, same math as the PyTorch module in eval mode)
# ----------------------------------------------------------------------------
def conv_block_ref(x, params, eps=1e-5):
    def bn(h, i):
        g, b = params[f"g{i}"], params[f"bb{i}"]
        m, v = params[f"m{i}"], params[f"v{i}"]
        inv = g / jnp.sqrt(v + eps)
        return (h - m[None, :, None, None]) * inv[None, :, None, None] \
            + b[None, :, None, None]

    cin = x.shape[1]
    cout = params["pw1"].shape[0]
    h = lax.conv_general_dilated(x, params["dw1"], (1, 1), ((1, 1), (1, 1)),
                                 feature_group_count=cin)
    h = bn(h, 1)
    h = lax.conv_general_dilated(h, params["pw1"], (1, 1), "VALID")
    h = jax.nn.relu(bn(h, 2))
    h = lax.conv_general_dilated(h, params["dw2"], (1, 1), ((1, 1), (1, 1)),
                                 feature_group_count=cout)
    h = bn(h, 3)
    h = lax.conv_general_dilated(h, params["pw2"], (1, 1), "VALID")
    return jax.nn.relu(bn(h, 4))


if __name__ == "__main__":
    N, Cin, H, W = 2, 4, 16, 16
    Cout = 8

    key = jax.random.PRNGKey(0)
    kx, kp = jax.random.split(key)
    x = jax.random.normal(kx, (N, Cin, H, W), jnp.float32)
    params = init_params(kp, Cin, Cout)

    y = jax.block_until_ready(conv_block_forward(x, params))
    y_ref = jax.block_until_ready(conv_block_ref(x, params))

    assert y.shape == (N, Cout, H, W), y.shape
    err = float(jnp.max(jnp.abs(y - y_ref)))
    assert err < 1e-3, err
    print("KERNEL_OK")
</pallas_src>

<mosaic_0001>
module attributes {stable_mosaic.version = 11 : i64} {
  func.func @_conv_block_kernel(%arg0: i32, %arg1: memref<1x16x16x4xf32, #tpu.memory_space<vmem>>, %arg2: memref<9x1x4xf32, #tpu.memory_space<vmem>>, %arg3: memref<4x8xf32, #tpu.memory_space<vmem>>, %arg4: memref<1x8xf32, #tpu.memory_space<vmem>>, %arg5: memref<9x1x8xf32, #tpu.memory_space<vmem>>, %arg6: memref<8x8xf32, #tpu.memory_space<vmem>>, %arg7: memref<8x1xf32, #tpu.memory_space<vmem>>, %arg8: memref<1x8x256xf32, #tpu.memory_space<vmem>>, %arg9: memref<18x18x4xf32, #tpu.memory_space<vmem>>, %arg10: memref<18x18x8xf32, #tpu.memory_space<vmem>>) attributes {dimension_semantics = [#tpu.dimension_semantics<parallel>], iteration_bounds = array<i64: 2>, scalar_prefetch = 0 : i64, scratch_operands = 2 : i64, tpu.core_type = #tpu.core_type<tc>, window_params = [{transform_indices = @transform_0, window_bounds = array<i64: 1, 16, 16, 4>}, {pipeline_mode = #tpu.pipeline_mode<synchronous>, transform_indices = @transform_1, window_bounds = array<i64: 9, 1, 4>}, {pipeline_mode = #tpu.pipeline_mode<synchronous>, transform_indices = @transform_2, window_bounds = array<i64: 4, 8>}, {pipeline_mode = #tpu.pipeline_mode<synchronous>, transform_indices = @transform_3, window_bounds = array<i64: 1, 8>}, {pipeline_mode = #tpu.pipeline_mode<synchronous>, transform_indices = @transform_4, window_bounds = array<i64: 9, 1, 8>}, {pipeline_mode = #tpu.pipeline_mode<synchronous>, transform_indices = @transform_5, window_bounds = array<i64: 8, 8>}, {pipeline_mode = #tpu.pipeline_mode<synchronous>, transform_indices = @transform_6, window_bounds = array<i64: 8, 1>}, {transform_indices = @transform_7, window_bounds = array<i64: 1, 8, 256>}]} {
    %cst = arith.constant 0.000000e+00 : f32
    %0 = vector.broadcast %cst : f32 to vector<1x18x4xf32>
    %c0 = arith.constant 0 : index
    %c0_0 = arith.constant 0 : index
    %c0_1 = arith.constant 0 : index
    %1 = vector.load %arg9[%c0, %c0_0, %c0_1] : memref<18x18x4xf32, #tpu.memory_space<vmem>>, vector<1x18x4xf32>
    tpu.vector_store %arg9[%c0, %c0_0, %c0_1], %0 {strides = array<i32>} : memref<18x18x4xf32, #tpu.memory_space<vmem>>, vector<1x18x4xf32>,
    %cst_2 = arith.constant 0.000000e+00 : f32
    %2 = vector.broadcast %cst_2 : f32 to vector<1x18x4xf32>
    %c17 = arith.constant 17 : index
    %c0_3 = arith.constant 0 : index
    %c0_4 = arith.constant 0 : index
    %3 = vector.load %arg9[%c17, %c0_3, %c0_4] : memref<18x18x4xf32, #tpu.memory_space<vmem>>, vector<1x18x4xf32>
    tpu.vector_store %arg9[%c17, %c0_3, %c0_4], %2 {strides = array<i32>} : memref<18x18x4xf32, #tpu.memory_space<vmem>>, vector<1x18x4xf32>,
    %cst_5 = arith.constant 0.000000e+00 : f32
    %4 = vector.broadcast %cst_5 : f32 to vector<18x1x4xf32>
    %c0_6 = arith.constant 0 : index
    %c0_7 = arith.constant 0 : index
    %c0_8 = arith.constant 0 : index
    %5 = vector.load %arg9[%c0_6, %c0_7, %c0_8] : memref<18x18x4xf32, #tpu.memory_space<vmem>>, vector<18x1x4xf32>
    tpu.vector_store %arg9[%c0_6, %c0_7, %c0_8], %4 {strides = array<i32>} : memref<18x18x4xf32, #tpu.memory_space<vmem>>, vector<18x1x4xf32>,
    %cst_9 = arith.constant 0.000000e+00 : f32
    %6 = vector.broadcast %cst_9 : f32 to vector<18x1x4xf32>
    %c0_10 = arith.constant 0 : index
    %c17_11 = arith.constant 17 : index
    %c0_12 = arith.constant 0 : index
    %7 = vector.load %arg9[%c0_10, %c17_11, %c0_12] : memref<18x18x4xf32, #tpu.memory_space<vmem>>, vector<18x1x4xf32>
    tpu.vector_store %arg9[%c0_10, %c17_11, %c0_12], %6 {strides = array<i32>} : memref<18x18x4xf32, #tpu.memory_space<vmem>>, vector<18x1x4xf32>,
    %c0_13 = arith.constant 0 : index
    %c0_14 = arith.constant 0 : index
    %c0_15 = arith.constant 0 : index
    %c0_16 = arith.constant 0 : index
    %8 = vector.load %arg1[%c0_13, %c0_14, %c0_15, %c0_16] : memref<1x16x16x4xf32, #tpu.memory_space<vmem>>, vector<1x16x16x4xf32>
    %9 = vector.shape_cast %8 : vector<1x16x16x4xf32> to vector<16x16x4xf32>
    %c1 = arith.constant 1 : index
    %c1_17 = arith.constant 1 : index
    %c0_18 = arith.constant 0 : index
    %10 = vector.load %arg9[%c1, %c1_17, %c0_18] : memref<18x18x4xf32, #tpu.memory_space<vmem>>, vector<16x16x4xf32>
    tpu.vector_store %arg9[%c1, %c1_17, %c0_18], %9 {strides = array<i32>} : memref<18x18x4xf32, #tpu.memory_space<vmem>>, vector<16x16x4xf32>,
    %cst_19 = arith.constant 0.000000e+00 : f32
    %11 = vector.broadcast %cst_19 : f32 to vector<16x16x4xf32>
    %c0_20 = arith.constant 0 : index
    %c0_21 = arith.constant 0 : index
    %c0_22 = arith.constant 0 : index
    %12 = vector.load %arg9[%c0_20, %c0_21, %c0_22] : memref<18x18x4xf32, #tpu.memory_space<vmem>>, vector<16x16x4xf32>
    %c0_23 = arith.constant 0 : index
    %c0_24 = arith.constant 0 : index
    %c0_25 = arith.constant 0 : index
    %13 = vector.load %arg2[%c0_23, %c0_24, %c0_25] : memref<9x1x4xf32, #tpu.memory_space<vmem>>, vector<1x1x4xf32>
    %14 = vector.shape_cast %13 : vector<1x1x4xf32> to vector<1x4xf32>
    %15 = vector.shape_cast %14 : vector<1x4xf32> to vector<1x1x4xf32>
    %16 = vector.broadcast %15 : vector<1x1x4xf32> to vector<16x16x4xf32>
    %17 = arith.mulf %12, %16 : vector<16x16x4xf32>
    %18 = arith.addf %11, %17 : vector<16x16x4xf32>
    %c0_26 = arith.constant 0 : index
    %c1_27 = arith.constant 1 : index
    %c0_28 = arith.constant 0 : index
    %19 = vector.load %arg9[%c0_26, %c1_27, %c0_28] : memref<18x18x4xf32, #tpu.memory_space<vmem>>, vector<16x16x4xf32>
    %c1_29 = arith.constant 1 : index
    %c0_30 = arith.constant 0 : index
    %c0_31 = arith.constant 0 : index
    %20 = vector.load %arg2[%c1_29, %c0_30, %c0_31] : memref<9x1x4xf32, #tpu.memory_space<vmem>>, vector<1x1x4xf32>
    %21 = vector.shape_cast %20 : vector<1x1x4xf32> to vector<1x4xf32>
    %22 = vector.shape_cast %21 : vector<1x4xf32> to vector<1x1x4xf32>
    %23 = vector.broadcast %22 : vector<1x1x4xf32> to vector<16x16x4xf32>
    %24 = arith.mulf %19, %23 : vector<16x16x4xf32>
    %25 = arith.addf %18, %24 : vector<16x16x4xf32>
    %c0_32 = arith.constant 0 : index
    %c2 = arith.constant 2 : index
    %c0_33 = arith.constant 0 : index
    %26 = vector.load %arg9[%c0_32, %c2, %c0_33] : memref<18x18x4xf32, #tpu.memory_space<vmem>>, vector<16x16x4xf32>
    %c2_34 = arith.constant 2 : index
    %c0_35 = arith.constant 0 : index
    %c0_36 = arith.constant 0 : index
    %27 = vector.load %arg2[%c2_34, %c0_35, %c0_36] : memref<9x1x4xf32, #tpu.memory_space<vmem>>, vector<1x1x4xf32>
    %28 = vector.shape_cast %27 : vector<1x1x4xf32> to vector<1x4xf32>
    %29 = vector.shape_cast %28 : vector<1x4xf32> to vector<1x1x4xf32>
    %30 = vector.broadcast %29 : vector<1x1x4xf32> to vector<16x16x4xf32>
    %31 = arith.mulf %26, %30 : vector<16x16x4xf32>
    %32 = arith.addf %25, %31 : vector<16x16x4xf32>
    %c1_37 = arith.constant 1 : index
    %c0_38 = arith.constant 0 : index
    %c0_39 = arith.constant 0 : index
    %33 = vector.load %arg9[%c1_37, %c0_38, %c0_39] : memref<18x18x4xf32, #tpu.memory_space<vmem>>, vector<16x16x4xf32>
    %c3 = arith.constant 3 : index
    %c0_40 = arith.constant 0 : index
    %c0_41 = arith.constant 0 : index
    %34 = vector.load %arg2[%c3, %c0_40, %c0_41] : memref<9x1x4xf32, #tpu.memory_space<vmem>>, vector<1x1x4xf32>
    %35 = vector.shape_cast %34 : vector<1x1x4xf32> to vector<1x4xf32>
    %36 = vector.shape_cast %35 : vector<1x4xf32> to vector<1x1x4xf32>
    %37 = vector.broadcast %36 : vector<1x1x4xf32> to vector<16x16x4xf32>
    %38 = arith.mulf %33, %37 : vector<16x16x4xf32>
    %39 = arith.addf %32, %38 : vector<16x16x4xf32>
    %c1_42 = arith.constant 1 : index
    %c1_43 = arith.constant 1 : index
    %c0_44 = arith.constant 0 : index
    %40 = vector.load %arg9[%c1_42, %c1_43, %c0_44] : memref<18x18x4xf32, #tpu.memory_space<vmem>>, vector<16x16x4xf32>
    %c4 = arith.constant 4 : index
    %c0_45 = arith.constant 0 : index
    %c0_46 = arith.constant 0 : index
    %41 = vector.load %arg2[%c4, %c0_45, %c0_46] : memref<9x1x4xf32, #tpu.memory_space<vmem>>, vector<1x1x4xf32>
    %42 = vector.shape_cast %41 : vector<1x1x4xf32> to vector<1x4xf32>
    %43 = vector.shape_cast %42 : vector<1x4xf32> to vector<1x1x4xf32>
    %44 = vector.broadcast %43 : vector<1x1x4xf32> to vector<16x16x4xf32>
    %45 = arith.mulf %40, %44 : vector<16x16x4xf32>
    %46 = arith.addf %39, %45 : vector<16x16x4xf32>
    %c1_47 = arith.constant 1 : index
    %c2_48 = arith.constant 2 : index
    %c0_49 = arith.constant 0 : index
    %47 = vector.load %arg9[%c1_47, %c2_48, %c0_49] : memref<18x18x4xf32, #tpu.memory_space<vmem>>, vector<16x16x4xf32>
    %c5 = arith.constant 5 : index
    %c0_50 = arith.constant 0 : index
    %c0_51 = arith.constant 0 : index
    %48 = vector.load %arg2[%c5, %c0_50, %c0_51] : memref<9x1x4xf32, #tpu.memory_space<vmem>>, vector<1x1x4xf32>
    %49 = vector.shape_cast %48 : vector<1x1x4xf32> to vector<1x4xf32>
    %50 = vector.shape_cast %49 : vector<1x4xf32> to vector<1x1x4xf32>
    %51 = vector.broadcast %50 : vector<1x1x4xf32> to vector<16x16x4xf32>
    %52 = arith.mulf %47, %51 : vector<16x16x4xf32>
    %53 = arith.addf %46, %52 : vector<16x16x4xf32>
    %c2_52 = arith.constant 2 : index
    %c0_53 = arith.constant 0 : index
    %c0_54 = arith.constant 0 : index
    %54 = vector.load %arg9[%c2_52, %c0_53, %c0_54] : memref<18x18x4xf32, #tpu.memory_space<vmem>>, vector<16x16x4xf32>
    %c6 = arith.constant 6 : index
    %c0_55 = arith.constant 0 : index
    %c0_56 = arith.constant 0 : index
    %55 = vector.load %arg2[%c6, %c0_55, %c0_56] : memref<9x1x4xf32, #tpu.memory_space<vmem>>, vector<1x1x4xf32>
    %56 = vector.shape_cast %55 : vector<1x1x4xf32> to vector<1x4xf32>
    %57 = vector.shape_cast %56 : vector<1x4xf32> to vector<1x1x4xf32>
    %58 = vector.broadcast %57 : vector<1x1x4xf32> to vector<16x16x4xf32>
    %59 = arith.mulf %54, %58 : vector<16x16x4xf32>
    %60 = arith.addf %53, %59 : vector<16x16x4xf32>
    %c2_57 = arith.constant 2 : index
    %c1_58 = arith.constant 1 : index
    %c0_59 = arith.constant 0 : index
    %61 = vector.load %arg9[%c2_57, %c1_58, %c0_59] : memref<18x18x4xf32, #tpu.memory_space<vmem>>, vector<16x16x4xf32>
    %c7 = arith.constant 7 : index
    %c0_60 = arith.constant 0 : index
    %c0_61 = arith.constant 0 : index
    %62 = vector.load %arg2[%c7, %c0_60, %c0_61] : memref<9x1x4xf32, #tpu.memory_space<vmem>>, vector<1x1x4xf32>
    %63 = vector.shape_cast %62 : vector<1x1x4xf32> to vector<1x4xf32>
    %64 = vector.shape_cast %63 : vector<1x4xf32> to vector<1x1x4xf32>
    %65 = vector.broadcast %64 : vector<1x1x4xf32> to vector<16x16x4xf32>
    %66 = arith.mulf %61, %65 : vector<16x16x4xf32>
    %67 = arith.addf %60, %66 : vector<16x16x4xf32>
    %c2_62 = arith.constant 2 : index
    %c2_63 = arith.constant 2 : index
    %c0_64 = arith.constant 0 : index
    %68 = vector.load %arg9[%c2_62, %c2_63, %c0_64] : memref<18x18x4xf32, #tpu.memory_space<vmem>>, vector<16x16x4xf32>
    %c8 = arith.constant 8 : index
    %c0_65 = arith.constant 0 : index
    %c0_66 = arith.constant 0 : index
    %69 = vector.load %arg2[%c8, %c0_65, %c0_66] : memref<9x1x4xf32, #tpu.memory_space<vmem>>, vector<1x1x4xf32>
    %70 = vector.shape_cast %69 : vector<1x1x4xf32> to vector<1x4xf32>
    %71 = vector.shape_cast %70 : vector<1x4xf32> to vector<1x1x4xf32>
    %72 = vector.broadcast %71 : vector<1x1x4xf32> to vector<16x16x4xf32>
    %73 = arith.mulf %68, %72 : vector<16x16x4xf32>
    %74 = arith.addf %67, %73 : vector<16x16x4xf32>
    %75 = vector.shape_cast %74 : vector<16x16x4xf32> to vector<256x4xf32>
    %c0_67 = arith.constant 0 : index
    %c0_68 = arith.constant 0 : index
    %76 = vector.load %arg3[%c0_67, %c0_68] : memref<4x8xf32, #tpu.memory_space<vmem>>, vector<4x8xf32>
    %cst_69 = arith.constant dense<0.000000e+00> : vector<256x8xf32>
    %77 = tpu.matmul %75, %76, %cst_69 {dimension_numbers = #tpu.dot_dimension_numbers<[1], [0], [0], [1], [0, 0, 1, 1], [], []>} : vector<256x4xf32>, vector<4x8xf32>, vector<256x8xf32> -> vector<256x8xf32>
    %c0_70 = arith.constant 0 : index
    %c0_71 = arith.constant 0 : index
    %78 = vector.load %arg4[%c0_70, %c0_71] : memref<1x8xf32, #tpu.memory_space<vmem>>, vector<1x8xf32>
    %79 = vector.broadcast %78 : vector<1x8xf32> to vector<256x8xf32>
    %80 = arith.addf %77, %79 : vector<256x8xf32>
    %cst_72 = arith.constant 0.000000e+00 : f32
    %81 = vector.broadcast %cst_72 : f32 to vector<256x8xf32>
    %82 = arith.maximumf %80, %81 : vector<256x8xf32>
    %cst_73 = arith.constant 0.000000e+00 : f32
    %83 = vector.broadcast %cst_73 : f32 to vector<1x18x8xf32>
    %c0_74 = arith.constant 0 : index
    %c0_75 = arith.constant 0 : index
    %c0_76 = arith.constant 0 : index
    %84 = vector.load %arg10[%c0_74, %c0_75, %c0_76] : memref<18x18x8xf32, #tpu.memory_space<vmem>>, vector<1x18x8xf32>
    tpu.vector_store %arg10[%c0_74, %c0_75, %c0_76], %83 {strides = array<i32>} : memref<18x18x8xf32, #tpu.memory_space<vmem>>, vector<1x18x8xf32>,
    %cst_77 = arith.constant 0.000000e+00 : f32
    %85 = vector.broadcast %cst_77 : f32 to vector<1x18x8xf32>
    %c17_78 = arith.constant 17 : index
    %c0_79 = arith.constant 0 : index
    %c0_80 = arith.constant 0 : index
    %86 = vector.load %arg10[%c17_78, %c0_79, %c0_80] : memref<18x18x8xf32, #tpu.memory_space<vmem>>, vector<1x18x8xf32>
    tpu.vector_store %arg10[%c17_78, %c0_79, %c0_80], %85 {strides = array<i32>} : memref<18x18x8xf32, #tpu.memory_space<vmem>>, vector<1x18x8xf32>,
    %cst_81 = arith.constant 0.000000e+00 : f32
    %87 = vector.broadcast %cst_81 : f32 to vector<18x1x8xf32>
    %c0_82 = arith.constant 0 : index
    %c0_83 = arith.constant 0 : index
    %c0_84 = arith.constant 0 : index
    %88 = vector.load %arg10[%c0_82, %c0_83, %c0_84] : memref<18x18x8xf32, #tpu.memory_space<vmem>>, vector<18x1x8xf32>
    tpu.vector_store %arg10[%c0_82, %c0_83, %c0_84], %87 {strides = array<i32>} : memref<18x18x8xf32, #tpu.memory_space<vmem>>, vector<18x1x8xf32>,
    %cst_85 = arith.constant 0.000000e+00 : f32
    %89 = vector.broadcast %cst_85 : f32 to vector<18x1x8xf32>
    %c0_86 = arith.constant 0 : index
    %c17_87 = arith.constant 17 : index
    %c0_88 = arith.constant 0 : index
    %90 = vector.load %arg10[%c0_86, %c17_87, %c0_88] : memref<18x18x8xf32, #tpu.memory_space<vmem>>, vector<18x1x8xf32>
    tpu.vector_store %arg10[%c0_86, %c17_87, %c0_88], %89 {strides = array<i32>} : memref<18x18x8xf32, #tpu.memory_space<vmem>>, vector<18x1x8xf32>,
    %91 = vector.shape_cast %82 : vector<256x8xf32> to vector<16x16x8xf32>
    %c1_89 = arith.constant 1 : index
    %c1_90 = arith.constant 1 : index
    %c0_91 = arith.constant 0 : index
    %92 = vector.load %arg10[%c1_89, %c1_90, %c0_91] : memref<18x18x8xf32, #tpu.memory_space<vmem>>, vector<16x16x8xf32>
    tpu.vector_store %arg10[%c1_89, %c1_90, %c0_91], %91 {strides = array<i32>} : memref<18x18x8xf32, #tpu.memory_space<vmem>>, vector<16x16x8xf32>,
    %cst_92 = arith.constant 0.000000e+00 : f32
    %93 = vector.broadcast %cst_92 : f32 to vector<16x16x8xf32>
    %c0_93 = arith.constant 0 : index
    %c0_94 = arith.constant 0 : index
    %c0_95 = arith.constant 0 : index
    %94 = vector.load %arg10[%c0_93, %c0_94, %c0_95] : memref<18x18x8xf32, #tpu.memory_space<vmem>>, vector<16x16x8xf32>
    %c0_96 = arith.constant 0 : index
    %c0_97 = arith.constant 0 : index
    %c0_98 = arith.constant 0 : index
    %95 = vector.load %arg5[%c0_96, %c0_97, %c0_98] : memref<9x1x8xf32, #tpu.memory_space<vmem>>, vector<1x1x8xf32>
    %96 = vector.shape_cast %95 : vector<1x1x8xf32> to vector<1x8xf32>
    %97 = vector.shape_cast %96 : vector<1x8xf32> to vector<1x1x8xf32>
    %98 = vector.broadcast %97 : vector<1x1x8xf32> to vector<16x16x8xf32>
    %99 = arith.mulf %94, %98 : vector<16x16x8xf32>
    %100 = arith.addf %93, %99 : vector<16x16x8xf32>
    %c0_99 = arith.constant 0 : index
    %c1_100 = arith.constant 1 : index
    %c0_101 = arith.constant 0 : index
    %101 = vector.load %arg10[%c0_99, %c1_100, %c0_101] : memref<18x18x8xf32, #tpu.memory_space<vmem>>, vector<16x16x8xf32>
    %c1_102 = arith.constant 1 : index
    %c0_103 = arith.constant 0 : index
    %c0_104 = arith.constant 0 : index
    %102 = vector.load %arg5[%c1_102, %c0_103, %c0_104] : memref<9x1x8xf32, #tpu.memory_space<vmem>>, vector<1x1x8xf32>
    %103 = vector.shape_cast %102 : vector<1x1x8xf32> to vector<1x8xf32>
    %104 = vector.shape_cast %103 : vector<1x8xf32> to vector<1x1x8xf32>
    %105 = vector.broadcast %104 : vector<1x1x8xf32> to vector<16x16x8xf32>
    %106 = arith.mulf %101, %105 : vector<16x16x8xf32>
    %107 = arith.addf %100, %106 : vector<16x16x8xf32>
    %c0_105 = arith.constant 0 : index
    %c2_106 = arith.constant 2 : index
    %c0_107 = arith.constant 0 : index
    %108 = vector.load %arg10[%c0_105, %c2_106, %c0_107] : memref<18x18x8xf32, #tpu.memory_space<vmem>>, vector<16x16x8xf32>
    %c2_108 = arith.constant 2 : index
    %c0_109 = arith.constant 0 : index
    %c0_110 = arith.constant 0 : index
    %109 = vector.load %arg5[%c2_108, %c0_109, %c0_110] : memref<9x1x8xf32, #tpu.memory_space<vmem>>, vector<1x1x8xf32>
    %110 = vector.shape_cast %109 : vector<1x1x8xf32> to vector<1x8xf32>
    %111 = vector.shape_cast %110 : vector<1x8xf32> to vector<1x1x8xf32>
    %112 = vector.broadcast %111 : vector<1x1x8xf32> to vector<16x16x8xf32>
    %113 = arith.mulf %108, %112 : vector<16x16x8xf32>
    %114 = arith.addf %107, %113 : vector<16x16x8xf32>
    %c1_111 = arith.constant 1 : index
    %c0_112 = arith.constant 0 : index
    %c0_113 = arith.constant 0 : index
    %115 = vector.load %arg10[%c1_111, %c0_112, %c0_113] : memref<18x18x8xf32, #tpu.memory_space<vmem>>, vector<16x16x8xf32>
    %c3_114 = arith.constant 3 : index
    %c0_115 = arith.constant 0 : index
    %c0_116 = arith.constant 0 : index
    %116 = vector.load %arg5[%c3_114, %c0_115, %c0_116] : memref<9x1x8xf32, #tpu.memory_space<vmem>>, vector<1x1x8xf32>
    %117 = vector.shape_cast %116 : vector<1x1x8xf32> to vector<1x8xf32>
    %118 = vector.shape_cast %117 : vector<1x8xf32> to vector<1x1x8xf32>
    %119 = vector.broadcast %118 : vector<1x1x8xf32> to vector<16x16x8xf32>
    %120 = arith.mulf %115, %119 : vector<16x16x8xf32>
    %121 = arith.addf %114, %120 : vector<16x16x8xf32>
    %c1_117 = arith.constant 1 : index
    %c1_118 = arith.constant 1 : index
    %c0_119 = arith.constant 0 : index
    %122 = vector.load %arg10[%c1_117, %c1_118, %c0_119] : memref<18x18x8xf32, #tpu.memory_space<vmem>>, vector<16x16x8xf32>
    %c4_120 = arith.constant 4 : index
    %c0_121 = arith.constant 0 : index
    %c0_122 = arith.constant 0 : index
    %123 = vector.load %arg5[%c4_120, %c0_121, %c0_122] : memref<9x1x8xf32, #tpu.memory_space<vmem>>, vector<1x1x8xf32>
    %124 = vector.shape_cast %123 : vector<1x1x8xf32> to vector<1x8xf32>
    %125 = vector.shape_cast %124 : vector<1x8xf32> to vector<1x1x8xf32>
    %126 = vector.broadcast %125 : vector<1x1x8xf32> to vector<16x16x8xf32>
    %127 = arith.mulf %122, %126 : vector<16x16x8xf32>
    %128 = arith.addf %121, %127 : vector<16x16x8xf32>
    %c1_123 = arith.constant 1 : index
    %c2_124 = arith.constant 2 : index
    %c0_125 = arith.constant 0 : index
    %129 = vector.load %arg10[%c1_123, %c2_124, %c0_125] : memref<18x18x8xf32, #tpu.memory_space<vmem>>, vector<16x16x8xf32>
    %c5_126 = arith.constant 5 : index
    %c0_127 = arith.constant 0 : index
    %c0_128 = arith.constant 0 : index
    %130 = vector.load %arg5[%c5_126, %c0_127, %c0_128] : memref<9x1x8xf32, #tpu.memory_space<vmem>>, vector<1x1x8xf32>
    %131 = vector.shape_cast %130 : vector<1x1x8xf32> to vector<1x8xf32>
    %132 = vector.shape_cast %131 : vector<1x8xf32> to vector<1x1x8xf32>
    %133 = vector.broadcast %132 : vector<1x1x8xf32> to vector<16x16x8xf32>
    %134 = arith.mulf %129, %133 : vector<16x16x8xf32>
    %135 = arith.addf %128, %134 : vector<16x16x8xf32>
    %c2_129 = arith.constant 2 : index
    %c0_130 = arith.constant 0 : index
    %c0_131 = arith.constant 0 : index
    %136 = vector.load %arg10[%c2_129, %c0_130, %c0_131] : memref<18x18x8xf32, #tpu.memory_space<vmem>>, vector<16x16x8xf32>
    %c6_132 = arith.constant 6 : index
    %c0_133 = arith.constant 0 : index
    %c0_134 = arith.constant 0 : index
    %137 = vector.load %arg5[%c6_132, %c0_133, %c0_134] : memref<9x1x8xf32, #tpu.memory_space<vmem>>, vector<1x1x8xf32>
    %138 = vector.shape_cast %137 : vector<1x1x8xf32> to vector<1x8xf32>
    %139 = vector.shape_cast %138 : vector<1x8xf32> to vector<1x1x8xf32>
    %140 = vector.broadcast %139 : vector<1x1x8xf32> to vector<16x16x8xf32>
    %141 = arith.mulf %136, %140 : vector<16x16x8xf32>
    %142 = arith.addf %135, %141 : vector<16x16x8xf32>
    %c2_135 = arith.constant 2 : index
    %c1_136 = arith.constant 1 : index
    %c0_137 = arith.constant 0 : index
    %143 = vector.load %arg10[%c2_135, %c1_136, %c0_137] : memref<18x18x8xf32, #tpu.memory_space<vmem>>, vector<16x16x8xf32>
    %c7_138 = arith.constant 7 : index
    %c0_139 = arith.constant 0 : index
    %c0_140 = arith.constant 0 : index
    %144 = vector.load %arg5[%c7_138, %c0_139, %c0_140] : memref<9x1x8xf32, #tpu.memory_space<vmem>>, vector<1x1x8xf32>
    %145 = vector.shape_cast %144 : vector<1x1x8xf32> to vector<1x8xf32>
    %146 = vector.shape_cast %145 : vector<1x8xf32> to vector<1x1x8xf32>
    %147 = vector.broadcast %146 : vector<1x1x8xf32> to vector<16x16x8xf32>
    %148 = arith.mulf %143, %147 : vector<16x16x8xf32>
    %149 = arith.addf %142, %148 : vector<16x16x8xf32>
    %c2_141 = arith.constant 2 : index
    %c2_142 = arith.constant 2 : index
    %c0_143 = arith.constant 0 : index
    %150 = vector.load %arg10[%c2_141, %c2_142, %c0_143] : memref<18x18x8xf32, #tpu.memory_space<vmem>>, vector<16x16x8xf32>
    %c8_144 = arith.constant 8 : index
    %c0_145 = arith.constant 0 : index
    %c0_146 = arith.constant 0 : index
    %151 = vector.load %arg5[%c8_144, %c0_145, %c0_146] : memref<9x1x8xf32, #tpu.memory_space<vmem>>, vector<1x1x8xf32>
    %152 = vector.shape_cast %151 : vector<1x1x8xf32> to vector<1x8xf32>
    %153 = vector.shape_cast %152 : vector<1x8xf32> to vector<1x1x8xf32>
    %154 = vector.broadcast %153 : vector<1x1x8xf32> to vector<16x16x8xf32>
    %155 = arith.mulf %150, %154 : vector<16x16x8xf32>
    %156 = arith.addf %149, %155 : vector<16x16x8xf32>
    %157 = vector.shape_cast %156 : vector<16x16x8xf32> to vector<256x8xf32>
    %c0_147 = arith.constant 0 : index
    %c0_148 = arith.constant 0 : index
    %158 = vector.load %arg6[%c0_147, %c0_148] : memref<8x8xf32, #tpu.memory_space<vmem>>, vector<8x8xf32>
    %cst_149 = arith.constant dense<0.000000e+00> : vector<8x256xf32>
    %159 = tpu.matmul %158, %157, %cst_149 {dimension_numbers = #tpu.dot_dimension_numbers<[1], [1], [0], [0], [0, 0, 1, 0], [], []>} : vector<8x8xf32>, vector<256x8xf32>, vector<8x256xf32> -> vector<8x256xf32>
    %c0_150 = arith.constant 0 : index
    %c0_151 = arith.constant 0 : index
    %160 = vector.load %arg7[%c0_150, %c0_151] : memref<8x1xf32, #tpu.memory_space<vmem>>, vector<8x1xf32>
    %161 = vector.broadcast %160 : vector<8x1xf32> to vector<8x256xf32>
    %162 = arith.addf %159, %161 : vector<8x256xf32>
    %cst_152 = arith.constant 0.000000e+00 : f32
    %163 = vector.broadcast %cst_152 : f32 to vector<8x256xf32>
    %164 = arith.maximumf %162, %163 : vector<8x256xf32>
    %c0_153 = arith.constant 0 : index
    %c0_154 = arith.constant 0 : index
    %c0_155 = arith.constant 0 : index
    %165 = vector.load %arg8[%c0_153, %c0_154, %c0_155] : memref<1x8x256xf32, #tpu.memory_space<vmem>>, vector<1x8x256xf32>
    %166 = vector.shape_cast %165 : vector<1x8x256xf32> to vector<8x256xf32>
    %167 = vector.shape_cast %164 : vector<8x256xf32> to vector<1x8x256xf32>
    tpu.vector_store %arg8[%c0_153, %c0_154, %c0_155], %167 {strides = array<i32>} : memref<1x8x256xf32, #tpu.memory_space<vmem>>, vector<1x8x256xf32>,
    return
  }
  func.func @transform_0(%arg0: i32) -> (i32, i32, i32, i32) {
    %c0_i32 = arith.constant 0 : i32
    %c0_i32_0 = arith.constant 0 : i32
    %c0_i32_1 = arith.constant 0 : i32
    %c0_i32_2 = arith.constant 0 : i32
    return %arg0, %c0_i32, %c0_i32_0, %c0_i32_1 : i32, i32, i32, i32
  }
  func.func @transform_1(%arg0: i32) -> (i32, i32, i32) {
    %c0_i32 = arith.constant 0 : i32
    %c0_i32_0 = arith.constant 0 : i32
    %c0_i32_1 = arith.constant 0 : i32
    %c0_i32_2 = arith.constant 0 : i32
    return %c0_i32, %c0_i32_0, %c0_i32_1 : i32, i32, i32
  }
  func.func @transform_2(%arg0: i32) -> (i32, i32) {
    %c0_i32 = arith.constant 0 : i32
    %c0_i32_0 = arith.constant 0 : i32
    %c0_i32_1 = arith.constant 0 : i32
    return %c0_i32, %c0_i32_0 : i32, i32
  }
  func.func @transform_3(%arg0: i32) -> (i32, i32) {
    %c0_i32 = arith.constant 0 : i32
    %c0_i32_0 = arith.constant 0 : i32
    %c0_i32_1 = arith.constant 0 : i32
    return %c0_i32, %c0_i32_0 : i32, i32
  }
  func.func @transform_4(%arg0: i32) -> (i32, i32, i32) {
    %c0_i32 = arith.constant 0 : i32
    %c0_i32_0 = arith.constant 0 : i32
    %c0_i32_1 = arith.constant 0 : i32
    %c0_i32_2 = arith.constant 0 : i32
    return %c0_i32, %c0_i32_0, %c0_i32_1 : i32, i32, i32
  }
  func.func @transform_5(%arg0: i32) -> (i32, i32) {
    %c0_i32 = arith.constant 0 : i32
    %c0_i32_0 = arith.constant 0 : i32
    %c0_i32_1 = arith.constant 0 : i32
    return %c0_i32, %c0_i32_0 : i32, i32
  }
  func.func @transform_6(%arg0: i32) -> (i32, i32) {
    %c0_i32 = arith.constant 0 : i32
    %c0_i32_0 = arith.constant 0 : i32
    %c0_i32_1 = arith.constant 0 : i32
    return %c0_i32, %c0_i32_0 : i32, i32
  }
  func.func @transform_7(%arg0: i32) -> (i32, i32, i32) {
    %c0_i32 = arith.constant 0 : i32
    %c0_i32_0 = arith.constant 0 : i32
    %c0_i32_1 = arith.constant 0 : i32
    return %arg0, %c0_i32, %c0_i32_0 : i32, i32, i32
  }
}

</mosaic_0001>

<llo_original>
// kernel: conv_block_forward.1
$region0: #{conv_block_forward.1}
  #allocation0 [shape = 'u32[]', space=smem, size = 0x4, offset = 0x4, fixed_abs, tag = 'smem constant byte address 0x4 - core index']
  #allocation1 [shape = 'u32[72,128]{1,0:T(1,128)}', space=vmem, size = 0x9000, scoped, tag = 'internal scratch']
  #allocation2 [shape = 'f32[18,18,4]{2,1,0:T(8,128)}', space=vmem, size = 0x36000, scoped, tag = 'scratch operand']
  #allocation3 [shape = 'f32[18,18,8]{2,1,0:T(8,128)}', space=vmem, size = 0x36000, scoped, tag = 'scratch operand']
  %s0 = inlined_call_operand.vmem [shape: f32[2,16,16,4], index: 0, kind: input, shape index: {}]
  %s1 = inlined_call_operand.vmem [shape: f32[9,1,4], index: 1, kind: input, shape index: {}]
  %s2 = inlined_call_operand.vmem [shape: f32[4,8], index: 2, kind: input, shape index: {}]
  %s3 = inlined_call_operand.vmem [shape: f32[1,8], index: 3, kind: input, shape index: {}]
  %s4 = inlined_call_operand.vmem [shape: f32[9,1,8], index: 4, kind: input, shape index: {}]
  %s5 = inlined_call_operand.vmem [shape: f32[8,8], index: 5, kind: input, shape index: {}]
  %s6 = inlined_call_operand.vmem [shape: f32[8,1], index: 6, kind: input, shape index: {}]
  %s7 = inlined_call_operand.vmem [shape: f32[2,8,256], index: 7, kind: output, shape index: {}]
  %s8 = sld [smem:[#allocation0]]
  $region61: #{conv_block_forward.1} parent=0
    _
  %s10 = ssub.s32 1, %s8
  %s11 = scalar_select 0, %s10, %s8
  loop: start=0, step=1, limit=4
  $region2: #{conv_block_forward.1} parent=0 // loop_pre_header
    _
  $region3: #{conv_block_forward.1} parent=0 // loop_header
    %s13 = sphi 0, %s17
    %p14 = scmp.ge.s32.totalorder %s13, 4
    %s23 = sphi 0, %s25
    %s26 = sphi 0, %s23
    %s27 = sphi 0, %s26
    %s43 = sphi 0, %s27
    %s47 = sphi 0, %s47
    %s49 = sphi 0, %s47
    %s50 = sphi 0, %s49
    %s64 = sphi 0, %s50
    %s68 = sphi 0, %s68
    %s70 = sphi 0, %s68
    %s71 = sphi 0, %s70
    %s85 = sphi 0, %s71
    %s89 = sphi 0, %s89
    %s91 = sphi 0, %s89
    %s92 = sphi 0, %s91
    %s106 = sphi 0, %s92
    %s110 = sphi 0, %s110
    %s112 = sphi 0, %s110
    %s113 = sphi 0, %s112
    %s127 = sphi 0, %s113
    %s131 = sphi 0, %s131
    %s133 = sphi 0, %s131
    %s134 = sphi 0, %s133
    %s148 = sphi 0, %s134
    %s152 = sphi 0, %s152
    %s154 = sphi 0, %s152
    %s155 = sphi 0, %s154
    %s169 = sphi 0, %s155
    %s175 = sphi 0, %s177
    %s178 = sphi 0, %s175
    %s179 = sphi 0, %s178
    %s195 = sphi 0, %s179
  $region4: #{conv_block_forward.1} parent=0 // loop_header_branch
    %16 = sbr.rel (%p14) target = $region8
  $region5: #{conv_block_forward.1} parent=0 // loop_body
    %s18 = ssub.s32 %s13, 1
    %s19 = ssub.s32 %s13, 2
    %s20 = sadd.s32 %s13, 1
    %s21 = ssub.s32 %s13, %s20
    %p22 = scmp.eq.s32.totalorder %s21, 0
    %s24 = sadd.s32 %s23, 1
    %s25 = scalar_select %p22, %s23, %s24
    %p28 = pneg %p22
    %p29 = scmp.eq.s32.totalorder %s13, 1
    %p30 = por %p28, %p29
    %p31 = scmp.ne.s32.totalorder %s23, %s26
    %p32 = scmp.eq.s32.totalorder %s13, 0
    %p33 = por %p31, %p32
    %p34 = scmp.ne.s32.totalorder %s23, %s26
    %p35 = scmp.eq.s32.totalorder %s18, 1
    %p36 = por %p34, %p35
    %p37 = scmp.ne.s32.totalorder %s26, %s27
    %p38 = scmp.eq.s32.totalorder %s18, 0
    %p39 = por %p37, %p38
    %p40 = scmp.ne.s32.totalorder %s26, %s27
    %p41 = scmp.eq.s32.totalorder %s19, 1
    %p42 = por %p40, %p41
    %p44 = scmp.ne.s32.totalorder %s27, %s43
    %p45 = scmp.eq.s32.totalorder %s19, 0
    %p46 = por %p44, %p45
    %s48 = sadd.s32 %s47, 1
    %p51 = scmp.eq.s32.totalorder %s13, 1
    %p52 = scmp.ne.s32.totalorder %s47, %s49
    %p53 = scmp.eq.s32.totalorder %s13, 0
    %p54 = por %p52, %p53
    %p55 = scmp.ne.s32.totalorder %s47, %s49
    %p56 = scmp.eq.s32.totalorder %s18, 1
    %p57 = por %p55, %p56
    %p58 = scmp.ne.s32.totalorder %s49, %s50
    %p59 = scmp.eq.s32.totalorder %s18, 0
    %p60 = por %p58, %p59
    %p61 = scmp.ne.s32.totalorder %s49, %s50
    %p62 = scmp.eq.s32.totalorder %s19, 1
    %p63 = por %p61, %p62
    %p65 = scmp.ne.s32.totalorder %s50, %s64
    %p66 = scmp.eq.s32.totalorder %s19, 0
    %p67 = por %p65, %p66
    %s69 = sadd.s32 %s68, 1
    %p72 = scmp.eq.s32.totalorder %s13, 1
    %p73 = scmp.ne.s32.totalorder %s68, %s70
    %p74 = scmp.eq.s32.totalorder %s13, 0
    %p75 = por %p73, %p74
    %p76 = scmp.ne.s32.totalorder %s68, %s70
    %p77 = scmp.eq.s32.totalorder %s18, 1
    %p78 = por %p76, %p77
    %p79 = scmp.ne.s32.totalorder %s70, %s71
    %p80 = scmp.eq.s32.totalorder %s18, 0
    %p81 = por %p79, %p80
    %p82 = scmp.ne.s32.totalorder %s70, %s71
    %p83 = scmp.eq.s32.totalorder %s19, 1
    %p84 = por %p82, %p83
    %p86 = scmp.ne.s32.totalorder %s71, %s85
    %p87 = scmp.eq.s32.totalorder %s19, 0
    %p88 = por %p86, %p87
    %s90 = sadd.s32 %s89, 1
    %p93 = scmp.eq.s32.totalorder %s13, 1
    %p94 = scmp.ne.s32.totalorder %s89, %s91
    %p95 = scmp.eq.s32.totalorder %s13, 0
    %p96 = por %p94, %p95
    %p97 = scmp.ne.s32.totalorder %s89, %s91
    %p98 = scmp.eq.s32.totalorder %s18, 1
    %p99 = por %p97, %p98
    %p100 = scmp.ne.s32.totalorder %s91, %s92
    %p101 = scmp.eq.s32.totalorder %s18, 0
    %p102 = por %p100, %p101
    %p103 = scmp.ne.s32.totalorder %s91, %s92
    %p104 = scmp.eq.s32.totalorder %s19, 1
    %p105 = por %p103, %p104
    %p107 = scmp.ne.s32.totalorder %s92, %s106
    %p108 = scmp.eq.s32.totalorder %s19, 0
    %p109 = por %p107, %p108
    %s111 = sadd.s32 %s110, 1
    %p114 = scmp.eq.s32.totalorder %s13, 1
    %p115 = scmp.ne.s32.totalorder %s110, %s112
    %p116 = scmp.eq.s32.totalorder %s13, 0
    %p117 = por %p115, %p116
    %p118 = scmp.ne.s32.totalorder %s110, %s112
    %p119 = scmp.eq.s32.totalorder %s18, 1
    %p120 = por %p118, %p119
    %p121 = scmp.ne.s32.totalorder %s112, %s113
    %p122 = scmp.eq.s32.totalorder %s18, 0
    %p123 = por %p121, %p122
    %p124 = scmp.ne.s32.totalorder %s112, %s113
    %p125 = scmp.eq.s32.totalorder %s19, 1
    %p126 = por %p124, %p125
    %p128 = scmp.ne.s32.totalorder %s113, %s127
    %p129 = scmp.eq.s32.totalorder %s19, 0
    %p130 = por %p128, %p129
    %s132 = sadd.s32 %s131, 1
    %p135 = scmp.eq.s32.totalorder %s13, 1
    %p136 = scmp.ne.s32.totalorder %s131, %s133
    %p137 = scmp.eq.s32.totalorder %s13, 0
    %p138 = por %p136, %p137
    %p139 = scmp.ne.s32.totalorder %s131, %s133
    %p140 = scmp.eq.s32.totalorder %s18, 1
    %p141 = por %p139, %p140
    %p142 = scmp.ne.s32.totalorder %s133, %s134
    %p143 = scmp.eq.s32.totalorder %s18, 0
    %p144 = por %p142, %p143
    %p145 = scmp.ne.s32.totalorder %s133, %s134
    %p146 = scmp.eq.s32.totalorder %s19, 1
    %p147 = por %p145, %p146
    %p149 = scmp.ne.s32.totalorder %s134, %s148
    %p150 = scmp.eq.s32.totalorder %s19, 0
    %p151 = por %p149, %p150
    %s153 = sadd.s32 %s152, 1
    %p156 = scmp.eq.s32.totalorder %s13, 1
    %p157 = scmp.ne.s32.totalorder %s152, %s154
    %p158 = scmp.eq.s32.totalorder %s13, 0
    %p159 = por %p157, %p158
    %p160 = scmp.ne.s32.totalorder %s152, %s154
    %p161 = scmp.eq.s32.totalorder %s18, 1
    %p162 = por %p160, %p161
    %p163 = scmp.ne.s32.totalorder %s154, %s155
    %p164 = scmp.eq.s32.totalorder %s18, 0
    %p165 = por %p163, %p164
    %p166 = scmp.ne.s32.totalorder %s154, %s155
    %p167 = scmp.eq.s32.totalorder %s19, 1
    %p168 = por %p166, %p167
    %p170 = scmp.ne.s32.totalorder %s155, %s169
    %p171 = scmp.eq.s32.totalorder %s19, 0
    %p172 = por %p170, %p171
    %s173 = ssub.s32 %s13, %s20
    %p174 = scmp.eq.s32.totalorder %s173, 0
    %s176 = sadd.s32 %s175, 1
    %s177 = scalar_select %p174, %s175, %s176
    %p180 = pneg %p174
    %p181 = scmp.eq.s32.totalorder %s13, 1
    %p182 = por %p180, %p181
    %p183 = scmp.ne.s32.totalorder %s175, %s178
    %p184 = scmp.eq.s32.totalorder %s13, 0
    %p185 = por %p183, %p184
    %p186 = scmp.ne.s32.totalorder %s175, %s178
    %p187 = scmp.eq.s32.totalorder %s18, 1
    %p188 = por %p186, %p187
    %p189 = scmp.ne.s32.totalorder %s178, %s179
    %p190 = scmp.eq.s32.totalorder %s18, 0
    %p191 = por %p189, %p190
    %p192 = scmp.ne.s32.totalorder %s178, %s179
    %p193 = scmp.eq.s32.totalorder %s19, 1
    %p194 = por %p192, %p193
    %p196 = scmp.ne.s32.totalorder %s179, %s195
    %p197 = scmp.eq.s32.totalorder %s19, 0
    %p198 = por %p196, %p197
    %p199 = scmp.le.s32.totalorder 1, %s13
    %p200 = scmp.lt.s32.totalorder %s13, 3
    %p201 = pnand %p199, %p200
    %p202 = pneg %p201
    // Predicated region
    $region9: #{conv_block_forward.1} parent=5 // pred_check
      _
    $region10: #{conv_block_forward.1} parent=5 // pred_check_branch
      %204 = sbr.rel (%p201) target = $region12
    $region11: #{conv_block_forward.1} parent=5 // pred_region
      %s205 = ssub.s32 %s13, 1
      // Predicated region
      $region13: #{conv_block_forward.1} parent=11 // pred_check
        %p206 = pneg %p60
      $region14: #{conv_block_forward.1} parent=11 // pred_check_branch
        %208 = sbr.rel (%p206) target = $region16
      $region15: #{conv_block_forward.1} parent=11 // pred_region
        _
      $region16: #{conv_block_forward.1} parent=11 // pred_fallthru
        _
      // Predicated region
      $region17: #{conv_block_forward.1} parent=11 // pred_check
        %p209 = pneg %p81
      $region18: #{conv_block_forward.1} parent=11 // pred_check_branch
        %211 = sbr.rel (%p209) target = $region20
      $region19: #{conv_block_forward.1} parent=11 // pred_region
        _
      $region20: #{conv_block_forward.1} parent=11 // pred_fallthru
        _
      // Predicated region
      $region21: #{conv_block_forward.1} parent=11 // pred_check
        %p212 = pneg %p102
      $region22: #{conv_block_forward.1} parent=11 // pred_check_branch
        %214 = sbr.rel (%p212) target = $region24
      $region23: #{conv_block_forward.1} parent=11 // pred_region
        _
      $region24: #{conv_block_forward.1} parent=11 // pred_fallthru
        _
      // Predicated region
      $region25: #{conv_block_forward.1} parent=11 // pred_check
        %p215 = pneg %p123
      $region26: #{conv_block_forward.1} parent=11 // pred_check_branch
        %217 = sbr.rel (%p215) target = $region28
      $region27: #{conv_block_forward.1} parent=11 // pred_region
        _
      $region28: #{conv_block_forward.1} parent=11 // pred_fallthru
        _
      // Predicated region
      $region29: #{conv_block_forward.1} parent=11 // pred_check
        %p218 = pneg %p144
      $region30: #{conv_block_forward.1} parent=11 // pred_check_branch
        %220 = sbr.rel (%p218) target = $region32
      $region31: #{conv_block_forward.1} parent=11 // pred_region
        _
      $region32: #{conv_block_forward.1} parent=11 // pred_fallthru
        _
      // Predicated region
      $region33: #{conv_block_forward.1} parent=11 // pred_check
        %p221 = pneg %p165
      $region34: #{conv_block_forward.1} parent=11 // pred_check_branch
        %223 = sbr.rel (%p221) target = $region36
      $region35: #{conv_block_forward.1} parent=11 // pred_region
        _
      $region36: #{conv_block_forward.1} parent=11 // pred_fallthru
        _
    $region12: #{conv_block_forward.1} parent=5 // pred_fallthru
      _
    %p224 = scmp.lt.s32.totalorder %s13, 2
    // Predicated region
    $region37: #{conv_block_forward.1} parent=5 // pred_check
      %p225 = pneg %p224
    $region38: #{conv_block_forward.1} parent=5 // pred_check_branch
      %227 = sbr.rel (%p225) target = $region40
    $region39: #{conv_block_forward.1} parent=5 // pred_region
      // Predicated region
      $region41: #{conv_block_forward.1} parent=39 // pred_check
        %p228 = pneg %p33
      $region42: #{conv_block_forward.1} parent=39 // pred_check_branch
        %230 = sbr.rel (%p228) target = $region44
      $region43: #{conv_block_forward.1} parent=39 // pred_region
        %p231 = scmp.lt.s32.totalorder %s13, 1
        %s232 = scalar_select %p231, %s13, 1
        %s233 = smul.addr %s232, 32
        %s234 = smul.addr %s233, 8
        %s235 = scalar_lea.vmem %s0, %s234
      $region44: #{conv_block_forward.1} parent=39 // pred_fallthru
        _
    $region40: #{conv_block_forward.1} parent=5 // pred_fallthru
      _
    %p236 = scmp.le.s32.totalorder 1, %s13
    %p237 = scmp.lt.s32.totalorder %s13, 3
    %p238 = pnand %p236, %p237
    %p239 = pneg %p238
    // Predicated region
    $region45: #{conv_block_forward.1} parent=5 // pred_check
      _
    $region46: #{conv_block_forward.1} parent=5 // pred_check_branch
      %241 = sbr.rel (%p238) target = $region48
    $region47: #{conv_block_forward.1} parent=5 // pred_region
      %s242 = ssub.s32 %s13, 1
      %p243 = scmp.lt.s32.totalorder %s18, 1
      %s244 = scalar_select %p243, %s18, 1
      %s245 = smul.addr %s244, 32
      %s246 = smul.addr %s245, 8
      %s247 = scalar_lea.vmem %s0, %s246
      %p248 = pneg %p39
      %p249 = pneg %p36
      %p250 = pneg %p60
      %p251 = pneg %p57
      %p252 = pneg %p81
      %p253 = pneg %p78
      %p254 = pneg %p102
      %p255 = pneg %p99
      %p256 = pneg %p123
      %p257 = pneg %p120
      %p258 = pneg %p144
      %p259 = pneg %p141
      %p260 = pneg %p165
      %p261 = pneg %p162
      %p262 = pneg %p191
      %p263 = pneg %p188
      %p264 = scmp.lt.s32.totalorder %s18, 1
      %s265 = scalar_select %p264, %s18, 1
      %s266 = smul.addr %s265, 2
      %s267 = smul.addr %s266, 8
      %s268 = scalar_lea.vmem %s7, %s267
      %p269 = scmp.lt.s32.totalorder %s18, 1
      %s270 = scalar_select %p269, %s18, 1
      %s271 = smul.addr %s270, 32
      %s272 = smul.addr %s271, 8
      %s273 = scalar_lea.vmem %s0, %s272
      %p274 = scmp.lt.s32.totalorder %s18, 1
      %s275 = scalar_select %p274, %s18, 1
      %s276 = smul.addr %s275, 2
      %s277 = smul.addr %s276, 8
      %s278 = scalar_lea.vmem %s7, %s277
      %vm279 = vcmask 31744
      %280 = vst.msk [vmem:[#allocation2] sm:$0xff] %vm279, 0.0
      %281 = vst.msk [vmem:[#allocation2 + $0x8] sm:$0xff] %vm279, 0.0
      %vm282 = vcmask 25600
      %283 = vst.msk [vmem:[#allocation2 + $0x10] sm:$0x3] %vm282, 0.0
      %s284 = scalar_lea.vmem [#allocation2], 408
      %285 = vst.msk [vmem:[%s284] sm:$0xff] %vm279, 0.0
      %286 = vst.msk [vmem:[%s284 + $0x8] sm:$0xff] %vm279, 0.0
      %287 = vst.msk [vmem:[%s284 + $0x10] sm:$0x3] %vm282, 0.0
      %vm288 = vcmask 24576
      %289 = vst.msk [vmem:[#allocation2] sm:$0x1] %vm288, 0.0
      %290 = vst.msk [vmem:[#allocation2 + $0x18] sm:$0x1] %vm288, 0.0
      %291 = vst.msk [vmem:[#allocation2 + $0x30] sm:$0x1] %vm288, 0.0
      %292 = vst.msk [vmem:[#allocation2 + $0x48] sm:$0x1] %vm288, 0.0
      %293 = vst.msk [vmem:[#allocation2 + $0x60] sm:$0x1] %vm288, 0.0
      %294 = vst.msk [vmem:[#allocation2 + $0x78] sm:$0x1] %vm288, 0.0
      %295 = vst.msk [vmem:[#allocation2 + $0x90] sm:$0x1] %vm288, 0.0
      %296 = vst.msk [vmem:[#allocation2 + $0xa8] sm:$0x1] %vm288, 0.0
      %297 = vst.msk [vmem:[#allocation2 + $0xc0] sm:$0x1] %vm288, 0.0
      %298 = vst.msk [vmem:[#allocation2 + $0xd8] sm:$0x1] %vm288, 0.0
      %299 = vst.msk [vmem:[#allocation2 + $0xf0] sm:$0x1] %vm288, 0.0
      %300 = vst.msk [vmem:[#allocation2 + $0x108] sm:$0x1] %vm288, 0.0
      %301 = vst.msk [vmem:[#allocation2 + $0x120] sm:$0x1] %vm288, 0.0
      %302 = vst.msk [vmem:[#allocation2 + $0x138] sm:$0x1] %vm288, 0.0
      %303 = vst.msk [vmem:[#allocation2 + $0x150] sm:$0x1] %vm288, 0.0
      %304 = vst.msk [vmem:[#allocation2 + $0x168] sm:$0x1] %vm288, 0.0
      %305 = vst.msk [vmem:[#allocation2 + $0x180] sm:$0x1] %vm288, 0.0
      %306 = vst.msk [vmem:[#allocation2 + $0x198] sm:$0x1] %vm288, 0.0
      %307 = vst.msk [vmem:[#allocation2 + $0x11] sm:$0x1] %vm288, 0.0
      %308 = vst.msk [vmem:[#allocation2 + $0x29] sm:$0x1] %vm288, 0.0
      %309 = vst.msk [vmem:[#allocation2 + $0x41] sm:$0x1] %vm288, 0.0
      %310 = vst.msk [vmem:[#allocation2 + $0x59] sm:$0x1] %vm288, 0.0
      %311 = vst.msk [vmem:[#allocation2 + $0x71] sm:$0x1] %vm288, 0.0
      %312 = vst.msk [vmem:[#allocation2 + $0x89] sm:$0x1] %vm288, 0.0
      %313 = vst.msk [vmem:[#allocation2 + $0xa1] sm:$0x1] %vm288, 0.0
      %314 = vst.msk [vmem:[#allocation2 + $0xb9] sm:$0x1] %vm288, 0.0
      %315 = vst.msk [vmem:[#allocation2 + $0xd1] sm:$0x1] %vm288, 0.0
      %316 = vst.msk [vmem:[#allocation2 + $0xe9] sm:$0x1] %vm288, 0.0
      %317 = vst.msk [vmem:[#allocation2 + $0x101] sm:$0x1] %vm288, 0.0
      %318 = vst.msk [vmem:[#allocation2 + $0x119] sm:$0x1] %vm288, 0.0
      %319 = vst.msk [vmem:[#allocation2 + $0x131] sm:$0x1] %vm288, 0.0
      %320 = vst.msk [vmem:[#allocation2 + $0x149] sm:$0x1] %vm288, 0.0
      %321 = vst.msk [vmem:[#allocation2 + $0x161] sm:$0x1] %vm288, 0.0
      %322 = vst.msk [vmem:[#allocation2 + $0x179] sm:$0x1] %vm288, 0.0
      %323 = vst.msk [vmem:[#allocation2 + $0x191] sm:$0x1] %vm288, 0.0
      %324 = vst.msk [vmem:[#allocation2 + $0x1a9] sm:$0x1] %vm288, 0.0
      %v325 = vld [vmem:[%s273] sm:$0xff]
      %v326 = vld [vmem:[%s273 + $0x8] sm:$0xff]
      %v327 = vld [vmem:[%s273 + $0x10] sm:$0xff]
      %v328 = vld [vmem:[%s273 + $0x18] sm:$0xff]
      %v329 = vld [vmem:[%s273 + $0x20] sm:$0xff]
      %v330 = vld [vmem:[%s273 + $0x28] sm:$0xff]
      %v331 = vld [vmem:[%s273 + $0x30] sm:$0xff]
      %v332 = vld [vmem:[%s273 + $0x38] sm:$0xff]
      %v333 = vld [vmem:[%s273 + $0x40] sm:$0xff]
      %v334 = vld [vmem:[%s273 + $0x48] sm:$0xff]
      %v335 = vld [vmem:[%s273 + $0x50] sm:$0xff]
      %v336 = vld [vmem:[%s273 + $0x58] sm:$0xff]
      %v337 = vld [vmem:[%s273 + $0x60] sm:$0xff]
      %v338 = vld [vmem:[%s273 + $0x68] sm:$0xff]
      %v339 = vld [vmem:[%s273 + $0x70] sm:$0xff]
      %v340 = vld [vmem:[%s273 + $0x78] sm:$0xff]
      %v341 = vld [vmem:[%s273 + $0x80] sm:$0xff]
      %v342 = vld [vmem:[%s273 + $0x88] sm:$0xff]
      %v343 = vld [vmem:[%s273 + $0x90] sm:$0xff]
      %v344 = vld [vmem:[%s273 + $0x98] sm:$0xff]
      %v345 = vld [vmem:[%s273 + $0xa0] sm:$0xff]
      %v346 = vld [vmem:[%s273 + $0xa8] sm:$0xff]
      %v347 = vld [vmem:[%s273 + $0xb0] sm:$0xff]
      %v348 = vld [vmem:[%s273 + $0xb8] sm:$0xff]
      %v349 = vld [vmem:[%s273 + $0xc0] sm:$0xff]
      %v350 = vld [vmem:[%s273 + $0xc8] sm:$0xff]
      %v351 = vld [vmem:[%s273 + $0xd0] sm:$0xff]
      %v352 = vld [vmem:[%s273 + $0xd8] sm:$0xff]
      %v353 = vld [vmem:[%s273 + $0xe0] sm:$0xff]
      %v354 = vld [vmem:[%s273 + $0xe8] sm:$0xff]
      %v355 = vld [vmem:[%s273 + $0xf0] sm:$0xff]
      %v356 = vld [vmem:[%s273 + $0xf8] sm:$0xff]
      %s357 = scalar_lea.vmem [#allocation2], 24
      %358 = vst.msk [vmem:[%s357 + $0x1] sm:$0xff] %vm279, %v325
      %359 = vst.msk [vmem:[%s357 + $0x9] sm:$0xff] %vm279, %v326
      %360 = vst.msk [vmem:[%s357 + $0x19] sm:$0xff] %vm279, %v327
      %361 = vst.msk [vmem:[%s357 + $0x21] sm:$0xff] %vm279, %v328
      %362 = vst.msk [vmem:[%s357 + $0x31] sm:$0xff] %vm279, %v329
      %363 = vst.msk [vmem:[%s357 + $0x39] sm:$0xff] %vm279, %v330
      %364 = vst.msk [vmem:[%s357 + $0x49] sm:$0xff] %vm279, %v331
      %365 = vst.msk [vmem:[%s357 + $0x51] sm:$0xff] %vm279, %v332
      %366 = vst.msk [vmem:[%s357 + $0x61] sm:$0xff] %vm279, %v333
      %367 = vst.msk [vmem:[%s357 + $0x69] sm:$0xff] %vm279, %v334
      %368 = vst.msk [vmem:[%s357 + $0x79] sm:$0xff] %vm279, %v335
      %369 = vst.msk [vmem:[%s357 + $0x81] sm:$0xff] %vm279, %v336
      %370 = vst.msk [vmem:[%s357 + $0x91] sm:$0xff] %vm279, %v337
      %371 = vst.msk [vmem:[%s357 + $0x99] sm:$0xff] %vm279, %v338
      %372 = vst.msk [vmem:[%s357 + $0xa9] sm:$0xff] %vm279, %v339
      %373 = vst.msk [vmem:[%s357 + $0xb1] sm:$0xff] %vm279, %v340
      %374 = vst.msk [vmem:[%s357 + $0xc1] sm:$0xff] %vm279, %v341
      %375 = vst.msk [vmem:[%s357 + $0xc9] sm:$0xff] %vm279, %v342
      %376 = vst.msk [vmem:[%s357 + $0xd9] sm:$0xff] %vm279, %v343
      %377 = vst.msk [vmem:[%s357 + $0xe1] sm:$0xff] %vm279, %v344
      %378 = vst.msk [vmem:[%s357 + $0xf1] sm:$0xff] %vm279, %v345
      %379 = vst.msk [vmem:[%s357 + $0xf9] sm:$0xff] %vm279, %v346
      %380 = vst.msk [vmem:[%s357 + $0x109] sm:$0xff] %vm279, %v347
      %381 = vst.msk [vmem:[%s357 + $0x111] sm:$0xff] %vm279, %v348
      %382 = vst.msk [vmem:[%s357 + $0x121] sm:$0xff] %vm279, %v349
      %383 = vst.msk [vmem:[%s357 + $0x129] sm:$0xff] %vm279, %v350
      %384 = vst.msk [vmem:[%s357 + $0x139] sm:$0xff] %vm279, %v351
      %385 = vst.msk [vmem:[%s357 + $0x141] sm:$0xff] %vm279, %v352
      %386 = vst.msk [vmem:[%s357 + $0x151] sm:$0xff] %vm279, %v353
      %387 = vst.msk [vmem:[%s357 + $0x159] sm:$0xff] %vm279, %v354
      %388 = vst.msk [vmem:[%s357 + $0x169] sm:$0xff] %vm279, %v355
      %389 = vst.msk [vmem:[%s357 + $0x171] sm:$0xff] %vm279, %v356
      %v390 = vld [vmem:[#allocation2] sm:$0xff]
      %v391 = vld [vmem:[#allocation2 + $0x8] sm:$0xff]
      %v392 = vld [vmem:[#allocation2 + $0x18] sm:$0xff]
      %v393 = vld [vmem:[#allocation2 + $0x20] sm:$0xff]
      %v394 = vld [vmem:[#allocation2 + $0x30] sm:$0xff]
      %v395 = vld [vmem:[#allocation2 + $0x38] sm:$0xff]
      %v396 = vld [vmem:[#allocation2 + $0x48] sm:$0xff]
      %v397 = vld [vmem:[#allocation2 + $0x50] sm:$0xff]
      %v398 = vld [vmem:[#allocation2 + $0x60] sm:$0xff]
      %v399 = vld [vmem:[#allocation2 + $0x68] sm:$0xff]
      %v400 = vld [vmem:[#allocation2 + $0x78] sm:$0xff]
      %v401 = vld [vmem:[#allocation2 + $0x80] sm:$0xff]
      %v402 = vld [vmem:[#allocation2 + $0x90] sm:$0xff]
      %v403 = vld [vmem:[#allocation2 + $0x98] sm:$0xff]
      %v404 = vld [vmem:[#allocation2 + $0xa8] sm:$0xff]
      %v405 = vld [vmem:[#allocation2 + $0xb0] sm:$0xff]
      %v406 = vld [vmem:[#allocation2 + $0xc0] sm:$0xff]
      %v407 = vld [vmem:[#allocation2 + $0xc8] sm:$0xff]
      %v408 = vld [vmem:[#allocation2 + $0xd8] sm:$0xff]
      %v409 = vld [vmem:[#allocation2 + $0xe0] sm:$0xff]
      %v410 = vld [vmem:[#allocation2 + $0xf0] sm:$0xff]
      %v411 = vld [vmem:[#allocation2 + $0xf8] sm:$0xff]
      %v412 = vld [vmem:[#allocation2 + $0x108] sm:$0xff]
      %v413 = vld [vmem:[#allocation2 + $0x110] sm:$0xff]
      %v414 = vld [vmem:[#allocation2 + $0x120] sm:$0xff]
      %v415 = vld [vmem:[#allocation2 + $0x128] sm:$0xff]
      %v416 = vld [vmem:[#allocation2 + $0x138] sm:$0xff]
      %v417 = vld [vmem:[#allocation2 + $0x140] sm:$0xff]
      %v418 = vld [vmem:[#allocation2 + $0x150] sm:$0xff]
      %v419 = vld [vmem:[#allocation2 + $0x158] sm:$0xff]
      %v420 = vld [vmem:[#allocation2 + $0x168] sm:$0xff]
      %v421 = vld [vmem:[#allocation2 + $0x170] sm:$0xff]
      %v422 = vld [vmem:[%s1] sm:$0x1]
      %v424 = vperm.slane %v422, 0
      %v426 = vmul.f32 %v390, %v424
      %v427 = vmul.f32 %v391, %v424
      %v428 = vmul.f32 %v392, %v424
      %v429 = vmul.f32 %v393, %v424
      %v430 = vmul.f32 %v394, %v424
      %v431 = vmul.f32 %v395, %v424
      %v432 = vmul.f32 %v396, %v424
      %v433 = vmul.f32 %v397, %v424
      %v434 = vmul.f32 %v398, %v424
      %v435 = vmul.f32 %v399, %v424
      %v436 = vmul.f32 %v400, %v424
      %v437 = vmul.f32 %v401, %v424
      %v438 = vmul.f32 %v402, %v424
      %v439 = vmul.f32 %v403, %v424
      %v440 = vmul.f32 %v404, %v424
      %v441 = vmul.f32 %v405, %v424
      %v442 = vmul.f32 %v406, %v424
      %v443 = vmul.f32 %v407, %v424
      %v444 = vmul.f32 %v408, %v424
      %v445 = vmul.f32 %v409, %v424
      %v446 = vmul.f32 %v410, %v424
      %v447 = vmul.f32 %v411, %v424
      %v448 = vmul.f32 %v412, %v424
      %v449 = vmul.f32 %v413, %v424
      %v450 = vmul.f32 %v414, %v424
      %v451 = vmul.f32 %v415, %v424
      %v452 = vmul.f32 %v416, %v424
      %v453 = vmul.f32 %v417, %v424
      %v454 = vmul.f32 %v418, %v424
      %v455 = vmul.f32 %v419, %v424
      %v456 = vmul.f32 %v420, %v424
      %v457 = vmul.f32 %v421, %v424
      %v458 = vadd.f32 %v426, 0.0
      %v459 = vadd.f32 %v427, 0.0
      %v460 = vadd.f32 %v428, 0.0
      %v461 = vadd.f32 %v429, 0.0
      %v462 = vadd.f32 %v430, 0.0
      %v463 = vadd.f32 %v431, 0.0
      %v464 = vadd.f32 %v432, 0.0
      %v465 = vadd.f32 %v433, 0.0
      %v466 = vadd.f32 %v434, 0.0
      %v467 = vadd.f32 %v435, 0.0
      %v468 = vadd.f32 %v436, 0.0
      %v469 = vadd.f32 %v437, 0.0
      %v470 = vadd.f32 %v438, 0.0
      %v471 = vadd.f32 %v439, 0.0
      %v472 = vadd.f32 %v440, 0.0
      %v473 = vadd.f32 %v441, 0.0
      %v474 = vadd.f32 %v442, 0.0
      %v475 = vadd.f32 %v443, 0.0
      %v476 = vadd.f32 %v444, 0.0
      %v477 = vadd.f32 %v445, 0.0
      %v478 = vadd.f32 %v446, 0.0
      %v479 = vadd.f32 %v447, 0.0
      %v480 = vadd.f32 %v448, 0.0
      %v481 = vadd.f32 %v449, 0.0
      %v482 = vadd.f32 %v450, 0.0
      %v483 = vadd.f32 %v451, 0.0
      %v484 = vadd.f32 %v452, 0.0
      %v485 = vadd.f32 %v453, 0.0
      %v486 = vadd.f32 %v454, 0.0
      %v487 = vadd.f32 %v455, 0.0
      %v488 = vadd.f32 %v456, 0.0
      %v489 = vadd.f32 %v457, 0.0
      %v490 = vld [vmem:[#allocation2 + $0x1] sm:$0xff]
      %v491 = vld [vmem:[#allocation2 + $0x9] sm:$0xff]
      %v492 = vld [vmem:[#allocation2 + $0x19] sm:$0xff]
      %v493 = vld [vmem:[#allocation2 + $0x21] sm:$0xff]
      %v494 = vld [vmem:[#allocation2 + $0x31] sm:$0xff]
      %v495 = vld [vmem:[#allocation2 + $0x39] sm:$0xff]
      %v496 = vld [vmem:[#allocation2 + $0x49] sm:$0xff]
      %v497 = vld [vmem:[#allocation2 + $0x51] sm:$0xff]
      %v498 = vld [vmem:[#allocation2 + $0x61] sm:$0xff]
      %v499 = vld [vmem:[#allocation2 + $0x69] sm:$0xff]
      %v500 = vld [vmem:[#allocation2 + $0x79] sm:$0xff]
      %v501 = vld [vmem:[#allocation2 + $0x81] sm:$0xff]
      %v502 = vld [vmem:[#allocation2 + $0x91] sm:$0xff]
      %v503 = vld [vmem:[#allocation2 + $0x99] sm:$0xff]
      %v504 = vld [vmem:[#allocation2 + $0xa9] sm:$0xff]
      %v505 = vld [vmem:[#allocation2 + $0xb1] sm:$0xff]
      %v506 = vld [vmem:[#allocation2 + $0xc1] sm:$0xff]
      %v507 = vld [vmem:[#allocation2 + $0xc9] sm:$0xff]
      %v508 = vld [vmem:[#allocation2 + $0xd9] sm:$0xff]
      %v509 = vld [vmem:[#allocation2 + $0xe1] sm:$0xff]
      %v510 = vld [vmem:[#allocation2 + $0xf1] sm:$0xff]
      %v511 = vld [vmem:[#allocation2 + $0xf9] sm:$0xff]
      %v512 = vld [vmem:[#allocation2 + $0x109] sm:$0xff]
      %v513 = vld [vmem:[#allocation2 + $0x111] sm:$0xff]
      %v514 = vld [vmem:[#allocation2 + $0x121] sm:$0xff]
      %v515 = vld [vmem:[#allocation2 + $0x129] sm:$0xff]
      %v516 = vld [vmem:[#allocation2 + $0x139] sm:$0xff]
      %v517 = vld [vmem:[#allocation2 + $0x141] sm:$0xff]
      %v518 = vld [vmem:[#allocation2 + $0x151] sm:$0xff]
      %v519 = vld [vmem:[#allocation2 + $0x159] sm:$0xff]
      %v520 = vld [vmem:[#allocation2 + $0x169] sm:$0xff]
      %v521 = vld [vmem:[#allocation2 + $0x171] sm:$0xff]
      %s522 = scalar_lea.vmem %s1, 1
      %v523 = vld [vmem:[%s522] sm:$0x1]
      %v525 = vperm.slane %v523, 0
      %v527 = vmul.f32 %v490, %v525
      %v528 = vmul.f32 %v491, %v525
      %v529 = vmul.f32 %v492, %v525
      %v530 = vmul.f32 %v493, %v525
      %v531 = vmul.f32 %v494, %v525
      %v532 = vmul.f32 %v495, %v525
      %v533 = vmul.f32 %v496, %v525
      %v534 = vmul.f32 %v497, %v525
      %v535 = vmul.f32 %v498, %v525
      %v536 = vmul.f32 %v499, %v525
      %v537 = vmul.f32 %v500, %v525
      %v538 = vmul.f32 %v501, %v525
      %v539 = vmul.f32 %v502, %v525
      %v540 = vmul.f32 %v503, %v525
      %v541 = vmul.f32 %v504, %v525
      %v542 = vmul.f32 %v505, %v525
      %v543 = vmul.f32 %v506, %v525
      %v544 = vmul.f32 %v507, %v525
      %v545 = vmul.f32 %v508, %v525
      %v546 = vmul.f32 %v509, %v525
      %v547 = vmul.f32 %v510, %v525
      %v548 = vmul.f32 %v511, %v525
      %v549 = vmul.f32 %v512, %v525
      %v550 = vmul.f32 %v513, %v525
      %v551 = vmul.f32 %v514, %v525
      %v552 = vmul.f32 %v515, %v525
      %v553 = vmul.f32 %v516, %v525
      %v554 = vmul.f32 %v517, %v525
      %v555 = vmul.f32 %v518, %v525
      %v556 = vmul.f32 %v519, %v525
      %v557 = vmul.f32 %v520, %v525
      %v558 = vmul.f32 %v521, %v525
      %v559 = vadd.f32 %v458, %v527
      %v560 = vadd.f32 %v459, %v528
      %v561 = vadd.f32 %v460, %v529
      %v562 = vadd.f32 %v461, %v530
      %v563 = vadd.f32 %v462, %v531
      %v564 = vadd.f32 %v463, %v532
      %v565 = vadd.f32 %v464, %v533
      %v566 = vadd.f32 %v465, %v534
      %v567 = vadd.f32 %v466, %v535
      %v568 = vadd.f32 %v467, %v536
      %v569 = vadd.f32 %v468, %v537
      %v570 = vadd.f32 %v469, %v538
      %v571 = vadd.f32 %v470, %v539
      %v572 = vadd.f32 %v471, %v540
      %v573 = vadd.f32 %v472, %v541
      %v574 = vadd.f32 %v473, %v542
      %v575 = vadd.f32 %v474, %v543
      %v576 = vadd.f32 %v475, %v544
      %v577 = vadd.f32 %v476, %v545
      %v578 = vadd.f32 %v477, %v546
      %v579 = vadd.f32 %v478, %v547
      %v580 = vadd.f32 %v479, %v548
      %v581 = vadd.f32 %v480, %v549
      %v582 = vadd.f32 %v481, %v550
      %v583 = vadd.f32 %v482, %v551
      %v584 = vadd.f32 %v483, %v552
      %v585 = vadd.f32 %v484, %v553
      %v586 = vadd.f32 %v485, %v554
      %v587 = vadd.f32 %v486, %v555
      %v588 = vadd.f32 %v487, %v556
      %v589 = vadd.f32 %v488, %v557
      %v590 = vadd.f32 %v489, %v558
      %v591 = vld [vmem:[#allocation2 + $0x2] sm:$0xff]
      %v592 = vld [vmem:[#allocation2 + $0xa] sm:$0xff]
      %v593 = vld [vmem:[#allocation2 + $0x1a] sm:$0xff]
      %v594 = vld [vmem:[#allocation2 + $0x22] sm:$0xff]
      %v595 = vld [vmem:[#allocation2 + $0x32] sm:$0xff]
      %v596 = vld [vmem:[#allocation2 + $0x3a] sm:$0xff]
      %v597 = vld [vmem:[#allocation2 + $0x4a] sm:$0xff]
      %v598 = vld [vmem:[#allocation2 + $0x52] sm:$0xff]
      %v599 = vld [vmem:[#allocation2 + $0x62] sm:$0xff]
      %v600 = vld [vmem:[#allocation2 + $0x6a] sm:$0xff]
      %v601 = vld [vmem:[#allocation2 + $0x7a] sm:$0xff]
      %v602 = vld [vmem:[#allocation2 + $0x82] sm:$0xff]
      %v603 = vld [vmem:[#allocation2 + $0x92] sm:$0xff]
      %v604 = vld [vmem:[#allocation2 + $0x9a] sm:$0xff]
      %v605 = vld [vmem:[#allocation2 + $0xaa] sm:$0xff]
      %v606 = vld [vmem:[#allocation2 + $0xb2] sm:$0xff]
      %v607 = vld [vmem:[#allocation2 + $0xc2] sm:$0xff]
      %v608 = vld [vmem:[#allocation2 + $0xca] sm:$0xff]
      %v609 = vld [vmem:[#allocation2 + $0xda] sm:$0xff]
      %v610 = vld [vmem:[#allocation2 + $0xe2] sm:$0xff]
      %v611 = vld [vmem:[#allocation2 + $0xf2] sm:$0xff]
      %v612 = vld [vmem:[#allocation2 + $0xfa] sm:$0xff]
      %v613 = vld [vmem:[#allocation2 + $0x10a] sm:$0xff]
      %v614 = vld [vmem:[#allocation2 + $0x112] sm:$0xff]
      %v615 = vld [vmem:[#allocation2 + $0x122] sm:$0xff]
      %v616 = vld [vmem:[#allocation2 + $0x12a] sm:$0xff]
      %v617 = vld [vmem:[#allocation2 + $0x13a] sm:$0xff]
      %v618 = vld [vmem:[#allocation2 + $0x142] sm:$0xff]
      %v619 = vld [vmem:[#allocation2 + $0x152] sm:$0xff]
      %v620 = vld [vmem:[#allocation2 + $0x15a] sm:$0xff]
      %v621 = vld [vmem:[#allocation2 + $0x16a] sm:$0xff]
      %v622 = vld [vmem:[#allocation2 + $0x172] sm:$0xff]
      %s623 = scalar_lea.vmem %s1, 2
      %v624 = vld [vmem:[%s623] sm:$0x1]
      %v626 = vperm.slane %v624, 0
      %v628 = vmul.f32 %v591, %v626
      %v629 = vmul.f32 %v592, %v626
      %v630 = vmul.f32 %v593, %v626
      %v631 = vmul.f32 %v594, %v626
      %v632 = vmul.f32 %v595, %v626
      %v633 = vmul.f32 %v596, %v626
      %v634 = vmul.f32 %v597, %v626
      %v635 = vmul.f32 %v598, %v626
      %v636 = vmul.f32 %v599, %v626
      %v637 = vmul.f32 %v600, %v626
      %v638 = vmul.f32 %v601, %v626
      %v639 = vmul.f32 %v602, %v626
      %v640 = vmul.f32 %v603, %v626
      %v641 = vmul.f32 %v604, %v626
      %v642 = vmul.f32 %v605, %v626
      %v643 = vmul.f32 %v606, %v626
      %v644 = vmul.f32 %v607, %v626
      %v645 = vmul.f32 %v608, %v626
      %v646 = vmul.f32 %v609, %v626
      %v647 = vmul.f32 %v610, %v626
      %v648 = vmul.f32 %v611, %v626
      %v649 = vmul.f32 %v612, %v626
      %v650 = vmul.f32 %v613, %v626
      %v651 = vmul.f32 %v614, %v626
      %v652 = vmul.f32 %v615, %v626
      %v653 = vmul.f32 %v616, %v626
      %v654 = vmul.f32 %v617, %v626
      %v655 = vmul.f32 %v618, %v626
      %v656 = vmul.f32 %v619, %v626
      %v657 = vmul.f32 %v620, %v626
      %v658 = vmul.f32 %v621, %v626
      %v659 = vmul.f32 %v622, %v626
      %v660 = vadd.f32 %v559, %v628
      %v661 = vadd.f32 %v560, %v629
      %v662 = vadd.f32 %v561, %v630
      %v663 = vadd.f32 %v562, %v631
      %v664 = vadd.f32 %v563, %v632
      %v665 = vadd.f32 %v564, %v633
      %v666 = vadd.f32 %v565, %v634
      %v667 = vadd.f32 %v566, %v635
      %v668 = vadd.f32 %v567, %v636
      %v669 = vadd.f32 %v568, %v637
      %v670 = vadd.f32 %v569, %v638
      %v671 = vadd.f32 %v570, %v639
      %v672 = vadd.f32 %v571, %v640
      %v673 = vadd.f32 %v572, %v641
      %v674 = vadd.f32 %v573, %v642
      %v675 = vadd.f32 %v574, %v643
      %v676 = vadd.f32 %v575, %v644
      %v677 = vadd.f32 %v576, %v645
      %v678 = vadd.f32 %v577, %v646
      %v679 = vadd.f32 %v578, %v647
      %v680 = vadd.f32 %v579, %v648
      %v681 = vadd.f32 %v580, %v649
      %v682 = vadd.f32 %v581, %v650
      %v683 = vadd.f32 %v582, %v651
      %v684 = vadd.f32 %v583, %v652
      %v685 = vadd.f32 %v584, %v653
      %v686 = vadd.f32 %v585, %v654
      %v687 = vadd.f32 %v586, %v655
      %v688 = vadd.f32 %v587, %v656
      %v689 = vadd.f32 %v588, %v657
      %v690 = vadd.f32 %v589, %v658
      %v691 = vadd.f32 %v590, %v659
      %v692 = vld [vmem:[%s357] sm:$0xff]
      %v693 = vld [vmem:[%s357 + $0x8] sm:$0xff]
      %v694 = vld [vmem:[%s357 + $0x18] sm:$0xff]
      %v695 = vld [vmem:[%s357 + $0x20] sm:$0xff]
      %v696 = vld [vmem:[%s357 + $0x30] sm:$0xff]
      %v697 = vld [vmem:[%s357 + $0x38] sm:$0xff]
      %v698 = vld [vmem:[%s357 + $0x48] sm:$0xff]
      %v699 = vld [vmem:[%s357 + $0x50] sm:$0xff]
      %v700 = vld [vmem:[%s357 + $0x60] sm:$0xff]
      %v701 = vld [vmem:[%s357 + $0x68] sm:$0xff]
      %v702 = vld [vmem:[%s357 + $0x78] sm:$0xff]
      %v703 = vld [vmem:[%s357 + $0x80] sm:$0xff]
      %v704 = vld [vmem:[%s357 + $0x90] sm:$0xff]
      %v705 = vld [vmem:[%s357 + $0x98] sm:$0xff]
      %v706 = vld [vmem:[%s357 + $0xa8] sm:$0xff]
      %v707 = vld [vmem:[%s357 + $0xb0] sm:$0xff]
      %v708 = vld [vmem:[%s357 + $0xc0] sm:$0xff]
      %v709 = vld [vmem:[%s357 + $0xc8] sm:$0xff]
      %v710 = vld [vmem:[%s357 + $0xd8] sm:$0xff]
      %v711 = vld [vmem:[%s357 + $0xe0] sm:$0xff]
      %v712 = vld [vmem:[%s357 + $0xf0] sm:$0xff]
      %v713 = vld [vmem:[%s357 + $0xf8] sm:$0xff]
      %v714 = vld [vmem:[%s357 + $0x108] sm:$0xff]
      %v715 = vld [vmem:[%s357 + $0x110] sm:$0xff]
      %v716 = vld [vmem:[%s357 + $0x120] sm:$0xff]
      %v717 = vld [vmem:[%s357 + $0x128] sm:$0xff]
      %v718 = vld [vmem:[%s357 + $0x138] sm:$0xff]
      %v719 = vld [vmem:[%s357 + $0x140] sm:$0xff]
      %v720 = vld [vmem:[%s357 + $0x150] sm:$0xff]
      %v721 = vld [vmem:[%s357 + $0x158] sm:$0xff]
      %v722 = vld [vmem:[%s357 + $0x168] sm:$0xff]
      %v723 = vld [vmem:[%s357 + $0x170] sm:$0xff]
      %s724 = scalar_lea.vmem %s1, 3
      %v725 = vld [vmem:[%s724] sm:$0x1]
      %v727 = vperm.slane %v725, 0
      %v729 = vmul.f32 %v692, %v727
      %v730 = vmul.f32 %v693, %v727
      %v731 = vmul.f32 %v694, %v727
      %v732 = vmul.f32 %v695, %v727
      %v733 = vmul.f32 %v696, %v727
      %v734 = vmul.f32 %v697, %v727
      %v735 = vmul.f32 %v698, %v727
      %v736 = vmul.f32 %v699, %v727
      %v737 = vmul.f32 %v700, %v727
      %v738 = vmul.f32 %v701, %v727
      %v739 = vmul.f32 %v702, %v727
      %v740 = vmul.f32 %v703, %v727
      %v741 = vmul.f32 %v704, %v727
      %v742 = vmul.f32 %v705, %v727
      %v743 = vmul.f32 %v706, %v727
      %v744 = vmul.f32 %v707, %v727
      %v745 = vmul.f32 %v708, %v727
      %v746 = vmul.f32 %v709, %v727
      %v747 = vmul.f32 %v710, %v727
      %v748 = vmul.f32 %v711, %v727
      %v749 = vmul.f32 %v712, %v727
      %v750 = vmul.f32 %v713, %v727
      %v751 = vmul.f32 %v714, %v727
      %v752 = vmul.f32 %v715, %v727
      %v753 = vmul.f32 %v716, %v727
      %v754 = vmul.f32 %v717, %v727
      %v755 = vmul.f32 %v718, %v727
      %v756 = vmul.f32 %v719, %v727
      %v757 = vmul.f32 %v720, %v727
      %v758 = vmul.f32 %v721, %v727
      %v759 = vmul.f32 %v722, %v727
      %v760 = vmul.f32 %v723, %v727
      %v761 = vadd.f32 %v660, %v729
      %v762 = vadd.f32 %v661, %v730
      %v763 = vadd.f32 %v662, %v731
      %v764 = vadd.f32 %v663, %v732
      %v765 = vadd.f32 %v664, %v733
      %v766 = vadd.f32 %v665, %v734
      %v767 = vadd.f32 %v666, %v735
      %v768 = vadd.f32 %v667, %v736
      %v769 = vadd.f32 %v668, %v737
      %v770 = vadd.f32 %v669, %v738
      %v771 = vadd.f32 %v670, %v739
      %v772 = vadd.f32 %v671, %v740
      %v773 = vadd.f32 %v672, %v741
      %v774 = vadd.f32 %v673, %v742
      %v775 = vadd.f32 %v674, %v743
      %v776 = vadd.f32 %v675, %v744
      %v777 = vadd.f32 %v676, %v745
      %v778 = vadd.f32 %v677, %v746
      %v779 = vadd.f32 %v678, %v747
      %v780 = vadd.f32 %v679, %v748
      %v781 = vadd.f32 %v680, %v749
      %v782 = vadd.f32 %v681, %v750
      %v783 = vadd.f32 %v682, %v751
      %v784 = vadd.f32 %v683, %v752
      %v785 = vadd.f32 %v684, %v753
      %v786 = vadd.f32 %v685, %v754
      %v787 = vadd.f32 %v686, %v755
      %v788 = vadd.f32 %v687, %v756
      %v789 = vadd.f32 %v688, %v757
      %v790 = vadd.f32 %v689, %v758
      %v791 = vadd.f32 %v690, %v759
      %v792 = vadd.f32 %v691, %v760
      %v793 = vld [vmem:[%s357 + $0x1] sm:$0xff]
      %v794 = vld [vmem:[%s357 + $0x9] sm:$0xff]
      %v795 = vld [vmem:[%s357 + $0x19] sm:$0xff]
      %v796 = vld [vmem:[%s357 + $0x21] sm:$0xff]
      %v797 = vld [vmem:[%s357 + $0x31] sm:$0xff]
      %v798 = vld [vmem:[%s357 + $0x39] sm:$0xff]
      %v799 = vld [vmem:[%s357 + $0x49] sm:$0xff]
      %v800 = vld [vmem:[%s357 + $0x51] sm:$0xff]
      %v801 = vld [vmem:[%s357 + $0x61] sm:$0xff]
      %v802 = vld [vmem:[%s357 + $0x69] sm:$0xff]
      %v803 = vld [vmem:[%s357 + $0x79] sm:$0xff]
      %v804 = vld [vmem:[%s357 + $0x81] sm:$0xff]
      %v805 = vld [vmem:[%s357 + $0x91] sm:$0xff]
      %v806 = vld [vmem:[%s357 + $0x99] sm:$0xff]
      %v807 = vld [vmem:[%s357 + $0xa9] sm:$0xff]
      %v808 = vld [vmem:[%s357 + $0xb1] sm:$0xff]
      %v809 = vld [vmem:[%s357 + $0xc1] sm:$0xff]
      %v810 = vld [vmem:[%s357 + $0xc9] sm:$0xff]
      %v811 = vld [vmem:[%s357 + $0xd9] sm:$0xff]
      %v812 = vld [vmem:[%s357 + $0xe1] sm:$0xff]
      %v813 = vld [vmem:[%s357 + $0xf1] sm:$0xff]
      %v814 = vld [vmem:[%s357 + $0xf9] sm:$0xff]
      %v815 = vld [vmem:[%s357 + $0x109] sm:$0xff]
      %v816 = vld [vmem:[%s357 + $0x111] sm:$0xff]
      %v817 = vld [vmem:[%s357 + $0x121] sm:$0xff]
      %v818 = vld [vmem:[%s357 + $0x129] sm:$0xff]
      %v819 = vld [vmem:[%s357 + $0x139] sm:$0xff]
      %v820 = vld [vmem:[%s357 + $0x141] sm:$0xff]
      %v821 = vld [vmem:[%s357 + $0x151] sm:$0xff]
      %v822 = vld [vmem:[%s357 + $0x159] sm:$0xff]
      %v823 = vld [vmem:[%s357 + $0x169] sm:$0xff]
      %v824 = vld [vmem:[%s357 + $0x171] sm:$0xff]
      %s825 = scalar_lea.vmem %s1, 4
      %v826 = vld [vmem:[%s825] sm:$0x1]
      %v828 = vperm.slane %v826, 0
      %v830 = vmul.f32 %v793, %v828
      %v831 = vmul.f32 %v794, %v828
      %v832 = vmul.f32 %v795, %v828
      %v833 = vmul.f32 %v796, %v828
      %v834 = vmul.f32 %v797, %v828
      %v835 = vmul.f32 %v798, %v828
      %v836 = vmul.f32 %v799, %v828
      %v837 = vmul.f32 %v800, %v828
      %v838 = vmul.f32 %v801, %v828
      %v839 = vmul.f32 %v802, %v828
      %v840 = vmul.f32 %v803, %v828
      %v841 = vmul.f32 %v804, %v828
      %v842 = vmul.f32 %v805, %v828
      %v843 = vmul.f32 %v806, %v828
      %v844 = vmul.f32 %v807, %v828
      %v845 = vmul.f32 %v808, %v828
      %v846 = vmul.f32 %v809, %v828
      %v847 = vmul.f32 %v810, %v828
      %v848 = vmul.f32 %v811, %v828
      %v849 = vmul.f32 %v812, %v828
      %v850 = vmul.f32 %v813, %v828
      %v851 = vmul.f32 %v814, %v828
      %v852 = vmul.f32 %v815, %v828
      %v853 = vmul.f32 %v816, %v828
      %v854 = vmul.f32 %v817, %v828
      %v855 = vmul.f32 %v818, %v828
      %v856 = vmul.f32 %v819, %v828
      %v857 = vmul.f32 %v820, %v828
      %v858 = vmul.f32 %v821, %v828
      %v859 = vmul.f32 %v822, %v828
      %v860 = vmul.f32 %v823, %v828
      %v861 = vmul.f32 %v824, %v828
      %v862 = vadd.f32 %v761, %v830
      %v863 = vadd.f32 %v762, %v831
      %v864 = vadd.f32 %v763, %v832
      %v865 = vadd.f32 %v764, %v833
      %v866 = vadd.f32 %v765, %v834
      %v867 = vadd.f32 %v766, %v835
      %v868 = vadd.f32 %v767, %v836
      %v869 = vadd.f32 %v768, %v837
      %v870 = vadd.f32 %v769, %v838
      %v871 = vadd.f32 %v770, %v839
      %v872 = vadd.f32 %v771, %v840
      %v873 = vadd.f32 %v772, %v841
      %v874 = vadd.f32 %v773, %v842
      %v875 = vadd.f32 %v774, %v843
      %v876 = vadd.f32 %v775, %v844
      %v877 = vadd.f32 %v776, %v845
      %v878 = vadd.f32 %v777, %v846
      %v879 = vadd.f32 %v778, %v847
      %v880 = vadd.f32 %v779, %v848
      %v881 = vadd.f32 %v780, %v849
      %v882 = vadd.f32 %v781, %v850
      %v883 = vadd.f32 %v782, %v851
      %v884 = vadd.f32 %v783, %v852
      %v885 = vadd.f32 %v784, %v853
      %v886 = vadd.f32 %v785, %v854
      %v887 = vadd.f32 %v786, %v855
      %v888 = vadd.f32 %v787, %v856
      %v889 = vadd.f32 %v788, %v857
      %v890 = vadd.f32 %v789, %v858
      %v891 = vadd.f32 %v790, %v859
      %v892 = vadd.f32 %v791, %v860
      %v893 = vadd.f32 %v792, %v861
      %v894 = vld [vmem:[%s357 + $0x2] sm:$0xff]
      %v895 = vld [vmem:[%s357 + $0xa] sm:$0xff]
      %v896 = vld [vmem:[%s357 + $0x1a] sm:$0xff]
      %v897 = vld [vmem:[%s357 + $0x22] sm:$0xff]
      %v898 = vld [vmem:[%s357 + $0x32] sm:$0xff]
      %v899 = vld [vmem:[%s357 + $0x3a] sm:$0xff]
      %v900 = vld [vmem:[%s357 + $0x4a] sm:$0xff]
      %v901 = vld [vmem:[%s357 + $0x52] sm:$0xff]
      %v902 = vld [vmem:[%s357 + $0x62] sm:$0xff]
      %v903 = vld [vmem:[%s357 + $0x6a] sm:$0xff]
      %v904 = vld [vmem:[%s357 + $0x7a] sm:$0xff]
      %v905 = vld [vmem:[%s357 + $0x82] sm:$0xff]
      %v906 = vld [vmem:[%s357 + $0x92] sm:$0xff]
      %v907 = vld [vmem:[%s357 + $0x9a] sm:$0xff]
      %v908 = vld [vmem:[%s357 + $0xaa] sm:$0xff]
      %v909 = vld [vmem:[%s357 + $0xb2] sm:$0xff]
      %v910 = vld [vmem:[%s357 + $0xc2] sm:$0xff]
      %v911 = vld [vmem:[%s357 + $0xca] sm:$0xff]
      %v912 = vld [vmem:[%s357 + $0xda] sm:$0xff]
      %v913 = vld [vmem:[%s357 + $0xe2] sm:$0xff]
      %v914 = vld [vmem:[%s357 + $0xf2] sm:$0xff]
      %v915 = vld [vmem:[%s357 + $0xfa] sm:$0xff]
      %v916 = vld [vmem:[%s357 + $0x10a] sm:$0xff]
      %v917 = vld [vmem:[%s357 + $0x112] sm:$0xff]
      %v918 = vld [vmem:[%s357 + $0x122] sm:$0xff]
      %v919 = vld [vmem:[%s357 + $0x12a] sm:$0xff]
      %v920 = vld [vmem:[%s357 + $0x13a] sm:$0xff]
      %v921 = vld [vmem:[%s357 + $0x142] sm:$0xff]
      %v922 = vld [vmem:[%s357 + $0x152] sm:$0xff]
      %v923 = vld [vmem:[%s357 + $0x15a] sm:$0xff]
      %v924 = vld [vmem:[%s357 + $0x16a] sm:$0xff]
      %v925 = vld [vmem:[%s357 + $0x172] sm:$0xff]
      %s926 = scalar_lea.vmem %s1, 5
      %v927 = vld [vmem:[%s926] sm:$0x1]
      %v929 = vperm.slane %v927, 0
      %v931 = vmul.f32 %v894, %v929
      %v932 = vmul.f32 %v895, %v929
      %v933 = vmul.f32 %v896, %v929
      %v934 = vmul.f32 %v897, %v929
      %v935 = vmul.f32 %v898, %v929
      %v936 = vmul.f32 %v899, %v929
      %v937 = vmul.f32 %v900, %v929
      %v938 = vmul.f32 %v901, %v929
      %v939 = vmul.f32 %v902, %v929
      %v940 = vmul.f32 %v903, %v929
      %v941 = vmul.f32 %v904, %v929
      %v942 = vmul.f32 %v905, %v929
      %v943 = vmul.f32 %v906, %v929
      %v944 = vmul.f32 %v907, %v929
      %v945 = vmul.f32 %v908, %v929
      %v946 = vmul.f32 %v909, %v929
      %v947 = vmul.f32 %v910, %v929
      %v948 = vmul.f32 %v911, %v929
      %v949 = vmul.f32 %v912, %v929
      %v950 = vmul.f32 %v913, %v929
      %v951 = vmul.f32 %v914, %v929
      %v952 = vmul.f32 %v915, %v929
      %v953 = vmul.f32 %v916, %v929
      %v954 = vmul.f32 %v917, %v929
      %v955 = vmul.f32 %v918, %v929
      %v956 = vmul.f32 %v919, %v929
      %v957 = vmul.f32 %v920, %v929
      %v958 = vmul.f32 %v921, %v929
      %v959 = vmul.f32 %v922, %v929
      %v960 = vmul.f32 %v923, %v929
      %v961 = vmul.f32 %v924, %v929
      %v962 = vmul.f32 %v925, %v929
      %v963 = vadd.f32 %v862, %v931
      %v964 = vadd.f32 %v863, %v932
      %v965 = vadd.f32 %v864, %v933
      %v966 = vadd.f32 %v865, %v934
      %v967 = vadd.f32 %v866, %v935
      %v968 = vadd.f32 %v867, %v936
      %v969 = vadd.f32 %v868, %v937
      %v970 = vadd.f32 %v869, %v938
      %v971 = vadd.f32 %v870, %v939
      %v972 = vadd.f32 %v871, %v940
      %v973 = vadd.f32 %v872, %v941
      %v974 = vadd.f32 %v873, %v942
      %v975 = vadd.f32 %v874, %v943
      %v976 = vadd.f32 %v875, %v944
      %v977 = vadd.f32 %v876, %v945
      %v978 = vadd.f32 %v877, %v946
      %v979 = vadd.f32 %v878, %v947
      %v980 = vadd.f32 %v879, %v948
      %v981 = vadd.f32 %v880, %v949
      %v982 = vadd.f32 %v881, %v950
      %v983 = vadd.f32 %v882, %v951
      %v984 = vadd.f32 %v883, %v952
      %v985 = vadd.f32 %v884, %v953
      %v986 = vadd.f32 %v885, %v954
      %v987 = vadd.f32 %v886, %v955
      %v988 = vadd.f32 %v887, %v956
      %v989 = vadd.f32 %v888, %v957
      %v990 = vadd.f32 %v889, %v958
      %v991 = vadd.f32 %v890, %v959
      %v992 = vadd.f32 %v891, %v960
      %v993 = vadd.f32 %v892, %v961
      %v994 = vadd.f32 %v893, %v962
      %s995 = scalar_lea.vmem [#allocation2], 48
      %v996 = vld [vmem:[%s995] sm:$0xff]
      %v997 = vld [vmem:[%s995 + $0x8] sm:$0xff]
      %v998 = vld [vmem:[%s995 + $0x18] sm:$0xff]
      %v999 = vld [vmem:[%s995 + $0x20] sm:$0xff]
      %v1000 = vld [vmem:[%s995 + $0x30] sm:$0xff]
      %v1001 = vld [vmem:[%s995 + $0x38] sm:$0xff]
      %v1002 = vld [vmem:[%s995 + $0x48] sm:$0xff]
      %v1003 = vld [vmem:[%s995 + $0x50] sm:$0xff]
      %v1004 = vld [vmem:[%s995 + $0x60] sm:$0xff]
      %v1005 = vld [vmem:[%s995 + $0x68] sm:$0xff]
      %v1006 = vld [vmem:[%s995 + $0x78] sm:$0xff]
      %v1007 = vld [vmem:[%s995 + $0x80] sm:$0xff]
      %v1008 = vld [vmem:[%s995 + $0x90] sm:$0xff]
      %v1009 = vld [vmem:[%s995 + $0x98] sm:$0xff]
      %v1010 = vld [vmem:[%s995 + $0xa8] sm:$0xff]
      %v1011 = vld [vmem:[%s995 + $0xb0] sm:$0xff]
      %v1012 = vld [vmem:[%s995 + $0xc0] sm:$0xff]
      %v1013 = vld [vmem:[%s995 + $0xc8] sm:$0xff]
      %v1014 = vld [vmem:[%s995 + $0xd8] sm:$0xff]
      %v1015 = vld [vmem:[%s995 + $0xe0] sm:$0xff]
      %v1016 = vld [vmem:[%s995 + $0xf0] sm:$0xff]
      %v1017 = vld [vmem:[%s995 + $0xf8] sm:$0xff]
      %v1018 = vld [vmem:[%s995 + $0x108] sm:$0xff]
      %v1019 = vld [vmem:[%s995 + $0x110] sm:$0xff]
      %v1020 = vld [vmem:[%s995 + $0x120] sm:$0xff]
      %v1021 = vld [vmem:[%s995 + $0x128] sm:$0xff]
      %v1022 = vld [vmem:[%s995 + $0x138] sm:$0xff]
      %v1023 = vld [vmem:[%s995 + $0x140] sm:$0xff]
      %v1024 = vld [vmem:[%s995 + $0x150] sm:$0xff]
      %v1025 = vld [vmem:[%s995 + $0x158] sm:$0xff]
      %v1026 = vld [vmem:[%s995 + $0x168] sm:$0xff]
      %v1027 = vld [vmem:[%s995 + $0x170] sm:$0xff]
      %s1028 = scalar_lea.vmem %s1, 6
      %v1029 = vld [vmem:[%s1028] sm:$0x1]
      %v1031 = vperm.slane %v1029, 0
      %v1033 = vmul.f32 %v996, %v1031
      %v1034 = vmul.f32 %v997, %v1031
      %v1035 = vmul.f32 %v998, %v1031
      %v1036 = vmul.f32 %v999, %v1031
      %v1037 = vmul.f32 %v1000, %v1031
      %v1038 = vmul.f32 %v1001, %v1031
      %v1039 = vmul.f32 %v1002, %v1031
      %v1040 = vmul.f32 %v1003, %v1031
      %v1041 = vmul.f32 %v1004, %v1031
      %v1042 = vmul.f32 %v1005, %v1031
      %v1043 = vmul.f32 %v1006, %v1031
      %v1044 = vmul.f32 %v1007, %v1031
      %v1045 = vmul.f32 %v1008, %v1031
      %v1046 = vmul.f32 %v1009, %v1031
      %v1047 = vmul.f32 %v1010, %v1031
      %v1048 = vmul.f32 %v1011, %v1031
      %v1049 = vmul.f32 %v1012, %v1031
      %v1050 = vmul.f32 %v1013, %v1031
      %v1051 = vmul.f32 %v1014, %v1031
      %v1052 = vmul.f32 %v1015, %v1031
      %v1053 = vmul.f32 %v1016, %v1031
      %v1054 = vmul.f32 %v1017, %v1031
      %v1055 = vmul.f32 %v1018, %v1031
      %v1056 = vmul.f32 %v1019, %v1031
      %v1057 = vmul.f32 %v1020, %v1031
      %v1058 = vmul.f32 %v1021, %v1031
      %v1059 = vmul.f32 %v1022, %v1031
      %v1060 = vmul.f32 %v1023, %v1031
      %v1061 = vmul.f32 %v1024, %v1031
      %v1062 = vmul.f32 %v1025, %v1031
      %v1063 = vmul.f32 %v1026, %v1031
      %v1064 = vmul.f32 %v1027, %v1031
      %v1065 = vadd.f32 %v963, %v1033
      %v1066 = vadd.f32 %v964, %v1034
      %v1067 = vadd.f32 %v965, %v1035
      %v1068 = vadd.f32 %v966, %v1036
      %v1069 = vadd.f32 %v967, %v1037
      %v1070 = vadd.f32 %v968, %v1038
      %v1071 = vadd.f32 %v969, %v1039
      %v1072 = vadd.f32 %v970, %v1040
      %v1073 = vadd.f32 %v971, %v1041
      %v1074 = vadd.f32 %v972, %v1042
      %v1075 = vadd.f32 %v973, %v1043
      %v1076 = vadd.f32 %v974, %v1044
      %v1077 = vadd.f32 %v975, %v1045
      %v1078 = vadd.f32 %v976, %v1046
      %v1079 = vadd.f32 %v977, %v1047
      %v1080 = vadd.f32 %v978, %v1048
      %v1081 = vadd.f32 %v979, %v1049
      %v1082 = vadd.f32 %v980, %v1050
      %v1083 = vadd.f32 %v981, %v1051
      %v1084 = vadd.f32 %v982, %v1052
      %v1085 = vadd.f32 %v983, %v1053
      %v1086 = vadd.f32 %v984, %v1054
      %v1087 = vadd.f32 %v985, %v1055
      %v1088 = vadd.f32 %v986, %v1056
      %v1089 = vadd.f32 %v987, %v1057
      %v1090 = vadd.f32 %v988, %v1058
      %v1091 = vadd.f32 %v989, %v1059
      %v1092 = vadd.f32 %v990, %v1060
      %v1093 = vadd.f32 %v991, %v1061
      %v1094 = vadd.f32 %v992, %v1062
      %v1095 = vadd.f32 %v993, %v1063
      %v1096 = vadd.f32 %v994, %v1064
      %v1097 = vld [vmem:[%s995 + $0x1] sm:$0xff]
      %v1098 = vld [vmem:[%s995 + $0x9] sm:$0xff]
      %v1099 = vld [vmem:[%s995 + $0x19] sm:$0xff]
      %v1100 = vld [vmem:[%s995 + $0x21] sm:$0xff]
      %v1101 = vld [vmem:[%s995 + $0x31] sm:$0xff]
      %v1102 = vld [vmem:[%s995 + $0x39] sm:$0xff]
      %v1103 = vld [vmem:[%s995 + $0x49] sm:$0xff]
      %v1104 = vld [vmem:[%s995 + $0x51] sm:$0xff]
      %v1105 = vld [vmem:[%s995 + $0x61] sm:$0xff]
      %v1106 = vld [vmem:[%s995 + $0x69] sm:$0xff]
      %v1107 = vld [vmem:[%s995 + $0x79] sm:$0xff]
      %v1108 = vld [vmem:[%s995 + $0x81] sm:$0xff]
      %v1109 = vld [vmem:[%s995 + $0x91] sm:$0xff]
      %v1110 = vld [vmem:[%s995 + $0x99] sm:$0xff]
      %v1111 = vld [vmem:[%s995 + $0xa9] sm:$0xff]
      %v1112 = vld [vmem:[%s995 + $0xb1] sm:$0xff]
      %v1113 = vld [vmem:[%s995 + $0xc1] sm:$0xff]
      %v1114 = vld [vmem:[%s995 + $0xc9] sm:$0xff]
      %v1115 = vld [vmem:[%s995 + $0xd9] sm:$0xff]
      %v1116 = vld [vmem:[%s995 + $0xe1] sm:$0xff]
      %v1117 = vld [vmem:[%s995 + $0xf1] sm:$0xff]
      %v1118 = vld [vmem:[%s995 + $0xf9] sm:$0xff]
      %v1119 = vld [vmem:[%s995 + $0x109] sm:$0xff]
      %v1120 = vld [vmem:[%s995 + $0x111] sm:$0xff]
      %v1121 = vld [vmem:[%s995 + $0x121] sm:$0xff]
      %v1122 = vld [vmem:[%s995 + $0x129] sm:$0xff]
      %v1123 = vld [vmem:[%s995 + $0x139] sm:$0xff]
      %v1124 = vld [vmem:[%s995 + $0x141] sm:$0xff]
      %v1125 = vld [vmem:[%s995 + $0x151] sm:$0xff]
      %v1126 = vld [vmem:[%s995 + $0x159] sm:$0xff]
      %v1127 = vld [vmem:[%s995 + $0x169] sm:$0xff]
      %v1128 = vld [vmem:[%s995 + $0x171] sm:$0xff]
      %s1129 = scalar_lea.vmem %s1, 7
      %v1130 = vld [vmem:[%s1129] sm:$0x1]
      %v1132 = vperm.slane %v1130, 0
      %v1134 = vmul.f32 %v1097, %v1132
      %v1135 = vmul.f32 %v1098, %v1132
      %v1136 = vmul.f32 %v1099, %v1132
      %v1137 = vmul.f32 %v1100, %v1132
      %v1138 = vmul.f32 %v1101, %v1132
      %v1139 = vmul.f32 %v1102, %v1132
      %v1140 = vmul.f32 %v1103, %v1132
      %v1141 = vmul.f32 %v1104, %v1132
      %v1142 = vmul.f32 %v1105, %v1132
      %v1143 = vmul.f32 %v1106, %v1132
      %v1144 = vmul.f32 %v1107, %v1132
      %v1145 = vmul.f32 %v1108, %v1132
      %v1146 = vmul.f32 %v1109, %v1132
      %v1147 = vmul.f32 %v1110, %v1132
      %v1148 = vmul.f32 %v1111, %v1132
      %v1149 = vmul.f32 %v1112, %v1132
      %v1150 = vmul.f32 %v1113, %v1132
      %v1151 = vmul.f32 %v1114, %v1132
      %v1152 = vmul.f32 %v1115, %v1132
      %v1153 = vmul.f32 %v1116, %v1132
      %v1154 = vmul.f32 %v1117, %v1132
      %v1155 = vmul.f32 %v1118, %v1132
      %v1156 = vmul.f32 %v1119, %v1132
      %v1157 = vmul.f32 %v1120, %v1132
      %v1158 = vmul.f32 %v1121, %v1132
      %v1159 = vmul.f32 %v1122, %v1132
      %v1160 = vmul.f32 %v1123, %v1132
      %v1161 = vmul.f32 %v1124, %v1132
      %v1162 = vmul.f32 %v1125, %v1132
      %v1163 = vmul.f32 %v1126, %v1132
      %v1164 = vmul.f32 %v1127, %v1132
      %v1165 = vmul.f32 %v1128, %v1132
      %v1166 = vadd.f32 %v1065, %v1134
      %v1167 = vadd.f32 %v1066, %v1135
      %v1168 = vadd.f32 %v1067, %v1136
      %v1169 = vadd.f32 %v1068, %v1137
      %v1170 = vadd.f32 %v1069, %v1138
      %v1171 = vadd.f32 %v1070, %v1139
      %v1172 = vadd.f32 %v1071, %v1140
      %v1173 = vadd.f32 %v1072, %v1141
      %v1174 = vadd.f32 %v1073, %v1142
      %v1175 = vadd.f32 %v1074, %v1143
      %v1176 = vadd.f32 %v1075, %v1144
      %v1177 = vadd.f32 %v1076, %v1145
      %v1178 = vadd.f32 %v1077, %v1146
      %v1179 = vadd.f32 %v1078, %v1147
      %v1180 = vadd.f32 %v1079, %v1148
      %v1181 = vadd.f32 %v1080, %v1149
      %v1182 = vadd.f32 %v1081, %v1150
      %v1183 = vadd.f32 %v1082, %v1151
      %v1184 = vadd.f32 %v1083, %v1152
      %v1185 = vadd.f32 %v1084, %v1153
      %v1186 = vadd.f32 %v1085, %v1154
      %v1187 = vadd.f32 %v1086, %v1155
      %v1188 = vadd.f32 %v1087, %v1156
      %v1189 = vadd.f32 %v1088, %v1157
      %v1190 = vadd.f32 %v1089, %v1158
      %v1191 = vadd.f32 %v1090, %v1159
      %v1192 = vadd.f32 %v1091, %v1160
      %v1193 = vadd.f32 %v1092, %v1161
      %v1194 = vadd.f32 %v1093, %v1162
      %v1195 = vadd.f32 %v1094, %v1163
      %v1196 = vadd.f32 %v1095, %v1164
      %v1197 = vadd.f32 %v1096, %v1165
      %v1198 = vld [vmem:[%s995 + $0x2] sm:$0xff]
      %v1199 = vld [vmem:[%s995 + $0xa] sm:$0xff]
      %v1200 = vld [vmem:[%s995 + $0x1a] sm:$0xff]
      %v1201 = vld [vmem:[%s995 + $0x22] sm:$0xff]
      %v1202 = vld [vmem:[%s995 + $0x32] sm:$0xff]
      %v1203 = vld [vmem:[%s995 + $0x3a] sm:$0xff]
      %v1204 = vld [vmem:[%s995 + $0x4a] sm:$0xff]
      %v1205 = vld [vmem:[%s995 + $0x52] sm:$0xff]
      %v1206 = vld [vmem:[%s995 + $0x62] sm:$0xff]
      %v1207 = vld [vmem:[%s995 + $0x6a] sm:$0xff]
      %v1208 = vld [vmem:[%s995 + $0x7a] sm:$0xff]
      %v1209 = vld [vmem:[%s995 + $0x82] sm:$0xff]
      %v1210 = vld [vmem:[%s995 + $0x92] sm:$0xff]
      %v1211 = vld [vmem:[%s995 + $0x9a] sm:$0xff]
      %v1212 = vld [vmem:[%s995 + $0xaa] sm:$0xff]
      %v1213 = vld [vmem:[%s995 + $0xb2] sm:$0xff]
      %v1214 = vld [vmem:[%s995 + $0xc2] sm:$0xff]
      %v1215 = vld [vmem:[%s995 + $0xca] sm:$0xff]
      %v1216 = vld [vmem:[%s995 + $0xda] sm:$0xff]
      %v1217 = vld [vmem:[%s995 + $0xe2] sm:$0xff]
      %v1218 = vld [vmem:[%s995 + $0xf2] sm:$0xff]
      %v1219 = vld [vmem:[%s995 + $0xfa] sm:$0xff]
      %v1220 = vld [vmem:[%s995 + $0x10a] sm:$0xff]
      %v1221 = vld [vmem:[%s995 + $0x112] sm:$0xff]
      %v1222 = vld [vmem:[%s995 + $0x122] sm:$0xff]
      %v1223 = vld [vmem:[%s995 + $0x12a] sm:$0xff]
      %v1224 = vld [vmem:[%s995 + $0x13a] sm:$0xff]
      %v1225 = vld [vmem:[%s995 + $0x142] sm:$0xff]
      %v1226 = vld [vmem:[%s995 + $0x152] sm:$0xff]
      %v1227 = vld [vmem:[%s995 + $0x15a] sm:$0xff]
      %v1228 = vld [vmem:[%s995 + $0x16a] sm:$0xff]
      %v1229 = vld [vmem:[%s995 + $0x172] sm:$0xff]
      %s1230 = scalar_lea.vmem %s1, 8
      %v1231 = vld [vmem:[%s1230] sm:$0x1]
      %v1233 = vperm.slane %v1231, 0
      %v1235 = vmul.f32 %v1198, %v1233
      %v1236 = vmul.f32 %v1199, %v1233
      %v1237 = vmul.f32 %v1200, %v1233
      %v1238 = vmul.f32 %v1201, %v1233
      %v1239 = vmul.f32 %v1202, %v1233
      %v1240 = vmul.f32 %v1203, %v1233
      %v1241 = vmul.f32 %v1204, %v1233
      %v1242 = vmul.f32 %v1205, %v1233
      %v1243 = vmul.f32 %v1206, %v1233
      %v1244 = vmul.f32 %v1207, %v1233
      %v1245 = vmul.f32 %v1208, %v1233
      %v1246 = vmul.f32 %v1209, %v1233
      %v1247 = vmul.f32 %v1210, %v1233
      %v1248 = vmul.f32 %v1211, %v1233
      %v1249 = vmul.f32 %v1212, %v1233
      %v1250 = vmul.f32 %v1213, %v1233
      %v1251 = vmul.f32 %v1214, %v1233
      %v1252 = vmul.f32 %v1215, %v1233
      %v1253 = vmul.f32 %v1216, %v1233
      %v1254 = vmul.f32 %v1217, %v1233
      %v1255 = vmul.f32 %v1218, %v1233
      %v1256 = vmul.f32 %v1219, %v1233
      %v1257 = vmul.f32 %v1220, %v1233
      %v1258 = vmul.f32 %v1221, %v1233
      %v1259 = vmul.f32 %v1222, %v1233
      %v1260 = vmul.f32 %v1223, %v1233
      %v1261 = vmul.f32 %v1224, %v1233
      %v1262 = vmul.f32 %v1225, %v1233
      %v1263 = vmul.f32 %v1226, %v1233
      %v1264 = vmul.f32 %v1227, %v1233
      %v1265 = vmul.f32 %v1228, %v1233
      %v1266 = vmul.f32 %v1229, %v1233
      %v1267 = vadd.f32 %v1166, %v1235
      %v1268 = vadd.f32 %v1167, %v1236
      %v1269 = vadd.f32 %v1168, %v1237
      %v1270 = vadd.f32 %v1169, %v1238
      %v1271 = vadd.f32 %v1170, %v1239
      %v1272 = vadd.f32 %v1171, %v1240
      %v1273 = vadd.f32 %v1172, %v1241
      %v1274 = vadd.f32 %v1173, %v1242
      %v1275 = vadd.f32 %v1174, %v1243
      %v1276 = vadd.f32 %v1175, %v1244
      %v1277 = vadd.f32 %v1176, %v1245
      %v1278 = vadd.f32 %v1177, %v1246
      %v1279 = vadd.f32 %v1178, %v1247
      %v1280 = vadd.f32 %v1179, %v1248
      %v1281 = vadd.f32 %v1180, %v1249
      %v1282 = vadd.f32 %v1181, %v1250
      %v1283 = vadd.f32 %v1182, %v1251
      %v1284 = vadd.f32 %v1183, %v1252
      %v1285 = vadd.f32 %v1184, %v1253
      %v1286 = vadd.f32 %v1185, %v1254
      %v1287 = vadd.f32 %v1186, %v1255
      %v1288 = vadd.f32 %v1187, %v1256
      %v1289 = vadd.f32 %v1188, %v1257
      %v1290 = vadd.f32 %v1189, %v1258
      %v1291 = vadd.f32 %v1190, %v1259
      %v1292 = vadd.f32 %v1191, %v1260
      %v1293 = vadd.f32 %v1192, %v1261
      %v1294 = vadd.f32 %v1193, %v1262
      %v1295 = vadd.f32 %v1194, %v1263
      %v1296 = vadd.f32 %v1195, %v1264
      %v1297 = vadd.f32 %v1196, %v1265
      %v1298 = vadd.f32 %v1197, %v1266
      %v1299 = vld [vmem:[%s2] sm:$0xf]
      %v1300 = vld [vmem:[%s3] sm:$0x1]
      %v1302 = vperm.slane %v1300, 0
      %v1305 = vsel %vm279, %v1267, 0
      %v1308 = vsel %vm279, %v1268, 0
      %v1311 = vsel %vm279, %v1269, 0
      %v1314 = vsel %vm279, %v1270, 0
      %v1317 = vsel %vm279, %v1271, 0
      %v1320 = vsel %vm279, %v1272, 0
      %v1323 = vsel %vm279, %v1273, 0
      %v1326 = vsel %vm279, %v1274, 0
      %v1329 = vsel %vm279, %v1275, 0
      %v1332 = vsel %vm279, %v1276, 0
      %v1335 = vsel %vm279, %v1277, 0
      %v1338 = vsel %vm279, %v1278, 0
      %v1341 = vsel %vm279, %v1279, 0
      %v1344 = vsel %vm279, %v1280, 0
      %v1347 = vsel %vm279, %v1281, 0
      %v1350 = vsel %vm279, %v1282, 0
      %v1353 = vsel %vm279, %v1283, 0
      %v1356 = vsel %vm279, %v1284, 0
      %v1359 = vsel %vm279, %v1285, 0
      %v1362 = vsel %vm279, %v1286, 0
      %v1365 = vsel %vm279, %v1287, 0
      %v1368 = vsel %vm279, %v1288, 0
      %v1371 = vsel %vm279, %v1289, 0
      %v1374 = vsel %vm279, %v1290, 0
      %v1377 = vsel %vm279, %v1291, 0
      %v1380 = vsel %vm279, %v1292, 0
      %v1383 = vsel %vm279, %v1293, 0
      %v1386 = vsel %vm279, %v1294, 0
      %v1389 = vsel %vm279, %v1295, 0
      %v1392 = vsel %vm279, %v1296, 0
      %v1395 = vsel %vm279, %v1297, 0
      %v1398 = vsel %vm279, %v1298, 0
      %vm1400 = vcmask 1043456
      %v1402 = vsel %vm1400, %v1299, 0
      %1404 = vmatpush.msra.mxu0 0.0
      %1405 = vmatpush.msra.mxu0 0.0
      %1406 = vmatpush.msra.mxu0 0.0
      %1407 = vmatpush.msra.mxu0 0.0
      %1408 = vmatpush.msra.mxu0 0.0
      %1409 = vmatpush.msra.mxu0 0.0
      %1410 = vmatpush.msra.mxu0 0.0
      %1411 = vmatpush.msra.mxu0 0.0
      %1412 = vmatpush.msra.mxu0 0.0
      %1413 = vmatpush.msra.mxu0 0.0
      %1414 = vmatpush.msra.mxu0 0.0
      %1415 = vmatpush.msra.mxu0 0.0
      %1416 = vmatpush.msra.mxu0 0.0
      %1417 = vmatpush.msra.mxu0 0.0
      %1418 = vmatpush.msra.mxu0 0.0
      %1419 = vmatpush.msra.mxu0 %v1402
      %1420 = vmatmul.f32.gmra.mxu0 %v1305
      %v1421 = vpop.f32.mrf.mxu0
      %v1422 = vadd.f32 %v1302, %v1421
      %1423 = vmatmul.f32.gmra.mxu0 %v1308
      %v1424 = vpop.f32.mrf.mxu0
      %v1425 = vadd.f32 %v1302, %v1424
      %1426 = vmatmul.f32.gmra.mxu0 %v1311
      %v1427 = vpop.f32.mrf.mxu0
      %v1428 = vadd.f32 %v1302, %v1427
      %1429 = vmatmul.f32.gmra.mxu0 %v1314
      %v1430 = vpop.f32.mrf.mxu0
      %v1431 = vadd.f32 %v1302, %v1430
      %1432 = vmatmul.f32.gmra.mxu0 %v1317
      %v1433 = vpop.f32.mrf.mxu0
      %v1434 = vadd.f32 %v1302, %v1433
      %1435 = vmatmul.f32.gmra.mxu0 %v1320
      %v1436 = vpop.f32.mrf.mxu0
      %v1437 = vadd.f32 %v1302, %v1436
      %1438 = vmatmul.f32.gmra.mxu0 %v1323
      %v1439 = vpop.f32.mrf.mxu0
      %v1440 = vadd.f32 %v1302, %v1439
      %1441 = vmatmul.f32.gmra.mxu0 %v1326
      %v1442 = vpop.f32.mrf.mxu0
      %v1443 = vadd.f32 %v1302, %v1442
      %1444 = vmatmul.f32.gmra.mxu0 %v1329
      %v1445 = vpop.f32.mrf.mxu0
      %v1446 = vadd.f32 %v1302, %v1445
      %1447 = vmatmul.f32.gmra.mxu0 %v1332
      %v1448 = vpop.f32.mrf.mxu0
      %v1449 = vadd.f32 %v1302, %v1448
      %1450 = vmatmul.f32.gmra.mxu0 %v1335
      %v1451 = vpop.f32.mrf.mxu0
      %v1452 = vadd.f32 %v1302, %v1451
      %1453 = vmatmul.f32.gmra.mxu0 %v1338
      %v1454 = vpop.f32.mrf.mxu0
      %v1455 = vadd.f32 %v1302, %v1454
      %1456 = vmatmul.f32.gmra.mxu0 %v1341
      %v1457 = vpop.f32.mrf.mxu0
      %v1458 = vadd.f32 %v1302, %v1457
      %1459 = vmatmul.f32.gmra.mxu0 %v1344
      %v1460 = vpop.f32.mrf.mxu0
      %v1461 = vadd.f32 %v1302, %v1460
      %1462 = vmatmul.f32.gmra.mxu0 %v1347
      %v1463 = vpop.f32.mrf.mxu0
      %v1464 = vadd.f32 %v1302, %v1463
      %1465 = vmatmul.f32.gmra.mxu0 %v1350
      %v1466 = vpop.f32.mrf.mxu0
      %v1467 = vadd.f32 %v1302, %v1466
      %1468 = vmatmul.f32.gmra.mxu0 %v1353
      %v1469 = vpop.f32.mrf.mxu0
      %v1470 = vadd.f32 %v1302, %v1469
      %1471 = vmatmul.f32.gmra.mxu0 %v1356
      %v1472 = vpop.f32.mrf.mxu0
      %v1473 = vadd.f32 %v1302, %v1472
      %1474 = vmatmul.f32.gmra.mxu0 %v1359
      %v1475 = vpop.f32.mrf.mxu0
      %v1476 = vadd.f32 %v1302, %v1475
      %1477 = vmatmul.f32.gmra.mxu0 %v1362
      %v1478 = vpop.f32.mrf.mxu0
      %v1479 = vadd.f32 %v1302, %v1478
      %1480 = vmatmul.f32.gmra.mxu0 %v1365
      %v1481 = vpop.f32.mrf.mxu0
      %v1482 = vadd.f32 %v1302, %v1481
      %1483 = vmatmul.f32.gmra.mxu0 %v1368
      %v1484 = vpop.f32.mrf.mxu0
      %v1485 = vadd.f32 %v1302, %v1484
      %1486 = vmatmul.f32.gmra.mxu0 %v1371
      %v1487 = vpop.f32.mrf.mxu0
      %v1488 = vadd.f32 %v1302, %v1487
      %1489 = vmatmul.f32.gmra.mxu0 %v1374
      %v1490 = vpop.f32.mrf.mxu0
      %v1491 = vadd.f32 %v1302, %v1490
      %1492 = vmatmul.f32.gmra.mxu0 %v1377
      %v1493 = vpop.f32.mrf.mxu0
      %v1494 = vadd.f32 %v1302, %v1493
      %1495 = vmatmul.f32.gmra.mxu0 %v1380
      %v1496 = vpop.f32.mrf.mxu0
      %v1497 = vadd.f32 %v1302, %v1496
      %1498 = vmatmul.f32.gmra.mxu0 %v1383
      %v1499 = vpop.f32.mrf.mxu0
      %v1500 = vadd.f32 %v1302, %v1499
      %1501 = vmatmul.f32.gmra.mxu0 %v1386
      %v1502 = vpop.f32.mrf.mxu0
      %v1503 = vadd.f32 %v1302, %v1502
      %1504 = vmatmul.f32.gmra.mxu0 %v1389
      %v1505 = vpop.f32.mrf.mxu0
      %v1506 = vadd.f32 %v1302, %v1505
      %1507 = vmatmul.f32.gmra.mxu0 %v1392
      %v1508 = vpop.f32.mrf.mxu0
      %v1509 = vadd.f32 %v1302, %v1508
      %1510 = vmatmul.f32.gmra.mxu0 %v1395
      %v1511 = vpop.f32.mrf.mxu0
      %v1512 = vadd.f32 %v1302, %v1511
      %1513 = vmatmul.f32.gmra.mxu0 %v1398
      %v1514 = vpop.f32.mrf.mxu0
      %v1515 = vadd.f32 %v1302, %v1514
      %1516 = vdwg.mxu0
      %v1517 = vmax.f32 %v1422, 0.0
      %v1518 = vmax.f32 %v1425, 0.0
      %v1519 = vmax.f32 %v1428, 0.0
      %v1520 = vmax.f32 %v1431, 0.0
      %v1521 = vmax.f32 %v1434, 0.0
      %v1522 = vmax.f32 %v1437, 0.0
      %v1523 = vmax.f32 %v1440, 0.0
      %v1524 = vmax.f32 %v1443, 0.0
      %v1525 = vmax.f32 %v1446, 0.0
      %v1526 = vmax.f32 %v1449, 0.0
      %v1527 = vmax.f32 %v1452, 0.0
      %v1528 = vmax.f32 %v1455, 0.0
      %v1529 = vmax.f32 %v1458, 0.0
      %v1530 = vmax.f32 %v1461, 0.0
      %v1531 = vmax.f32 %v1464, 0.0
      %v1532 = vmax.f32 %v1467, 0.0
      %v1533 = vmax.f32 %v1470, 0.0
      %v1534 = vmax.f32 %v1473, 0.0
      %v1535 = vmax.f32 %v1476, 0.0
      %v1536 = vmax.f32 %v1479, 0.0
      %v1537 = vmax.f32 %v1482, 0.0
      %v1538 = vmax.f32 %v1485, 0.0
      %v1539 = vmax.f32 %v1488, 0.0
      %v1540 = vmax.f32 %v1491, 0.0
      %v1541 = vmax.f32 %v1494, 0.0
      %v1542 = vmax.f32 %v1497, 0.0
      %v1543 = vmax.f32 %v1500, 0.0
      %v1544 = vmax.f32 %v1503, 0.0
      %v1545 = vmax.f32 %v1506, 0.0
      %v1546 = vmax.f32 %v1509, 0.0
      %v1547 = vmax.f32 %v1512, 0.0
      %v1548 = vmax.f32 %v1515, 0.0
      %vm1549 = vcmask 64512
      %1550 = vst.msk [vmem:[#allocation3] sm:$0xff] %vm1549, 0.0
      %1551 = vst.msk [vmem:[#allocation3 + $0x8] sm:$0xff] %vm1549, 0.0
      %vm1552 = vcmask 58368
      %1553 = vst.msk [vmem:[#allocation3 + $0x10] sm:$0x3] %vm1552, 0.0
      %s1554 = scalar_lea.vmem [#allocation3], 408
      %1555 = vst.msk [vmem:[%s1554] sm:$0xff] %vm1549, 0.0
      %1556 = vst.msk [vmem:[%s1554 + $0x8] sm:$0xff] %vm1549, 0.0
      %1557 = vst.msk [vmem:[%s1554 + $0x10] sm:$0x3] %vm1552, 0.0
      %vm1558 = vcmask 57344
      %1559 = vst.msk [vmem:[#allocation3] sm:$0x1] %vm1558, 0.0
      %1560 = vst.msk [vmem:[#allocation3 + $0x18] sm:$0x1] %vm1558, 0.0
      %1561 = vst.msk [vmem:[#allocation3 + $0x30] sm:$0x1] %vm1558, 0.0
      %1562 = vst.msk [vmem:[#allocation3 + $0x48] sm:$0x1] %vm1558, 0.0
      %1563 = vst.msk [vmem:[#allocation3 + $0x60] sm:$0x1] %vm1558, 0.0
      %1564 = vst.msk [vmem:[#allocation3 + $0x78] sm:$0x1] %vm1558, 0.0
      %1565 = vst.msk [vmem:[#allocation3 + $0x90] sm:$0x1] %vm1558, 0.0
      %1566 = vst.msk [vmem:[#allocation3 + $0xa8] sm:$0x1] %vm1558, 0.0
      %1567 = vst.msk [vmem:[#allocation3 + $0xc0] sm:$0x1] %vm1558, 0.0
      %1568 = vst.msk [vmem:[#allocation3 + $0xd8] sm:$0x1] %vm1558, 0.0
      %1569 = vst.msk [vmem:[#allocation3 + $0xf0] sm:$0x1] %vm1558, 0.0
      %1570 = vst.msk [vmem:[#allocation3 + $0x108] sm:$0x1] %vm1558, 0.0
      %1571 = vst.msk [vmem:[#allocation3 + $0x120] sm:$0x1] %vm1558, 0.0
      %1572 = vst.msk [vmem:[#allocation3 + $0x138] sm:$0x1] %vm1558, 0.0
      %1573 = vst.msk [vmem:[#allocation3 + $0x150] sm:$0x1] %vm1558, 0.0
      %1574 = vst.msk [vmem:[#allocation3 + $0x168] sm:$0x1] %vm1558, 0.0
      %1575 = vst.msk [vmem:[#allocation3 + $0x180] sm:$0x1] %vm1558, 0.0
      %1576 = vst.msk [vmem:[#allocation3 + $0x198] sm:$0x1] %vm1558, 0.0
      %1577 = vst.msk [vmem:[#allocation3 + $0x11] sm:$0x1] %vm1558, 0.0
      %1578 = vst.msk [vmem:[#allocation3 + $0x29] sm:$0x1] %vm1558, 0.0
      %1579 = vst.msk [vmem:[#allocation3 + $0x41] sm:$0x1] %vm1558, 0.0
      %1580 = vst.msk [vmem:[#allocation3 + $0x59] sm:$0x1] %vm1558, 0.0
      %1581 = vst.msk [vmem:[#allocation3 + $0x71] sm:$0x1] %vm1558, 0.0
      %1582 = vst.msk [vmem:[#allocation3 + $0x89] sm:$0x1] %vm1558, 0.0
      %1583 = vst.msk [vmem:[#allocation3 + $0xa1] sm:$0x1] %vm1558, 0.0
      %1584 = vst.msk [vmem:[#allocation3 + $0xb9] sm:$0x1] %vm1558, 0.0
      %1585 = vst.msk [vmem:[#allocation3 + $0xd1] sm:$0x1] %vm1558, 0.0
      %1586 = vst.msk [vmem:[#allocation3 + $0xe9] sm:$0x1] %vm1558, 0.0
      %1587 = vst.msk [vmem:[#allocation3 + $0x101] sm:$0x1] %vm1558, 0.0
      %1588 = vst.msk [vmem:[#allocation3 + $0x119] sm:$0x1] %vm1558, 0.0
      %1589 = vst.msk [vmem:[#allocation3 + $0x131] sm:$0x1] %vm1558, 0.0
      %1590 = vst.msk [vmem:[#allocation3 + $0x149] sm:$0x1] %vm1558, 0.0
      %1591 = vst.msk [vmem:[#allocation3 + $0x161] sm:$0x1] %vm1558, 0.0
      %1592 = vst.msk [vmem:[#allocation3 + $0x179] sm:$0x1] %vm1558, 0.0
      %1593 = vst.msk [vmem:[#allocation3 + $0x191] sm:$0x1] %vm1558, 0.0
      %1594 = vst.msk [vmem:[#allocation3 + $0x1a9] sm:$0x1] %vm1558, 0.0
      %s1595 = scalar_lea.vmem [#allocation3], 24
      %1596 = vst.msk [vmem:[%s1595 + $0x1] sm:$0xff] %vm1549, %v1517
      %1597 = vst.msk [vmem:[%s1595 + $0x9] sm:$0xff] %vm1549, %v1518
      %1598 = vst.msk [vmem:[%s1595 + $0x19] sm:$0xff] %vm1549, %v1519
      %1599 = vst.msk [vmem:[%s1595 + $0x21] sm:$0xff] %vm1549, %v1520
      %1600 = vst.msk [vmem:[%s1595 + $0x31] sm:$0xff] %vm1549, %v1521
      %1601 = vst.msk [vmem:[%s1595 + $0x39] sm:$0xff] %vm1549, %v1522
      %1602 = vst.msk [vmem:[%s1595 + $0x49] sm:$0xff] %vm1549, %v1523
      %1603 = vst.msk [vmem:[%s1595 + $0x51] sm:$0xff] %vm1549, %v1524
      %1604 = vst.msk [vmem:[%s1595 + $0x61] sm:$0xff] %vm1549, %v1525
      %1605 = vst.msk [vmem:[%s1595 + $0x69] sm:$0xff] %vm1549, %v1526
      %1606 = vst.msk [vmem:[%s1595 + $0x79] sm:$0xff] %vm1549, %v1527
      %1607 = vst.msk [vmem:[%s1595 + $0x81] sm:$0xff] %vm1549, %v1528
      %1608 = vst.msk [vmem:[%s1595 + $0x91] sm:$0xff] %vm1549, %v1529
      %1609 = vst.msk [vmem:[%s1595 + $0x99] sm:$0xff] %vm1549, %v1530
      %1610 = vst.msk [vmem:[%s1595 + $0xa9] sm:$0xff] %vm1549, %v1531
      %1611 = vst.msk [vmem:[%s1595 + $0xb1] sm:$0xff] %vm1549, %v1532
      %1612 = vst.msk [vmem:[%s1595 + $0xc1] sm:$0xff] %vm1549, %v1533
      %1613 = vst.msk [vmem:[%s1595 + $0xc9] sm:$0xff] %vm1549, %v1534
      %1614 = vst.msk [vmem:[%s1595 + $0xd9] sm:$0xff] %vm1549, %v1535
      %1615 = vst.msk [vmem:[%s1595 + $0xe1] sm:$0xff] %vm1549, %v1536
      %1616 = vst.msk [vmem:[%s1595 + $0xf1] sm:$0xff] %vm1549, %v1537
      %1617 = vst.msk [vmem:[%s1595 + $0xf9] sm:$0xff] %vm1549, %v1538
      %1618 = vst.msk [vmem:[%s1595 + $0x109] sm:$0xff] %vm1549, %v1539
      %1619 = vst.msk [vmem:[%s1595 + $0x111] sm:$0xff] %vm1549, %v1540
      %1620 = vst.msk [vmem:[%s1595 + $0x121] sm:$0xff] %vm1549, %v1541
      %1621 = vst.msk [vmem:[%s1595 + $0x129] sm:$0xff] %vm1549, %v1542
      %1622 = vst.msk [vmem:[%s1595 + $0x139] sm:$0xff] %vm1549, %v1543
      %1623 = vst.msk [vmem:[%s1595 + $0x141] sm:$0xff] %vm1549, %v1544
      %1624 = vst.msk [vmem:[%s1595 + $0x151] sm:$0xff] %vm1549, %v1545
      %1625 = vst.msk [vmem:[%s1595 + $0x159] sm:$0xff] %vm1549, %v1546
      %1626 = vst.msk [vmem:[%s1595 + $0x169] sm:$0xff] %vm1549, %v1547
      %1627 = vst.msk [vmem:[%s1595 + $0x171] sm:$0xff] %vm1549, %v1548
      %v1628 = vld [vmem:[#allocation3] sm:$0xff]
      %v1629 = vld [vmem:[#allocation3 + $0x8] sm:$0xff]
      %v1630 = vld [vmem:[#allocation3 + $0x18] sm:$0xff]
      %v1631 = vld [vmem:[#allocation3 + $0x20] sm:$0xff]
      %v1632 = vld [vmem:[#allocation3 + $0x30] sm:$0xff]
      %v1633 = vld [vmem:[#allocation3 + $0x38] sm:$0xff]
      %v1634 = vld [vmem:[#allocation3 + $0x48] sm:$0xff]
      %v1635 = vld [vmem:[#allocation3 + $0x50] sm:$0xff]
      %v1636 = vld [vmem:[#allocation3 + $0x60] sm:$0xff]
      %v1637 = vld [vmem:[#allocation3 + $0x68] sm:$0xff]
      %v1638 = vld [vmem:[#allocation3 + $0x78] sm:$0xff]
      %v1639 = vld [vmem:[#allocation3 + $0x80] sm:$0xff]
      %v1640 = vld [vmem:[#allocation3 + $0x90] sm:$0xff]
      %v1641 = vld [vmem:[#allocation3 + $0x98] sm:$0xff]
      %v1642 = vld [vmem:[#allocation3 + $0xa8] sm:$0xff]
      %v1643 = vld [vmem:[#allocation3 + $0xb0] sm:$0xff]
      %v1644 = vld [vmem:[#allocation3 + $0xc0] sm:$0xff]
      %v1645 = vld [vmem:[#allocation3 + $0xc8] sm:$0xff]
      %v1646 = vld [vmem:[#allocation3 + $0xd8] sm:$0xff]
      %v1647 = vld [vmem:[#allocation3 + $0xe0] sm:$0xff]
      %v1648 = vld [vmem:[#allocation3 + $0xf0] sm:$0xff]
      %v1649 = vld [vmem:[#allocation3 + $0xf8] sm:$0xff]
      %v1650 = vld [vmem:[#allocation3 + $0x108] sm:$0xff]
      %v1651 = vld [vmem:[#allocation3 + $0x110] sm:$0xff]
      %v1652 = vld [vmem:[#allocation3 + $0x120] sm:$0xff]
      %v1653 = vld [vmem:[#allocation3 + $0x128] sm:$0xff]
      %v1654 = vld [vmem:[#allocation3 + $0x138] sm:$0xff]
      %v1655 = vld [vmem:[#allocation3 + $0x140] sm:$0xff]
      %v1656 = vld [vmem:[#allocation3 + $0x150] sm:$0xff]
      %v1657 = vld [vmem:[#allocation3 + $0x158] sm:$0xff]
      %v1658 = vld [vmem:[#allocation3 + $0x168] sm:$0xff]
      %v1659 = vld [vmem:[#allocation3 + $0x170] sm:$0xff]
      %v1660 = vld [vmem:[%s4] sm:$0x1]
      %v1662 = vperm.slane %v1660, 0
      %v1664 = vmul.f32 %v1628, %v1662
      %v1665 = vmul.f32 %v1629, %v1662
      %v1666 = vmul.f32 %v1630, %v1662
      %v1667 = vmul.f32 %v1631, %v1662
      %v1668 = vmul.f32 %v1632, %v1662
      %v1669 = vmul.f32 %v1633, %v1662
      %v1670 = vmul.f32 %v1634, %v1662
      %v1671 = vmul.f32 %v1635, %v1662
      %v1672 = vmul.f32 %v1636, %v1662
      %v1673 = vmul.f32 %v1637, %v1662
      %v1674 = vmul.f32 %v1638, %v1662
      %v1675 = vmul.f32 %v1639, %v1662
      %v1676 = vmul.f32 %v1640, %v1662
      %v1677 = vmul.f32 %v1641, %v1662
      %v1678 = vmul.f32 %v1642, %v1662
      %v1679 = vmul.f32 %v1643, %v1662
      %v1680 = vmul.f32 %v1644, %v1662
      %v1681 = vmul.f32 %v1645, %v1662
      %v1682 = vmul.f32 %v1646, %v1662
      %v1683 = vmul.f32 %v1647, %v1662
      %v1684 = vmul.f32 %v1648, %v1662
      %v1685 = vmul.f32 %v1649, %v1662
      %v1686 = vmul.f32 %v1650, %v1662
      %v1687 = vmul.f32 %v1651, %v1662
      %v1688 = vmul.f32 %v1652, %v1662
      %v1689 = vmul.f32 %v1653, %v1662
      %v1690 = vmul.f32 %v1654, %v1662
      %v1691 = vmul.f32 %v1655, %v1662
      %v1692 = vmul.f32 %v1656, %v1662
      %v1693 = vmul.f32 %v1657, %v1662
      %v1694 = vmul.f32 %v1658, %v1662
      %v1695 = vmul.f32 %v1659, %v1662
      %v1696 = vadd.f32 %v1664, 0.0
      %v1697 = vadd.f32 %v1665, 0.0
      %v1698 = vadd.f32 %v1666, 0.0
      %v1699 = vadd.f32 %v1667, 0.0
      %v1700 = vadd.f32 %v1668, 0.0
      %v1701 = vadd.f32 %v1669, 0.0
      %v1702 = vadd.f32 %v1670, 0.0
      %v1703 = vadd.f32 %v1671, 0.0
      %v1704 = vadd.f32 %v1672, 0.0
      %v1705 = vadd.f32 %v1673, 0.0
      %v1706 = vadd.f32 %v1674, 0.0
      %v1707 = vadd.f32 %v1675, 0.0
      %v1708 = vadd.f32 %v1676, 0.0
      %v1709 = vadd.f32 %v1677, 0.0
      %v1710 = vadd.f32 %v1678, 0.0
      %v1711 = vadd.f32 %v1679, 0.0
      %v1712 = vadd.f32 %v1680, 0.0
      %v1713 = vadd.f32 %v1681, 0.0
      %v1714 = vadd.f32 %v1682, 0.0
      %v1715 = vadd.f32 %v1683, 0.0
      %v1716 = vadd.f32 %v1684, 0.0
      %v1717 = vadd.f32 %v1685, 0.0
      %v1718 = vadd.f32 %v1686, 0.0
      %v1719 = vadd.f32 %v1687, 0.0
      %v1720 = vadd.f32 %v1688, 0.0
      %v1721 = vadd.f32 %v1689, 0.0
      %v1722 = vadd.f32 %v1690, 0.0
      %v1723 = vadd.f32 %v1691, 0.0
      %v1724 = vadd.f32 %v1692, 0.0
      %v1725 = vadd.f32 %v1693, 0.0
      %v1726 = vadd.f32 %v1694, 0.0
      %v1727 = vadd.f32 %v1695, 0.0
      %v1728 = vld [vmem:[#allocation3 + $0x1] sm:$0xff]
      %v1729 = vld [vmem:[#allocation3 + $0x9] sm:$0xff]
      %v1730 = vld [vmem:[#allocation3 + $0x19] sm:$0xff]
      %v1731 = vld [vmem:[#allocation3 + $0x21] sm:$0xff]
      %v1732 = vld [vmem:[#allocation3 + $0x31] sm:$0xff]
      %v1733 = vld [vmem:[#allocation3 + $0x39] sm:$0xff]
      %v1734 = vld [vmem:[#allocation3 + $0x49] sm:$0xff]
      %v1735 = vld [vmem:[#allocation3 + $0x51] sm:$0xff]
      %v1736 = vld [vmem:[#allocation3 + $0x61] sm:$0xff]
      %v1737 = vld [vmem:[#allocation3 + $0x69] sm:$0xff]
      %v1738 = vld [vmem:[#allocation3 + $0x79] sm:$0xff]
      %v1739 = vld [vmem:[#allocation3 + $0x81] sm:$0xff]
      %v1740 = vld [vmem:[#allocation3 + $0x91] sm:$0xff]
      %v1741 = vld [vmem:[#allocation3 + $0x99] sm:$0xff]
      %v1742 = vld [vmem:[#allocation3 + $0xa9] sm:$0xff]
      %v1743 = vld [vmem:[#allocation3 + $0xb1] sm:$0xff]
      %v1744 = vld [vmem:[#allocation3 + $0xc1] sm:$0xff]
      %v1745 = vld [vmem:[#allocation3 + $0xc9] sm:$0xff]
      %v1746 = vld [vmem:[#allocation3 + $0xd9] sm:$0xff]
      %v1747 = vld [vmem:[#allocation3 + $0xe1] sm:$0xff]
      %v1748 = vld [vmem:[#allocation3 + $0xf1] sm:$0xff]
      %v1749 = vld [vmem:[#allocation3 + $0xf9] sm:$0xff]
      %v1750 = vld [vmem:[#allocation3 + $0x109] sm:$0xff]
      %v1751 = vld [vmem:[#allocation3 + $0x111] sm:$0xff]
      %v1752 = vld [vmem:[#allocation3 + $0x121] sm:$0xff]
      %v1753 = vld [vmem:[#allocation3 + $0x129] sm:$0xff]
      %v1754 = vld [vmem:[#allocation3 + $0x139] sm:$0xff]
      %v1755 = vld [vmem:[#allocation3 + $0x141] sm:$0xff]
      %v1756 = vld [vmem:[#allocation3 + $0x151] sm:$0xff]
      %v1757 = vld [vmem:[#allocation3 + $0x159] sm:$0xff]
      %v1758 = vld [vmem:[#allocation3 + $0x169] sm:$0xff]
      %v1759 = vld [vmem:[#allocation3 + $0x171] sm:$0xff]
      %s1760 = scalar_lea.vmem %s4, 1
      %v1761 = vld [vmem:[%s1760] sm:$0x1]
      %v1763 = vperm.slane %v1761, 0
      %v1765 = vmul.f32 %v1728, %v1763
      %v1766 = vmul.f32 %v1729, %v1763
      %v1767 = vmul.f32 %v1730, %v1763
      %v1768 = vmul.f32 %v1731, %v1763
      %v1769 = vmul.f32 %v1732, %v1763
      %v1770 = vmul.f32 %v1733, %v1763
      %v1771 = vmul.f32 %v1734, %v1763
      %v1772 = vmul.f32 %v1735, %v1763
      %v1773 = vmul.f32 %v1736, %v1763
      %v1774 = vmul.f32 %v1737, %v1763
      %v1775 = vmul.f32 %v1738, %v1763
      %v1776 = vmul.f32 %v1739, %v1763
      %v1777 = vmul.f32 %v1740, %v1763
      %v1778 = vmul.f32 %v1741, %v1763
      %v1779 = vmul.f32 %v1742, %v1763
      %v1780 = vmul.f32 %v1743, %v1763
      %v1781 = vmul.f32 %v1744, %v1763
      %v1782 = vmul.f32 %v1745, %v1763
      %v1783 = vmul.f32 %v1746, %v1763
      %v1784 = vmul.f32 %v1747, %v1763
      %v1785 = vmul.f32 %v1748, %v1763
      %v1786 = vmul.f32 %v1749, %v1763
      %v1787 = vmul.f32 %v1750, %v1763
      %v1788 = vmul.f32 %v1751, %v1763
      %v1789 = vmul.f32 %v1752, %v1763
      %v1790 = vmul.f32 %v1753, %v1763
      %v1791 = vmul.f32 %v1754, %v1763
      %v1792 = vmul.f32 %v1755, %v1763
      %v1793 = vmul.f32 %v1756, %v1763
      %v1794 = vmul.f32 %v1757, %v1763
      %v1795 = vmul.f32 %v1758, %v1763
      %v1796 = vmul.f32 %v1759, %v1763
      %v1797 = vadd.f32 %v1696, %v1765
      %v1798 = vadd.f32 %v1697, %v1766
      %v1799 = vadd.f32 %v1698, %v1767
      %v1800 = vadd.f32 %v1699, %v1768
      %v1801 = vadd.f32 %v1700, %v1769
      %v1802 = vadd.f32 %v1701, %v1770
      %v1803 = vadd.f32 %v1702, %v1771
      %v1804 = vadd.f32 %v1703, %v1772
      %v1805 = vadd.f32 %v1704, %v1773
      %v1806 = vadd.f32 %v1705, %v1774
      %v1807 = vadd.f32 %v1706, %v1775
      %v1808 = vadd.f32 %v1707, %v1776
      %v1809 = vadd.f32 %v1708, %v1777
      %v1810 = vadd.f32 %v1709, %v1778
      %v1811 = vadd.f32 %v1710, %v1779
      %v1812 = vadd.f32 %v1711, %v1780
      %v1813 = vadd.f32 %v1712, %v1781
      %v1814 = vadd.f32 %v1713, %v1782
      %v1815 = vadd.f32 %v1714, %v1783
      %v1816 = vadd.f32 %v1715, %v1784
      %v1817 = vadd.f32 %v1716, %v1785
      %v1818 = vadd.f32 %v1717, %v1786
      %v1819 = vadd.f32 %v1718, %v1787
      %v1820 = vadd.f32 %v1719, %v1788
      %v1821 = vadd.f32 %v1720, %v1789
      %v1822 = vadd.f32 %v1721, %v1790
      %v1823 = vadd.f32 %v1722, %v1791
      %v1824 = vadd.f32 %v1723, %v1792
      %v1825 = vadd.f32 %v1724, %v1793
      %v1826 = vadd.f32 %v1725, %v1794
      %v1827 = vadd.f32 %v1726, %v1795
      %v1828 = vadd.f32 %v1727, %v1796
      %v1829 = vld [vmem:[#allocation3 + $0x2] sm:$0xff]
      %v1830 = vld [vmem:[#allocation3 + $0xa] sm:$0xff]
      %v1831 = vld [vmem:[#allocation3 + $0x1a] sm:$0xff]
      %v1832 = vld [vmem:[#allocation3 + $0x22] sm:$0xff]
      %v1833 = vld [vmem:[#allocation3 + $0x32] sm:$0xff]
      %v1834 = vld [vmem:[#allocation3 + $0x3a] sm:$0xff]
      %v1835 = vld [vmem:[#allocation3 + $0x4a] sm:$0xff]
      %v1836 = vld [vmem:[#allocation3 + $0x52] sm:$0xff]
      %v1837 = vld [vmem:[#allocation3 + $0x62] sm:$0xff]
      %v1838 = vld [vmem:[#allocation3 + $0x6a] sm:$0xff]
      %v1839 = vld [vmem:[#allocation3 + $0x7a] sm:$0xff]
      %v1840 = vld [vmem:[#allocation3 + $0x82] sm:$0xff]
      %v1841 = vld [vmem:[#allocation3 + $0x92] sm:$0xff]
      %v1842 = vld [vmem:[#allocation3 + $0x9a] sm:$0xff]
      %v1843 = vld [vmem:[#allocation3 + $0xaa] sm:$0xff]
      %v1844 = vld [vmem:[#allocation3 + $0xb2] sm:$0xff]
      %v1845 = vld [vmem:[#allocation3 + $0xc2] sm:$0xff]
      %v1846 = vld [vmem:[#allocation3 + $0xca] sm:$0xff]
      %v1847 = vld [vmem:[#allocation3 + $0xda] sm:$0xff]
      %v1848 = vld [vmem:[#allocation3 + $0xe2] sm:$0xff]
      %v1849 = vld [vmem:[#allocation3 + $0xf2] sm:$0xff]
      %v1850 = vld [vmem:[#allocation3 + $0xfa] sm:$0xff]
      %v1851 = vld [vmem:[#allocation3 + $0x10a] sm:$0xff]
      %v1852 = vld [vmem:[#allocation3 + $0x112] sm:$0xff]
      %v1853 = vld [vmem:[#allocation3 + $0x122] sm:$0xff]
      %v1854 = vld [vmem:[#allocation3 + $0x12a] sm:$0xff]
      %v1855 = vld [vmem:[#allocation3 + $0x13a] sm:$0xff]
      %v1856 = vld [vmem:[#allocation3 + $0x142] sm:$0xff]
      %v1857 = vld [vmem:[#allocation3 + $0x152] sm:$0xff]
      %v1858 = vld [vmem:[#allocation3 + $0x15a] sm:$0xff]
      %v1859 = vld [vmem:[#allocation3 + $0x16a] sm:$0xff]
      %v1860 = vld [vmem:[#allocation3 + $0x172] sm:$0xff]
      %s1861 = scalar_lea.vmem %s4, 2
      %v1862 = vld [vmem:[%s1861] sm:$0x1]
      %v1864 = vperm.slane %v1862, 0
      %v1866 = vmul.f32 %v1829, %v1864
      %v1867 = vmul.f32 %v1830, %v1864
      %v1868 = vmul.f32 %v1831, %v1864
      %v1869 = vmul.f32 %v1832, %v1864
      %v1870 = vmul.f32 %v1833, %v1864
      %v1871 = vmul.f32 %v1834, %v1864
      %v1872 = vmul.f32 %v1835, %v1864
      %v1873 = vmul.f32 %v1836, %v1864
      %v1874 = vmul.f32 %v1837, %v1864
      %v1875 = vmul.f32 %v1838, %v1864
      %v1876 = vmul.f32 %v1839, %v1864
      %v1877 = vmul.f32 %v1840, %v1864
      %v1878 = vmul.f32 %v1841, %v1864
      %v1879 = vmul.f32 %v1842, %v1864
      %v1880 = vmul.f32 %v1843, %v1864
      %v1881 = vmul.f32 %v1844, %v1864
      %v1882 = vmul.f32 %v1845, %v1864
      %v1883 = vmul.f32 %v1846, %v1864
      %v1884 = vmul.f32 %v1847, %v1864
      %v1885 = vmul.f32 %v1848, %v1864
      %v1886 = vmul.f32 %v1849, %v1864
      %v1887 = vmul.f32 %v1850, %v1864
      %v1888 = vmul.f32 %v1851, %v1864
      %v1889 = vmul.f32 %v1852, %v1864
      %v1890 = vmul.f32 %v1853, %v1864
      %v1891 = vmul.f32 %v1854, %v1864
      %v1892 = vmul.f32 %v1855, %v1864
      %v1893 = vmul.f32 %v1856, %v1864
      %v1894 = vmul.f32 %v1857, %v1864
      %v1895 = vmul.f32 %v1858, %v1864
      %v1896 = vmul.f32 %v1859, %v1864
      %v1897 = vmul.f32 %v1860, %v1864
      %v1898 = vadd.f32 %v1797, %v1866
      %v1899 = vadd.f32 %v1798, %v1867
      %v1900 = vadd.f32 %v1799, %v1868
      %v1901 = vadd.f32 %v1800, %v1869
      %v1902 = vadd.f32 %v1801, %v1870
      %v1903 = vadd.f32 %v1802, %v1871
      %v1904 = vadd.f32 %v1803, %v1872
      %v1905 = vadd.f32 %v1804, %v1873
      %v1906 = vadd.f32 %v1805, %v1874
      %v1907 = vadd.f32 %v1806, %v1875
      %v1908 = vadd.f32 %v1807, %v1876
      %v1909 = vadd.f32 %v1808, %v1877
      %v1910 = vadd.f32 %v1809, %v1878
      %v1911 = vadd.f32 %v1810, %v1879
      %v1912 = vadd.f32 %v1811, %v1880
      %v1913 = vadd.f32 %v1812, %v1881
      %v1914 = vadd.f32 %v1813, %v1882
      %v1915 = vadd.f32 %v1814, %v1883
      %v1916 = vadd.f32 %v1815, %v1884
      %v1917 = vadd.f32 %v1816, %v1885
      %v1918 = vadd.f32 %v1817, %v1886
      %v1919 = vadd.f32 %v1818, %v1887
      %v1920 = vadd.f32 %v1819, %v1888
      %v1921 = vadd.f32 %v1820, %v1889
      %v1922 = vadd.f32 %v1821, %v1890
      %v1923 = vadd.f32 %v1822, %v1891
      %v1924 = vadd.f32 %v1823, %v1892
      %v1925 = vadd.f32 %v1824, %v1893
      %v1926 = vadd.f32 %v1825, %v1894
      %v1927 = vadd.f32 %v1826, %v1895
      %v1928 = vadd.f32 %v1827, %v1896
      %v1929 = vadd.f32 %v1828, %v1897
      %v1930 = vld [vmem:[%s1595] sm:$0xff]
      %v1931 = vld [vmem:[%s1595 + $0x8] sm:$0xff]
      %v1932 = vld [vmem:[%s1595 + $0x18] sm:$0xff]
      %v1933 = vld [vmem:[%s1595 + $0x20] sm:$0xff]
      %v1934 = vld [vmem:[%s1595 + $0x30] sm:$0xff]
      %v1935 = vld [vmem:[%s1595 + $0x38] sm:$0xff]
      %v1936 = vld [vmem:[%s1595 + $0x48] sm:$0xff]
      %v1937 = vld [vmem:[%s1595 + $0x50] sm:$0xff]
      %v1938 = vld [vmem:[%s1595 + $0x60] sm:$0xff]
      %v1939 = vld [vmem:[%s1595 + $0x68] sm:$0xff]
      %v1940 = vld [vmem:[%s1595 + $0x78] sm:$0xff]
      %v1941 = vld [vmem:[%s1595 + $0x80] sm:$0xff]
      %v1942 = vld [vmem:[%s1595 + $0x90] sm:$0xff]
      %v1943 = vld [vmem:[%s1595 + $0x98] sm:$0xff]
      %v1944 = vld [vmem:[%s1595 + $0xa8] sm:$0xff]
      %v1945 = vld [vmem:[%s1595 + $0xb0] sm:$0xff]
      %v1946 = vld [vmem:[%s1595 + $0xc0] sm:$0xff]
      %v1947 = vld [vmem:[%s1595 + $0xc8] sm:$0xff]
      %v1948 = vld [vmem:[%s1595 + $0xd8] sm:$0xff]
      %v1949 = vld [vmem:[%s1595 + $0xe0] sm:$0xff]
      %v1950 = vld [vmem:[%s1595 + $0xf0] sm:$0xff]
      %v1951 = vld [vmem:[%s1595 + $0xf8] sm:$0xff]
      %v1952 = vld [vmem:[%s1595 + $0x108] sm:$0xff]
      %v1953 = vld [vmem:[%s1595 + $0x110] sm:$0xff]
      %v1954 = vld [vmem:[%s1595 + $0x120] sm:$0xff]
      %v1955 = vld [vmem:[%s1595 + $0x128] sm:$0xff]
      %v1956 = vld [vmem:[%s1595 + $0x138] sm:$0xff]
      %v1957 = vld [vmem:[%s1595 + $0x140] sm:$0xff]
      %v1958 = vld [vmem:[%s1595 + $0x150] sm:$0xff]
      %v1959 = vld [vmem:[%s1595 + $0x158] sm:$0xff]
      %v1960 = vld [vmem:[%s1595 + $0x168] sm:$0xff]
      %v1961 = vld [vmem:[%s1595 + $0x170] sm:$0xff]
      %s1962 = scalar_lea.vmem %s4, 3
      %v1963 = vld [vmem:[%s1962] sm:$0x1]
      %v1965 = vperm.slane %v1963, 0
      %v1967 = vmul.f32 %v1930, %v1965
      %v1968 = vmul.f32 %v1931, %v1965
      %v1969 = vmul.f32 %v1932, %v1965
      %v1970 = vmul.f32 %v1933, %v1965
      %v1971 = vmul.f32 %v1934, %v1965
      %v1972 = vmul.f32 %v1935, %v1965
      %v1973 = vmul.f32 %v1936, %v1965
      %v1974 = vmul.f32 %v1937, %v1965
      %v1975 = vmul.f32 %v1938, %v1965
      %v1976 = vmul.f32 %v1939, %v1965
      %v1977 = vmul.f32 %v1940, %v1965
      %v1978 = vmul.f32 %v1941, %v1965
      %v1979 = vmul.f32 %v1942, %v1965
      %v1980 = vmul.f32 %v1943, %v1965
      %v1981 = vmul.f32 %v1944, %v1965
      %v1982 = vmul.f32 %v1945, %v1965
      %v1983 = vmul.f32 %v1946, %v1965
      %v1984 = vmul.f32 %v1947, %v1965
      %v1985 = vmul.f32 %v1948, %v1965
      %v1986 = vmul.f32 %v1949, %v1965
      %v1987 = vmul.f32 %v1950, %v1965
      %v1988 = vmul.f32 %v1951, %v1965
      %v1989 = vmul.f32 %v1952, %v1965
      %v1990 = vmul.f32 %v1953, %v1965
      %v1991 = vmul.f32 %v1954, %v1965
      %v1992 = vmul.f32 %v1955, %v1965
      %v1993 = vmul.f32 %v1956, %v1965
      %v1994 = vmul.f32 %v1957, %v1965
      %v1995 = vmul.f32 %v1958, %v1965
      %v1996 = vmul.f32 %v1959, %v1965
      %v1997 = vmul.f32 %v1960, %v1965
      %v1998 = vmul.f32 %v1961, %v1965
      %v1999 = vadd.f32 %v1898, %v1967
      %v2000 = vadd.f32 %v1899, %v1968
      %v2001 = vadd.f32 %v1900, %v1969
      %v2002 = vadd.f32 %v1901, %v1970
      %v2003 = vadd.f32 %v1902, %v1971
      %v2004 = vadd.f32 %v1903, %v1972
      %v2005 = vadd.f32 %v1904, %v1973
      %v2006 = vadd.f32 %v1905, %v1974
      %v2007 = vadd.f32 %v1906, %v1975
      %v2008 = vadd.f32 %v1907, %v1976
      %v2009 = vadd.f32 %v1908, %v1977
      %v2010 = vadd.f32 %v1909, %v1978
      %v2011 = vadd.f32 %v1910, %v1979
      %v2012 = vadd.f32 %v1911, %v1980
      %v2013 = vadd.f32 %v1912, %v1981
      %v2014 = vadd.f32 %v1913, %v1982
      %v2015 = vadd.f32 %v1914, %v1983
      %v2016 = vadd.f32 %v1915, %v1984
      %v2017 = vadd.f32 %v1916, %v1985
      %v2018 = vadd.f32 %v1917, %v1986
      %v2019 = vadd.f32 %v1918, %v1987
      %v2020 = vadd.f32 %v1919, %v1988
      %v2021 = vadd.f32 %v1920, %v1989
      %v2022 = vadd.f32 %v1921, %v1990
      %v2023 = vadd.f32 %v1922, %v1991
      %v2024 = vadd.f32 %v1923, %v1992
      %v2025 = vadd.f32 %v1924, %v1993
      %v2026 = vadd.f32 %v1925, %v1994
      %v2027 = vadd.f32 %v1926, %v1995
      %v2028 = vadd.f32 %v1927, %v1996
      %v2029 = vadd.f32 %v1928, %v1997
      %v2030 = vadd.f32 %v1929, %v1998
      %v2031 = vld [vmem:[%s1595 + $0x1] sm:$0xff]
      %v2032 = vld [vmem:[%s1595 + $0x9] sm:$0xff]
      %v2033 = vld [vmem:[%s1595 + $0x19] sm:$0xff]
      %v2034 = vld [vmem:[%s1595 + $0x21] sm:$0xff]
      %v2035 = vld [vmem:[%s1595 + $0x31] sm:$0xff]
      %v2036 = vld [vmem:[%s1595 + $0x39] sm:$0xff]
      %v2037 = vld [vmem:[%s1595 + $0x49] sm:$0xff]
      %v2038 = vld [vmem:[%s1595 + $0x51] sm:$0xff]
      %v2039 = vld [vmem:[%s1595 + $0x61] sm:$0xff]
      %v2040 = vld [vmem:[%s1595 + $0x69] sm:$0xff]
      %v2041 = vld [vmem:[%s1595 + $0x79] sm:$0xff]
      %v2042 = vld [vmem:[%s1595 + $0x81] sm:$0xff]
      %v2043 = vld [vmem:[%s1595 + $0x91] sm:$0xff]
      %v2044 = vld [vmem:[%s1595 + $0x99] sm:$0xff]
      %v2045 = vld [vmem:[%s1595 + $0xa9] sm:$0xff]
      %v2046 = vld [vmem:[%s1595 + $0xb1] sm:$0xff]
      %v2047 = vld [vmem:[%s1595 + $0xc1] sm:$0xff]
      %v2048 = vld [vmem:[%s1595 + $0xc9] sm:$0xff]
      %v2049 = vld [vmem:[%s1595 + $0xd9] sm:$0xff]
      %v2050 = vld [vmem:[%s1595 + $0xe1] sm:$0xff]
      %v2051 = vld [vmem:[%s1595 + $0xf1] sm:$0xff]
      %v2052 = vld [vmem:[%s1595 + $0xf9] sm:$0xff]
      %v2053 = vld [vmem:[%s1595 + $0x109] sm:$0xff]
      %v2054 = vld [vmem:[%s1595 + $0x111] sm:$0xff]
      %v2055 = vld [vmem:[%s1595 + $0x121] sm:$0xff]
      %v2056 = vld [vmem:[%s1595 + $0x129] sm:$0xff]
      %v2057 = vld [vmem:[%s1595 + $0x139] sm:$0xff]
      %v2058 = vld [vmem:[%s1595 + $0x141] sm:$0xff]
      %v2059 = vld [vmem:[%s1595 + $0x151] sm:$0xff]
      %v2060 = vld [vmem:[%s1595 + $0x159] sm:$0xff]
      %v2061 = vld [vmem:[%s1595 + $0x169] sm:$0xff]
      %v2062 = vld [vmem:[%s1595 + $0x171] sm:$0xff]
      %s2063 = scalar_lea.vmem %s4, 4
      %v2064 = vld [vmem:[%s2063] sm:$0x1]
      %v2066 = vperm.slane %v2064, 0
      %v2068 = vmul.f32 %v2031, %v2066
      %v2069 = vmul.f32 %v2032, %v2066
      %v2070 = vmul.f32 %v2033, %v2066
      %v2071 = vmul.f32 %v2034, %v2066
      %v2072 = vmul.f32 %v2035, %v2066
      %v2073 = vmul.f32 %v2036, %v2066
      %v2074 = vmul.f32 %v2037, %v2066
      %v2075 = vmul.f32 %v2038, %v2066
      %v2076 = vmul.f32 %v2039, %v2066
      %v2077 = vmul.f32 %v2040, %v2066
      %v2078 = vmul.f32 %v2041, %v2066
      %v2079 = vmul.f32 %v2042, %v2066
      %v2080 = vmul.f32 %v2043, %v2066
      %v2081 = vmul.f32 %v2044, %v2066
      %v2082 = vmul.f32 %v2045, %v2066
      %v2083 = vmul.f32 %v2046, %v2066
      %v2084 = vmul.f32 %v2047, %v2066
      %v2085 = vmul.f32 %v2048, %v2066
      %v2086 = vmul.f32 %v2049, %v2066
      %v2087 = vmul.f32 %v2050, %v2066
      %v2088 = vmul.f32 %v2051, %v2066
      %v2089 = vmul.f32 %v2052, %v2066
      %v2090 = vmul.f32 %v2053, %v2066
      %v2091 = vmul.f32 %v2054, %v2066
      %v2092 = vmul.f32 %v2055, %v2066
      %v2093 = vmul.f32 %v2056, %v2066
      %v2094 = vmul.f32 %v2057, %v2066
      %v2095 = vmul.f32 %v2058, %v2066
      %v2096 = vmul.f32 %v2059, %v2066
      %v2097 = vmul.f32 %v2060, %v2066
      %v2098 = vmul.f32 %v2061, %v2066
      %v2099 = vmul.f32 %v2062, %v2066
      %v2100 = vadd.f32 %v1999, %v2068
      %v2101 = vadd.f32 %v2000, %v2069
      %v2102 = vadd.f32 %v2001, %v2070
      %v2103 = vadd.f32 %v2002, %v2071
      %v2104 = vadd.f32 %v2003, %v2072
      %v2105 = vadd.f32 %v2004, %v2073
      %v2106 = vadd.f32 %v2005, %v2074
      %v2107 = vadd.f32 %v2006, %v2075
      %v2108 = vadd.f32 %v2007, %v2076
      %v2109 = vadd.f32 %v2008, %v2077
      %v2110 = vadd.f32 %v2009, %v2078
      %v2111 = vadd.f32 %v2010, %v2079
      %v2112 = vadd.f32 %v2011, %v2080
      %v2113 = vadd.f32 %v2012, %v2081
      %v2114 = vadd.f32 %v2013, %v2082
      %v2115 = vadd.f32 %v2014, %v2083
      %v2116 = vadd.f32 %v2015, %v2084
      %v2117 = vadd.f32 %v2016, %v2085
      %v2118 = vadd.f32 %v2017, %v2086
      %v2119 = vadd.f32 %v2018, %v2087
      %v2120 = vadd.f32 %v2019, %v2088
      %v2121 = vadd.f32 %v2020, %v2089
      %v2122 = vadd.f32 %v2021, %v2090
      %v2123 = vadd.f32 %v2022, %v2091
      %v2124 = vadd.f32 %v2023, %v2092
      %v2125 = vadd.f32 %v2024, %v2093
      %v2126 = vadd.f32 %v2025, %v2094
      %v2127 = vadd.f32 %v2026, %v2095
      %v2128 = vadd.f32 %v2027, %v2096
      %v2129 = vadd.f32 %v2028, %v2097
      %v2130 = vadd.f32 %v2029, %v2098
      %v2131 = vadd.f32 %v2030, %v2099
      %v2132 = vld [vmem:[%s1595 + $0x2] sm:$0xff]
      %v2133 = vld [vmem:[%s1595 + $0xa] sm:$0xff]
      %v2134 = vld [vmem:[%s1595 + $0x1a] sm:$0xff]
      %v2135 = vld [vmem:[%s1595 + $0x22] sm:$0xff]
      %v2136 = vld [vmem:[%s1595 + $0x32] sm:$0xff]
      %v2137 = vld [vmem:[%s1595 + $0x3a] sm:$0xff]
      %v2138 = vld [vmem:[%s1595 + $0x4a] sm:$0xff]
      %v2139 = vld [vmem:[%s1595 + $0x52] sm:$0xff]
      %v2140 = vld [vmem:[%s1595 + $0x62] sm:$0xff]
      %v2141 = vld [vmem:[%s1595 + $0x6a] sm:$0xff]
      %v2142 = vld [vmem:[%s1595 + $0x7a] sm:$0xff]
      %v2143 = vld [vmem:[%s1595 + $0x82] sm:$0xff]
      %v2144 = vld [vmem:[%s1595 + $0x92] sm:$0xff]
      %v2145 = vld [vmem:[%s1595 + $0x9a] sm:$0xff]
      %v2146 = vld [vmem:[%s1595 + $0xaa] sm:$0xff]
      %v2147 = vld [vmem:[%s1595 + $0xb2] sm:$0xff]
      %v2148 = vld [vmem:[%s1595 + $0xc2] sm:$0xff]
      %v2149 = vld [vmem:[%s1595 + $0xca] sm:$0xff]
      %v2150 = vld [vmem:[%s1595 + $0xda] sm:$0xff]
      %v2151 = vld [vmem:[%s1595 + $0xe2] sm:$0xff]
      %v2152 = vld [vmem:[%s1595 + $0xf2] sm:$0xff]
      %v2153 = vld [vmem:[%s1595 + $0xfa] sm:$0xff]
      %v2154 = vld [vmem:[%s1595 + $0x10a] sm:$0xff]
      %v2155 = vld [vmem:[%s1595 + $0x112] sm:$0xff]
      %v2156 = vld [vmem:[%s1595 + $0x122] sm:$0xff]
      %v2157 = vld [vmem:[%s1595 + $0x12a] sm:$0xff]
      %v2158 = vld [vmem:[%s1595 + $0x13a] sm:$0xff]
      %v2159 = vld [vmem:[%s1595 + $0x142] sm:$0xff]
      %v2160 = vld [vmem:[%s1595 + $0x152] sm:$0xff]
      %v2161 = vld [vmem:[%s1595 + $0x15a] sm:$0xff]
      %v2162 = vld [vmem:[%s1595 + $0x16a] sm:$0xff]
      %v2163 = vld [vmem:[%s1595 + $0x172] sm:$0xff]
      %s2164 = scalar_lea.vmem %s4, 5
      %v2165 = vld [vmem:[%s2164] sm:$0x1]
      %v2167 = vperm.slane %v2165, 0
      %v2169 = vmul.f32 %v2132, %v2167
      %v2170 = vmul.f32 %v2133, %v2167
      %v2171 = vmul.f32 %v2134, %v2167
      %v2172 = vmul.f32 %v2135, %v2167
      %v2173 = vmul.f32 %v2136, %v2167
      %v2174 = vmul.f32 %v2137, %v2167
      %v2175 = vmul.f32 %v2138, %v2167
      %v2176 = vmul.f32 %v2139, %v2167
      %v2177 = vmul.f32 %v2140, %v2167
      %v2178 = vmul.f32 %v2141, %v2167
      %v2179 = vmul.f32 %v2142, %v2167
      %v2180 = vmul.f32 %v2143, %v2167
      %v2181 = vmul.f32 %v2144, %v2167
      %v2182 = vmul.f32 %v2145, %v2167
      %v2183 = vmul.f32 %v2146, %v2167
      %v2184 = vmul.f32 %v2147, %v2167
      %v2185 = vmul.f32 %v2148, %v2167
      %v2186 = vmul.f32 %v2149, %v2167
      %v2187 = vmul.f32 %v2150, %v2167
      %v2188 = vmul.f32 %v2151, %v2167
      %v2189 = vmul.f32 %v2152, %v2167
      %v2190 = vmul.f32 %v2153, %v2167
      %v2191 = vmul.f32 %v2154, %v2167
      %v2192 = vmul.f32 %v2155, %v2167
      %v2193 = vmul.f32 %v2156, %v2167
      %v2194 = vmul.f32 %v2157, %v2167
      %v2195 = vmul.f32 %v2158, %v2167
      %v2196 = vmul.f32 %v2159, %v2167
      %v2197 = vmul.f32 %v2160, %v2167
      %v2198 = vmul.f32 %v2161, %v2167
      %v2199 = vmul.f32 %v2162, %v2167
      %v2200 = vmul.f32 %v2163, %v2167
      %v2201 = vadd.f32 %v2100, %v2169
      %v2202 = vadd.f32 %v2101, %v2170
      %v2203 = vadd.f32 %v2102, %v2171
      %v2204 = vadd.f32 %v2103, %v2172
      %v2205 = vadd.f32 %v2104, %v2173
      %v2206 = vadd.f32 %v2105, %v2174
      %v2207 = vadd.f32 %v2106, %v2175
      %v2208 = vadd.f32 %v2107, %v2176
      %v2209 = vadd.f32 %v2108, %v2177
      %v2210 = vadd.f32 %v2109, %v2178
      %v2211 = vadd.f32 %v2110, %v2179
      %v2212 = vadd.f32 %v2111, %v2180
      %v2213 = vadd.f32 %v2112, %v2181
      %v2214 = vadd.f32 %v2113, %v2182
      %v2215 = vadd.f32 %v2114, %v2183
      %v2216 = vadd.f32 %v2115, %v2184
      %v2217 = vadd.f32 %v2116, %v2185
      %v2218 = vadd.f32 %v2117, %v2186
      %v2219 = vadd.f32 %v2118, %v2187
      %v2220 = vadd.f32 %v2119, %v2188
      %v2221 = vadd.f32 %v2120, %v2189
      %v2222 = vadd.f32 %v2121, %v2190
      %v2223 = vadd.f32 %v2122, %v2191
      %v2224 = vadd.f32 %v2123, %v2192
      %v2225 = vadd.f32 %v2124, %v2193
      %v2226 = vadd.f32 %v2125, %v2194
      %v2227 = vadd.f32 %v2126, %v2195
      %v2228 = vadd.f32 %v2127, %v2196
      %v2229 = vadd.f32 %v2128, %v2197
      %v2230 = vadd.f32 %v2129, %v2198
      %v2231 = vadd.f32 %v2130, %v2199
      %v2232 = vadd.f32 %v2131, %v2200
      %s2233 = scalar_lea.vmem [#allocation3], 48
      %v2234 = vld [vmem:[%s2233] sm:$0xff]
      %v2235 = vld [vmem:[%s2233 + $0x8] sm:$0xff]
      %v2236 = vld [vmem:[%s2233 + $0x18] sm:$0xff]
      %v2237 = vld [vmem:[%s2233 + $0x20] sm:$0xff]
      %v2238 = vld [vmem:[%s2233 + $0x30] sm:$0xff]
      %v2239 = vld [vmem:[%s2233 + $0x38] sm:$0xff]
      %v2240 = vld [vmem:[%s2233 + $0x48] sm:$0xff]
      %v2241 = vld [vmem:[%s2233 + $0x50] sm:$0xff]
      %v2242 = vld [vmem:[%s2233 + $0x60] sm:$0xff]
      %v2243 = vld [vmem:[%s2233 + $0x68] sm:$0xff]
      %v2244 = vld [vmem:[%s2233 + $0x78] sm:$0xff]
      %v2245 = vld [vmem:[%s2233 + $0x80] sm:$0xff]
      %v2246 = vld [vmem:[%s2233 + $0x90] sm:$0xff]
      %v2247 = vld [vmem:[%s2233 + $0x98] sm:$0xff]
      %v2248 = vld [vmem:[%s2233 + $0xa8] sm:$0xff]
      %v2249 = vld [vmem:[%s2233 + $0xb0] sm:$0xff]
      %v2250 = vld [vmem:[%s2233 + $0xc0] sm:$0xff]
      %v2251 = vld [vmem:[%s2233 + $0xc8] sm:$0xff]
      %v2252 = vld [vmem:[%s2233 + $0xd8] sm:$0xff]
      %v2253 = vld [vmem:[%s2233 + $0xe0] sm:$0xff]
      %v2254 = vld [vmem:[%s2233 + $0xf0] sm:$0xff]
      %v2255 = vld [vmem:[%s2233 + $0xf8] sm:$0xff]
      %v2256 = vld [vmem:[%s2233 + $0x108] sm:$0xff]
      %v2257 = vld [vmem:[%s2233 + $0x110] sm:$0xff]
      %v2258 = vld [vmem:[%s2233 + $0x120] sm:$0xff]
      %v2259 = vld [vmem:[%s2233 + $0x128] sm:$0xff]
      %v2260 = vld [vmem:[%s2233 + $0x138] sm:$0xff]
      %v2261 = vld [vmem:[%s2233 + $0x140] sm:$0xff]
      %v2262 = vld [vmem:[%s2233 + $0x150] sm:$0xff]
      %v2263 = vld [vmem:[%s2233 + $0x158] sm:$0xff]
      %v2264 = vld [vmem:[%s2233 + $0x168] sm:$0xff]
      %v2265 = vld [vmem:[%s2233 + $0x170] sm:$0xff]
      %s2266 = scalar_lea.vmem %s4, 6
      %v2267 = vld [vmem:[%s2266] sm:$0x1]
      %v2269 = vperm.slane %v2267, 0
      %v2271 = vmul.f32 %v2234, %v2269
      %v2272 = vmul.f32 %v2235, %v2269
      %v2273 = vmul.f32 %v2236, %v2269
      %v2274 = vmul.f32 %v2237, %v2269
      %v2275 = vmul.f32 %v2238, %v2269
      %v2276 = vmul.f32 %v2239, %v2269
      %v2277 = vmul.f32 %v2240, %v2269
      %v2278 = vmul.f32 %v2241, %v2269
      %v2279 = vmul.f32 %v2242, %v2269
      %v2280 = vmul.f32 %v2243, %v2269
      %v2281 = vmul.f32 %v2244, %v2269
      %v2282 = vmul.f32 %v2245, %v2269
      %v2283 = vmul.f32 %v2246, %v2269
      %v2284 = vmul.f32 %v2247, %v2269
      %v2285 = vmul.f32 %v2248, %v2269
      %v2286 = vmul.f32 %v2249, %v2269
      %v2287 = vmul.f32 %v2250, %v2269
      %v2288 = vmul.f32 %v2251, %v2269
      %v2289 = vmul.f32 %v2252, %v2269
      %v2290 = vmul.f32 %v2253, %v2269
      %v2291 = vmul.f32 %v2254, %v2269
      %v2292 = vmul.f32 %v2255, %v2269
      %v2293 = vmul.f32 %v2256, %v2269
      %v2294 = vmul.f32 %v2257, %v2269
      %v2295 = vmul.f32 %v2258, %v2269
      %v2296 = vmul.f32 %v2259, %v2269
      %v2297 = vmul.f32 %v2260, %v2269
      %v2298 = vmul.f32 %v2261, %v2269
      %v2299 = vmul.f32 %v2262, %v2269
      %v2300 = vmul.f32 %v2263, %v2269
      %v2301 = vmul.f32 %v2264, %v2269
      %v2302 = vmul.f32 %v2265, %v2269
      %v2303 = vadd.f32 %v2201, %v2271
      %v2304 = vadd.f32 %v2202, %v2272
      %v2305 = vadd.f32 %v2203, %v2273
      %v2306 = vadd.f32 %v2204, %v2274
      %v2307 = vadd.f32 %v2205, %v2275
      %v2308 = vadd.f32 %v2206, %v2276
      %v2309 = vadd.f32 %v2207, %v2277
      %v2310 = vadd.f32 %v2208, %v2278
      %v2311 = vadd.f32 %v2209, %v2279
      %v2312 = vadd.f32 %v2210, %v2280
      %v2313 = vadd.f32 %v2211, %v2281
      %v2314 = vadd.f32 %v2212, %v2282
      %v2315 = vadd.f32 %v2213, %v2283
      %v2316 = vadd.f32 %v2214, %v2284
      %v2317 = vadd.f32 %v2215, %v2285
      %v2318 = vadd.f32 %v2216, %v2286
      %v2319 = vadd.f32 %v2217, %v2287
      %v2320 = vadd.f32 %v2218, %v2288
      %v2321 = vadd.f32 %v2219, %v2289
      %v2322 = vadd.f32 %v2220, %v2290
      %v2323 = vadd.f32 %v2221, %v2291
      %v2324 = vadd.f32 %v2222, %v2292
      %v2325 = vadd.f32 %v2223, %v2293
      %v2326 = vadd.f32 %v2224, %v2294
      %v2327 = vadd.f32 %v2225, %v2295
      %v2328 = vadd.f32 %v2226, %v2296
      %v2329 = vadd.f32 %v2227, %v2297
      %v2330 = vadd.f32 %v2228, %v2298
      %v2331 = vadd.f32 %v2229, %v2299
      %v2332 = vadd.f32 %v2230, %v2300
      %v2333 = vadd.f32 %v2231, %v2301
      %v2334 = vadd.f32 %v2232, %v2302
      %v2335 = vld [vmem:[%s2233 + $0x1] sm:$0xff]
      %v2336 = vld [vmem:[%s2233 + $0x9] sm:$0xff]
      %v2337 = vld [vmem:[%s2233 + $0x19] sm:$0xff]
      %v2338 = vld [vmem:[%s2233 + $0x21] sm:$0xff]
      %v2339 = vld [vmem:[%s2233 + $0x31] sm:$0xff]
      %v2340 = vld [vmem:[%s2233 + $0x39] sm:$0xff]
      %v2341 = vld [vmem:[%s2233 + $0x49] sm:$0xff]
      %v2342 = vld [vmem:[%s2233 + $0x51] sm:$0xff]
      %v2343 = vld [vmem:[%s2233 + $0x61] sm:$0xff]
      %v2344 = vld [vmem:[%s2233 + $0x69] sm:$0xff]
      %v2345 = vld [vmem:[%s2233 + $0x79] sm:$0xff]
      %v2346 = vld [vmem:[%s2233 + $0x81] sm:$0xff]
      %v2347 = vld [vmem:[%s2233 + $0x91] sm:$0xff]
      %v2348 = vld [vmem:[%s2233 + $0x99] sm:$0xff]
      %v2349 = vld [vmem:[%s2233 + $0xa9] sm:$0xff]
      %v2350 = vld [vmem:[%s2233 + $0xb1] sm:$0xff]
      %v2351 = vld [vmem:[%s2233 + $0xc1] sm:$0xff]
      %v2352 = vld [vmem:[%s2233 + $0xc9] sm:$0xff]
      %v2353 = vld [vmem:[%s2233 + $0xd9] sm:$0xff]
      %v2354 = vld [vmem:[%s2233 + $0xe1] sm:$0xff]
      %v2355 = vld [vmem:[%s2233 + $0xf1] sm:$0xff]
      %v2356 = vld [vmem:[%s2233 + $0xf9] sm:$0xff]
      %v2357 = vld [vmem:[%s2233 + $0x109] sm:$0xff]
      %v2358 = vld [vmem:[%s2233 + $0x111] sm:$0xff]
      %v2359 = vld [vmem:[%s2233 + $0x121] sm:$0xff]
      %v2360 = vld [vmem:[%s2233 + $0x129] sm:$0xff]
      %v2361 = vld [vmem:[%s2233 + $0x139] sm:$0xff]
      %v2362 = vld [vmem:[%s2233 + $0x141] sm:$0xff]
      %v2363 = vld [vmem:[%s2233 + $0x151] sm:$0xff]
      %v2364 = vld [vmem:[%s2233 + $0x159] sm:$0xff]
      %v2365 = vld [vmem:[%s2233 + $0x169] sm:$0xff]
      %v2366 = vld [vmem:[%s2233 + $0x171] sm:$0xff]
      %s2367 = scalar_lea.vmem %s4, 7
      %v2368 = vld [vmem:[%s2367] sm:$0x1]
      %v2370 = vperm.slane %v2368, 0
      %v2372 = vmul.f32 %v2335, %v2370
      %v2373 = vmul.f32 %v2336, %v2370
      %v2374 = vmul.f32 %v2337, %v2370
      %v2375 = vmul.f32 %v2338, %v2370
      %v2376 = vmul.f32 %v2339, %v2370
      %v2377 = vmul.f32 %v2340, %v2370
      %v2378 = vmul.f32 %v2341, %v2370
      %v2379 = vmul.f32 %v2342, %v2370
      %v2380 = vmul.f32 %v2343, %v2370
      %v2381 = vmul.f32 %v2344, %v2370
      %v2382 = vmul.f32 %v2345, %v2370
      %v2383 = vmul.f32 %v2346, %v2370
      %v2384 = vmul.f32 %v2347, %v2370
      %v2385 = vmul.f32 %v2348, %v2370
      %v2386 = vmul.f32 %v2349, %v2370
      %v2387 = vmul.f32 %v2350, %v2370
      %v2388 = vmul.f32 %v2351, %v2370
      %v2389 = vmul.f32 %v2352, %v2370
      %v2390 = vmul.f32 %v2353, %v2370
      %v2391 = vmul.f32 %v2354, %v2370
      %v2392 = vmul.f32 %v2355, %v2370
      %v2393 = vmul.f32 %v2356, %v2370
      %v2394 = vmul.f32 %v2357, %v2370
      %v2395 = vmul.f32 %v2358, %v2370
      %v2396 = vmul.f32 %v2359, %v2370
      %v2397 = vmul.f32 %v2360, %v2370
      %v2398 = vmul.f32 %v2361, %v2370
      %v2399 = vmul.f32 %v2362, %v2370
      %v2400 = vmul.f32 %v2363, %v2370
      %v2401 = vmul.f32 %v2364, %v2370
      %v2402 = vmul.f32 %v2365, %v2370
      %v2403 = vmul.f32 %v2366, %v2370
      %v2404 = vadd.f32 %v2303, %v2372
      %v2405 = vadd.f32 %v2304, %v2373
      %v2406 = vadd.f32 %v2305, %v2374
      %v2407 = vadd.f32 %v2306, %v2375
      %v2408 = vadd.f32 %v2307, %v2376
      %v2409 = vadd.f32 %v2308, %v2377
      %v2410 = vadd.f32 %v2309, %v2378
      %v2411 = vadd.f32 %v2310, %v2379
      %v2412 = vadd.f32 %v2311, %v2380
      %v2413 = vadd.f32 %v2312, %v2381
      %v2414 = vadd.f32 %v2313, %v2382
      %v2415 = vadd.f32 %v2314, %v2383
      %v2416 = vadd.f32 %v2315, %v2384
      %v2417 = vadd.f32 %v2316, %v2385
      %v2418 = vadd.f32 %v2317, %v2386
      %v2419 = vadd.f32 %v2318, %v2387
      %v2420 = vadd.f32 %v2319, %v2388
      %v2421 = vadd.f32 %v2320, %v2389
      %v2422 = vadd.f32 %v2321, %v2390
      %v2423 = vadd.f32 %v2322, %v2391
      %v2424 = vadd.f32 %v2323, %v2392
      %v2425 = vadd.f32 %v2324, %v2393
      %v2426 = vadd.f32 %v2325, %v2394
      %v2427 = vadd.f32 %v2326, %v2395
      %v2428 = vadd.f32 %v2327, %v2396
      %v2429 = vadd.f32 %v2328, %v2397
      %v2430 = vadd.f32 %v2329, %v2398
      %v2431 = vadd.f32 %v2330, %v2399
      %v2432 = vadd.f32 %v2331, %v2400
      %v2433 = vadd.f32 %v2332, %v2401
      %v2434 = vadd.f32 %v2333, %v2402
      %v2435 = vadd.f32 %v2334, %v2403
      %v2436 = vld [vmem:[%s2233 + $0x2] sm:$0xff]
      %v2437 = vld [vmem:[%s2233 + $0xa] sm:$0xff]
      %v2438 = vld [vmem:[%s2233 + $0x1a] sm:$0xff]
      %v2439 = vld [vmem:[%s2233 + $0x22] sm:$0xff]
      %v2440 = vld [vmem:[%s2233 + $0x32] sm:$0xff]
      %v2441 = vld [vmem:[%s2233 + $0x3a] sm:$0xff]
      %v2442 = vld [vmem:[%s2233 + $0x4a] sm:$0xff]
      %v2443 = vld [vmem:[%s2233 + $0x52] sm:$0xff]
      %v2444 = vld [vmem:[%s2233 + $0x62] sm:$0xff]
      %v2445 = vld [vmem:[%s2233 + $0x6a] sm:$0xff]
      %v2446 = vld [vmem:[%s2233 + $0x7a] sm:$0xff]
      %v2447 = vld [vmem:[%s2233 + $0x82] sm:$0xff]
      %v2448 = vld [vmem:[%s2233 + $0x92] sm:$0xff]
      %v2449 = vld [vmem:[%s2233 + $0x9a] sm:$0xff]
      %v2450 = vld [vmem:[%s2233 + $0xaa] sm:$0xff]
      %v2451 = vld [vmem:[%s2233 + $0xb2] sm:$0xff]
      %v2452 = vld [vmem:[%s2233 + $0xc2] sm:$0xff]
      %v2453 = vld [vmem:[%s2233 + $0xca] sm:$0xff]
      %v2454 = vld [vmem:[%s2233 + $0xda] sm:$0xff]
      %v2455 = vld [vmem:[%s2233 + $0xe2] sm:$0xff]
      %v2456 = vld [vmem:[%s2233 + $0xf2] sm:$0xff]
      %v2457 = vld [vmem:[%s2233 + $0xfa] sm:$0xff]
      %v2458 = vld [vmem:[%s2233 + $0x10a] sm:$0xff]
      %v2459 = vld [vmem:[%s2233 + $0x112] sm:$0xff]
      %v2460 = vld [vmem:[%s2233 + $0x122] sm:$0xff]
      %v2461 = vld [vmem:[%s2233 + $0x12a] sm:$0xff]
      %v2462 = vld [vmem:[%s2233 + $0x13a] sm:$0xff]
      %v2463 = vld [vmem:[%s2233 + $0x142] sm:$0xff]
      %v2464 = vld [vmem:[%s2233 + $0x152] sm:$0xff]
      %v2465 = vld [vmem:[%s2233 + $0x15a] sm:$0xff]
      %v2466 = vld [vmem:[%s2233 + $0x16a] sm:$0xff]
      %v2467 = vld [vmem:[%s2233 + $0x172] sm:$0xff]
      %s2468 = scalar_lea.vmem %s4, 8
      %v2469 = vld [vmem:[%s2468] sm:$0x1]
      %v2471 = vperm.slane %v2469, 0
      %v2473 = vmul.f32 %v2436, %v2471
      %v2474 = vmul.f32 %v2437, %v2471
      %v2475 = vmul.f32 %v2438, %v2471
      %v2476 = vmul.f32 %v2439, %v2471
      %v2477 = vmul.f32 %v2440, %v2471
      %v2478 = vmul.f32 %v2441, %v2471
      %v2479 = vmul.f32 %v2442, %v2471
      %v2480 = vmul.f32 %v2443, %v2471
      %v2481 = vmul.f32 %v2444, %v2471
      %v2482 = vmul.f32 %v2445, %v2471
      %v2483 = vmul.f32 %v2446, %v2471
      %v2484 = vmul.f32 %v2447, %v2471
      %v2485 = vmul.f32 %v2448, %v2471
      %v2486 = vmul.f32 %v2449, %v2471
      %v2487 = vmul.f32 %v2450, %v2471
      %v2488 = vmul.f32 %v2451, %v2471
      %v2489 = vmul.f32 %v2452, %v2471
      %v2490 = vmul.f32 %v2453, %v2471
      %v2491 = vmul.f32 %v2454, %v2471
      %v2492 = vmul.f32 %v2455, %v2471
      %v2493 = vmul.f32 %v2456, %v2471
      %v2494 = vmul.f32 %v2457, %v2471
      %v2495 = vmul.f32 %v2458, %v2471
      %v2496 = vmul.f32 %v2459, %v2471
      %v2497 = vmul.f32 %v2460, %v2471
      %v2498 = vmul.f32 %v2461, %v2471
      %v2499 = vmul.f32 %v2462, %v2471
      %v2500 = vmul.f32 %v2463, %v2471
      %v2501 = vmul.f32 %v2464, %v2471
      %v2502 = vmul.f32 %v2465, %v2471
      %v2503 = vmul.f32 %v2466, %v2471
      %v2504 = vmul.f32 %v2467, %v2471
      %v2505 = vadd.f32 %v2404, %v2473
      %v2506 = vadd.f32 %v2405, %v2474
      %v2507 = vadd.f32 %v2406, %v2475
      %v2508 = vadd.f32 %v2407, %v2476
      %v2509 = vadd.f32 %v2408, %v2477
      %v2510 = vadd.f32 %v2409, %v2478
      %v2511 = vadd.f32 %v2410, %v2479
      %v2512 = vadd.f32 %v2411, %v2480
      %v2513 = vadd.f32 %v2412, %v2481
      %v2514 = vadd.f32 %v2413, %v2482
      %v2515 = vadd.f32 %v2414, %v2483
      %v2516 = vadd.f32 %v2415, %v2484
      %v2517 = vadd.f32 %v2416, %v2485
      %v2518 = vadd.f32 %v2417, %v2486
      %v2519 = vadd.f32 %v2418, %v2487
      %v2520 = vadd.f32 %v2419, %v2488
      %v2521 = vadd.f32 %v2420, %v2489
      %v2522 = vadd.f32 %v2421, %v2490
      %v2523 = vadd.f32 %v2422, %v2491
      %v2524 = vadd.f32 %v2423, %v2492
      %v2525 = vadd.f32 %v2424, %v2493
      %v2526 = vadd.f32 %v2425, %v2494
      %v2527 = vadd.f32 %v2426, %v2495
      %v2528 = vadd.f32 %v2427, %v2496
      %v2529 = vadd.f32 %v2428, %v2497
      %v2530 = vadd.f32 %v2429, %v2498
      %v2531 = vadd.f32 %v2430, %v2499
      %v2532 = vadd.f32 %v2431, %v2500
      %v2533 = vadd.f32 %v2432, %v2501
      %v2534 = vadd.f32 %v2433, %v2502
      %v2535 = vadd.f32 %v2434, %v2503
      %v2536 = vadd.f32 %v2435, %v2504
      %v2537 = vld [vmem:[%s5] sm:$0xff]
      %v2538 = vld [vmem:[%s6] sm:$0xff]
      %2540 = vset.pattern.permute.xlu0 0
      %2541 = vperm.xlu0 %2540, %v2538
      %v2542 = vpop.permute.xlu0 %2541
      %v2545 = vsel %vm1549, %v2537, 0
      %v2548 = vsel %vm1549, %v2505, 0
      %v2551 = vsel %vm1549, %v2506, 0
      %v2554 = vsel %vm1549, %v2507, 0
      %v2557 = vsel %vm1549, %v2508, 0
      %v2560 = vsel %vm1549, %v2509, 0
      %v2563 = vsel %vm1549, %v2510, 0
      %v2566 = vsel %vm1549, %v2511, 0
      %v2569 = vsel %vm1549, %v2512, 0
      %v2572 = vsel %vm1549, %v2513, 0
      %v2575 = vsel %vm1549, %v2514, 0
      %v2578 = vsel %vm1549, %v2515, 0
      %v2581 = vsel %vm1549, %v2516, 0
      %v2584 = vsel %vm1549, %v2517, 0
      %v2587 = vsel %vm1549, %v2518, 0
      %v2590 = vsel %vm1549, %v2519, 0
      %v2593 = vsel %vm1549, %v2520, 0
      %v2596 = vsel %vm1549, %v2521, 0
      %v2599 = vsel %vm1549, %v2522, 0
      %v2602 = vsel %vm1549, %v2523, 0
      %v2605 = vsel %vm1549, %v2524, 0
      %v2608 = vsel %vm1549, %v2525, 0
      %v2611 = vsel %vm1549, %v2526, 0
      %v2614 = vsel %vm1549, %v2527, 0
      %v2617 = vsel %vm1549, %v2528, 0
      %v2620 = vsel %vm1549, %v2529, 0
      %v2623 = vsel %vm1549, %v2530, 0
      %v2626 = vsel %vm1549, %v2531, 0
      %v2629 = vsel %vm1549, %v2532, 0
      %v2632 = vsel %vm1549, %v2533, 0
      %v2635 = vsel %vm1549, %v2534, 0
      %v2638 = vsel %vm1549, %v2535, 0
      %v2641 = vsel %vm1549, %v2536, 0
      %2643 = vmatpush.xpose.msra.mxu0 %v2593
      %2644 = vmatpush.xpose.msra.mxu0 %v2590
      %2645 = vmatpush.xpose.msra.mxu0 %v2587
      %2646 = vmatpush.xpose.msra.mxu0 %v2584
      %2647 = vmatpush.xpose.msra.mxu0 %v2581
      %2648 = vmatpush.xpose.msra.mxu0 %v2578
      %2649 = vmatpush.xpose.msra.mxu0 %v2575
      %2650 = vmatpush.xpose.msra.mxu0 %v2572
      %2651 = vmatpush.xpose.msra.mxu0 %v2569
      %2652 = vmatpush.xpose.msra.mxu0 %v2566
      %2653 = vmatpush.xpose.msra.mxu0 %v2563
      %2654 = vmatpush.xpose.msra.mxu0 %v2560
      %2655 = vmatpush.xpose.msra.mxu0 %v2557
      %2656 = vmatpush.xpose.msra.mxu0 %v2554
      %2657 = vmatpush.xpose.msra.mxu0 %v2551
      %2658 = vmatpush.xpose.msra.mxu0 %v2548
      %2659 = vmatmul.f32.gmra.mxu0 %v2545
      %v2660 = vpop.f32.mrf.mxu0
      %v2661 = vadd.f32 %v2542, %v2660
      %2662 = vdwg.mxu0
      %2663 = vmatpush.xpose.msra.mxu0 %v2641
      %2664 = vmatpush.xpose.msra.mxu0 %v2638
      %2665 = vmatpush.xpose.msra.mxu0 %v2635
      %2666 = vmatpush.xpose.msra.mxu0 %v2632
      %2667 = vmatpush.xpose.msra.mxu0 %v2629
      %2668 = vmatpush.xpose.msra.mxu0 %v2626
      %2669 = vmatpush.xpose.msra.mxu0 %v2623
      %2670 = vmatpush.xpose.msra.mxu0 %v2620
      %2671 = vmatpush.xpose.msra.mxu0 %v2617
      %2672 = vmatpush.xpose.msra.mxu0 %v2614
      %2673 = vmatpush.xpose.msra.mxu0 %v2611
      %2674 = vmatpush.xpose.msra.mxu0 %v2608
      %2675 = vmatpush.xpose.msra.mxu0 %v2605
      %2676 = vmatpush.xpose.msra.mxu0 %v2602
      %2677 = vmatpush.xpose.msra.mxu0 %v2599
      %2678 = vmatpush.xpose.msra.mxu0 %v2596
      %2679 = vmatmul.f32.gmra.mxu0 %v2545
      %v2680 = vpop.f32.mrf.mxu0
      %v2681 = vadd.f32 %v2542, %v2680
      %2682 = vdwg.mxu0
      %v2683 = vmax.f32 %v2661, 0.0
      %v2684 = vmax.f32 %v2681, 0.0
      %2685 = vst [vmem:[%s278] sm:$0xff] %v2683
      %2686 = vst [vmem:[%s278 + $0x8] sm:$0xff] %v2684
      %p2687 = scmp.lt.s32.totalorder %s18, 1
      %s2688 = scalar_select %p2687, %s18, 1
      %s2689 = smul.addr %s2688, 2
      %s2690 = smul.addr %s2689, 8
      %s2691 = scalar_lea.vmem %s7, %s2690
      // Predicated region
      $region49: #{conv_block_forward.1} parent=47 // pred_check
        %p2692 = pneg %p188
      $region50: #{conv_block_forward.1} parent=47 // pred_check_branch
        %2694 = sbr.rel (%p2692) target = $region52
      $region51: #{conv_block_forward.1} parent=47 // pred_region
        _
      $region52: #{conv_block_forward.1} parent=47 // pred_fallthru
        _
    $region48: #{conv_block_forward.1} parent=5 // pred_fallthru
      _
    %p2695 = scmp.le.s32.totalorder 2, %s13
    // Predicated region
    $region53: #{conv_block_forward.1} parent=5 // pred_check
      %p2696 = pneg %p2695
    $region54: #{conv_block_forward.1} parent=5 // pred_check_branch
      %2698 = sbr.rel (%p2696) target = $region56
    $region55: #{conv_block_forward.1} parent=5 // pred_region
      %s2699 = ssub.s32 %s13, 2
      // Predicated region
      $region57: #{conv_block_forward.1} parent=55 // pred_check
        %p2700 = pneg %p194
      $region58: #{conv_block_forward.1} parent=55 // pred_check_branch
        %2702 = sbr.rel (%p2700) target = $region60
      $region59: #{conv_block_forward.1} parent=55 // pred_region
        %p2703 = scmp.lt.s32.totalorder %s19, 1
        %s2704 = scalar_select %p2703, %s19, 1
        %s2705 = smul.addr %s2704, 2
        %s2706 = smul.addr %s2705, 8
        %s2707 = scalar_lea.vmem %s7, %s2706
      $region60: #{conv_block_forward.1} parent=55 // pred_fallthru
        _
    $region56: #{conv_block_forward.1} parent=5 // pred_fallthru
      _
  $region6: #{conv_block_forward.1} parent=0 // loop_footer
    %s17 = sadd.s32 1, %s13
  $region7: #{conv_block_forward.1} parent=0 // loop_footer_branch
    %12 = sbr.rel target = $region3
  $region8: #{conv_block_forward.1} parent=0 // loop_exit
    _

</llo_original>
